<compile_context>
chip_gen: v5e
topology: v5e:2x2
jax: 0.10.0
libtpu: 0.0.40
codegen_flags: <defaults>
</compile_context>

<pallas_src>
import functools

import numpy as np

import jax
import jax.numpy as jnp
from jax import lax
from jax.experimental import pallas as pl
from jax.experimental.pallas import tpu as pltpu

# ------------------------------ static geometry ------------------------------

H = W = 16                   # input spatial size
HP, WP = H + 2, W + 2        # zero-padded spatial size (pad = 1)
RASTER = HP * WP             # 324 flattened padded positions
CIN = 5                      # image_channels (TileNet default)
CIN_PAD = 8                  # pad input channels per tap
K1 = 9 * CIN_PAD             # 72  : conv1 im2col contraction dim
HIDDEN = 32
Z_DIM = 32
C_PAD = 128                  # conv2 / fc outputs padded to a full lane width

CENTER0 = WP + 1             # 19  : first conv-center raster index
P2 = 288                     # conv rows per image (286 real centers + 2 pad)
TILE = 96                    # M-tile (acc = 96x128 f32 = 12 vregs)
NT = P2 // TILE              # 3 tiles per image
BASE = 32                    # 16-aligned row offset of the interior block
HALO = 32                    # leading / trailing zero rows per image
R2 = BASE + P2 + HALO        # 352 per-image scratch rows (multiple of 16)

# 3x3 tap offsets inside the flattened padded raster (di-major, dj-minor)
TAP_OFFSETS = tuple((di - 1) * WP + (dj - 1) for di in range(3) for dj in range(3))
# == (-19, -18, -17, -1, 0, 1, 17, 18, 19)


def _build_masks():
    """Row masks over the P2 conv-output rows (built once, numpy)."""
    idx = np.arange(P2)
    p = idx + CENTER0                       # padded-raster center per row
    ph, pw = p // WP, p % WP
    interior = (ph >= 1) & (ph <= H) & (pw >= 1) & (pw <= W)
    assert int(interior.sum()) == H * W
    # stride-2 conv2 output centers: padded (2*oh+1, 2*ow+1)  <=>  ph, pw odd
    sel = interior & (ph % 2 == 1) & (pw % 2 == 1)
    assert int(sel.sum()) == (H // 2) * (W // 2)
    m1 = interior.astype(np.float32).reshape(P2, 1)
    # fold the 1/64 mean-pool normalisation into the selection mask
    m2 = (sel.astype(np.float32) / float((H // 2) * (W // 2))).reshape(P2, 1)
    return m1, m2


_MASK1_NP, _MASK2_NP = _build_masks()


# -------------------------------- Pallas kernel -------------------------------

def _tilenet_kernel(xcols_ref, w1_ref, b1_ref, w2_ref, b2_ref, w3_ref, b3_ref,
                    m1_ref, m2_ref, o_ref, y1p_ref, *, tb):
    halo_zeros = jnp.zeros((HALO, HIDDEN), jnp.bfloat16)

    # ---------------- phase 1: conv1 (one K=72 matmul per 96-row tile) --------
    # y1p scratch layout (per image, R2=352 rows, 32 lanes, bf16):
    #   rows [0,32)      : zero halo
    #   rows [32,320)    : ReLU(conv1) for raster centers 19..306 (wrap-masked)
    #   rows [320,352)   : zero halo
    for b in range(tb):
        base = b * R2
        y1p_ref[pl.ds(base, HALO), :] = halo_zeros
        y1p_ref[pl.ds(base + R2 - HALO, HALO), :] = halo_zeros
        for k in range(NT):
            rows = pl.ds(b * P2 + k * TILE, TILE)
            pre = jnp.dot(xcols_ref[rows, :], w1_ref[...],
                          preferred_element_type=jnp.float32)          # [96, 32]
            act = jnp.maximum(pre + b1_ref[...], 0.0)
            act = act * m1_ref[pl.ds(k * TILE, TILE), :]               # zero wraps
            y1p_ref[pl.ds(base + BASE + k * TILE, TILE), :] = act.astype(jnp.bfloat16)

    # -------- phase 2: conv2 (dense, register-resident acc) + pool + fc -------
    pooled_rows = []
    for b in range(tb):
        pooled = jnp.zeros((1, C_PAD), jnp.float32)
        for k in range(NT):
            r0 = b * R2 + BASE + k * TILE
            acc = jnp.dot(y1p_ref[pl.ds(r0 + TAP_OFFSETS[0], TILE), :], w2_ref[0],
                          preferred_element_type=jnp.float32)          # [96, 128]
            for t in range(1, 9):
                acc = acc + jnp.dot(y1p_ref[pl.ds(r0 + TAP_OFFSETS[t], TILE), :],
                                    w2_ref[t],
                                    preferred_element_type=jnp.float32)
            y2 = jnp.maximum(acc + b2_ref[...], 0.0)
            # stride-2 selection + global mean pool folded into m2 ({0, 1/64})
            pooled = pooled + jnp.sum(y2 * m2_ref[pl.ds(k * TILE, TILE), :],
                                      axis=0, keepdims=True)
        pooled_rows.append(pooled)

    pooled_all = pooled_rows[0] if tb == 1 else jnp.concatenate(pooled_rows, axis=0)
    z = jnp.dot(pooled_all.astype(jnp.bfloat16), w3_ref[...],
                preferred_element_type=jnp.float32) + b3_ref[...]      # [TB, 128]
    o_ref[0] = z


# ------------------------------ parameter prep --------------------------------

def init_params(image_channels=CIN, hidden=HIDDEN, z_dim=Z_DIM):
    """Deterministic synthetic parameters (PyTorch-style layouts)."""
    keys = jax.random.split(jax.random.PRNGKey(42), 6)
    scale1 = 1.0 / np.sqrt(image_channels * 9)
    scale2 = 1.0 / np.sqrt(hidden * 9)
    scale3 = 1.0 / np.sqrt(hidden)
    return {
        "w1": jax.random.normal(keys[0], (hidden, image_channels, 3, 3), jnp.float32) * scale1,
        "b1": jax.random.normal(keys[1], (hidden,), jnp.float32) * scale1,
        "w2": jax.random.normal(keys[2], (hidden, hidden, 3, 3), jnp.float32) * scale2,
        "b2": jax.random.normal(keys[3], (hidden,), jnp.float32) * scale2,
        "w3": jax.random.normal(keys[4], (hidden, z_dim), jnp.float32) * scale3,  # [in, out]
        "b3": jax.random.normal(keys[5], (z_dim,), jnp.float32) * scale3,
    }


def _pick_tb(batch):
    """Images per grid step: amortize step overhead, keep >=2 steps when B>=2."""
    if batch >= 16:
        return 8
    return max(1, batch // 2)


# --------------------------------- forward ------------------------------------

@jax.jit
def tilenet_forward(params, x_nchw):
    """TileNet.forward(x) == encoder(x): returns a [B, z_dim] embedding."""
    B = x_nchw.shape[0]
    TB = _pick_tb(B)
    steps = (B + TB - 1) // TB
    B_pad = steps * TB

    # ---- conv1 im2col in the wrapper: [B_pad*288, 72] bf16 (tap-major) ----
    x_hwc = jnp.transpose(x_nchw, (0, 2, 3, 1))
    x_hwc = jnp.pad(x_hwc, ((0, B_pad - B), (1, 1), (1, 1), (0, CIN_PAD - CIN)))
    x_rast = x_hwc.reshape(B_pad, RASTER, CIN_PAD)
    x_rast = jnp.pad(x_rast, ((0, 0), (0, 4), (0, 0)))       # rows 0..327
    x_rast = x_rast.astype(jnp.bfloat16)
    cols = [lax.slice_in_dim(x_rast, CENTER0 + off, CENTER0 + off + P2, axis=1)
            for off in TAP_OFFSETS]                           # 9 x [B_pad, 288, 8]
    x_cols = jnp.concatenate(cols, axis=-1).reshape(B_pad * P2, K1)

    # ---- weights / biases / masks (resident in VMEM across the grid) ----
    w1 = jnp.pad(jnp.transpose(params["w1"], (2, 3, 1, 0)),
                 ((0, 0), (0, 0), (0, CIN_PAD - CIN), (0, 0)))
    w1 = w1.reshape(K1, HIDDEN).astype(jnp.bfloat16)                        # [72, 32]
    b1 = params["b1"].reshape(1, HIDDEN).astype(jnp.float32)                # [1, 32]
    w2 = jnp.transpose(params["w2"], (2, 3, 1, 0)).reshape(9, HIDDEN, HIDDEN)
    w2 = jnp.pad(w2, ((0, 0), (0, 0), (0, C_PAD - HIDDEN))).astype(jnp.bfloat16)  # [9,32,128]
    b2 = jnp.pad(params["b2"], (0, C_PAD - HIDDEN)).reshape(1, C_PAD).astype(jnp.float32)
    w3 = jnp.pad(params["w3"],
                 ((0, C_PAD - HIDDEN), (0, C_PAD - Z_DIM))).astype(jnp.bfloat16)  # [128,128]
    b3 = jnp.pad(params["b3"], (0, C_PAD - Z_DIM)).reshape(1, C_PAD).astype(jnp.float32)
    m1 = jnp.asarray(_MASK1_NP)                                             # [288, 1]
    m2 = jnp.asarray(_MASK2_NP)                                             # [288, 1]

    kernel = functools.partial(_tilenet_kernel, tb=TB)
    const2 = lambda s: (0, 0)
    const3 = lambda s: (0, 0, 0)

    z_pad = pl.pallas_call(
        kernel,
        out_shape=jax.ShapeDtypeStruct((steps, TB, C_PAD), jnp.float32),
        grid_spec=pltpu.PrefetchScalarGridSpec(
            num_scalar_prefetch=0,
            grid=(steps,),
            in_specs=[
                pl.BlockSpec((TB * P2, K1), lambda s: (s, 0)),    # im2col slab (streams)
                pl.BlockSpec((K1, HIDDEN), const2),               # w1 (resident)
                pl.BlockSpec((1, HIDDEN), const2),                # b1
                pl.BlockSpec((9, HIDDEN, C_PAD), const3),         # w2 (resident, K=32)
                pl.BlockSpec((1, C_PAD), const2),                 # b2
                pl.BlockSpec((C_PAD, C_PAD), const2),             # w3 (resident)
                pl.BlockSpec((1, C_PAD), const2),                 # b3
                pl.BlockSpec((P2, 1), const2),                    # interior mask
                pl.BlockSpec((P2, 1), const2),                    # pool mask (1/64)
            ],
            out_specs=pl.BlockSpec((1, TB, C_PAD), lambda s: (s, 0, 0)),
            scratch_shapes=[pltpu.VMEM((TB * R2, HIDDEN), jnp.bfloat16)],  # y1 raster
        ),
        compiler_params=pltpu.CompilerParams(
            dimension_semantics=("parallel",),
            vmem_limit_bytes=32 * 1024 * 1024),
    )(x_cols, w1, b1, w2, b2, w3, b3, m1, m2)

    return z_pad.reshape(B_pad, C_PAD)[:B, :Z_DIM]


# ---------------------------- pure-JAX reference -------------------------------

def reference_forward(params, x):
    dn = ("NCHW", "OIHW", "NCHW")
    y = jax.lax.conv_general_dilated(x, params["w1"], (1, 1), ((1, 1), (1, 1)),
                                     dimension_numbers=dn)
    y = jax.nn.relu(y + params["b1"][None, :, None, None])
    y = jax.lax.conv_general_dilated(y, params["w2"], (2, 2), ((1, 1), (1, 1)),
                                     dimension_numbers=dn)
    y = jax.nn.relu(y + params["b2"][None, :, None, None])
    pooled = y.mean(axis=(2, 3))
    return pooled @ params["w3"] + params["b3"]


# ------------------------------------ main -------------------------------------

if __name__ == "__main__":
    # TODO(synk): the original module dispatches `encoders[encoder]` from an
    # external registry; the fixed conv encoder above is instantiated instead.
    batch = 2
    x = jax.random.normal(jax.random.PRNGKey(0), (batch, CIN, H, W), jnp.float32)
    params = init_params(image_channels=CIN, hidden=HIDDEN, z_dim=Z_DIM)

    z = tilenet_forward(params, x)
    jax.block_until_ready(z)
    assert z.shape == (batch, Z_DIM)

    # loose tolerance: kernel feeds bf16 operands to the MXU (f32 accumulate)
    z_ref = reference_forward(params, x)
    np.testing.assert_allclose(np.asarray(z), np.asarray(z_ref),
                               atol=5e-2, rtol=5e-2)
    print("KERNEL_OK")
</pallas_src>

<mosaic_0001>
module attributes {stable_mosaic.version = 11 : i64} {
  func.func @_tilenet_kernel(%arg0: i32, %arg1: memref<288x72xbf16, #tpu.memory_space<vmem>>, %arg2: memref<72x32xbf16, #tpu.memory_space<vmem>>, %arg3: memref<1x32xf32, #tpu.memory_space<vmem>>, %arg4: memref<9x32x128xbf16, #tpu.memory_space<vmem>>, %arg5: memref<1x128xf32, #tpu.memory_space<vmem>>, %arg6: memref<128x128xbf16, #tpu.memory_space<vmem>>, %arg7: memref<1x128xf32, #tpu.memory_space<vmem>>, %arg8: memref<288x1xf32, #tpu.memory_space<vmem>>, %arg9: memref<288x1xf32, #tpu.memory_space<vmem>>, %arg10: memref<1x1x128xf32, #tpu.memory_space<vmem>>, %arg11: memref<352x32xbf16, #tpu.memory_space<vmem>>) attributes {dimension_semantics = [#tpu.dimension_semantics<parallel>], iteration_bounds = array<i64: 2>, scalar_prefetch = 0 : i64, scratch_operands = 1 : i64, tpu.core_type = #tpu.core_type<tc>, window_params = [{transform_indices = @transform_0, window_bounds = array<i64: 288, 72>}, {pipeline_mode = #tpu.pipeline_mode<synchronous>, transform_indices = @transform_1, window_bounds = array<i64: 72, 32>}, {pipeline_mode = #tpu.pipeline_mode<synchronous>, transform_indices = @transform_2, window_bounds = array<i64: 1, 32>}, {pipeline_mode = #tpu.pipeline_mode<synchronous>, transform_indices = @transform_3, window_bounds = array<i64: 9, 32, 128>}, {pipeline_mode = #tpu.pipeline_mode<synchronous>, transform_indices = @transform_4, window_bounds = array<i64: 1, 128>}, {pipeline_mode = #tpu.pipeline_mode<synchronous>, transform_indices = @transform_5, window_bounds = array<i64: 128, 128>}, {pipeline_mode = #tpu.pipeline_mode<synchronous>, transform_indices = @transform_6, window_bounds = array<i64: 1, 128>}, {pipeline_mode = #tpu.pipeline_mode<synchronous>, transform_indices = @transform_7, window_bounds = array<i64: 288, 1>}, {pipeline_mode = #tpu.pipeline_mode<synchronous>, transform_indices = @transform_8, window_bounds = array<i64: 288, 1>}, {transform_indices = @transform_9, window_bounds = array<i64: 1, 1, 128>}]} {
    %cst = arith.constant 0.000000e+00 : bf16
    %0 = vector.broadcast %cst : bf16 to vector<32x32xbf16>
    %c0 = arith.constant 0 : index
    %c0_0 = arith.constant 0 : index
    %1 = vector.load %arg11[%c0, %c0_0] : memref<352x32xbf16, #tpu.memory_space<vmem>>, vector<32x32xbf16>
    tpu.vector_store %arg11[%c0, %c0_0], %0 {strides = array<i32>} : memref<352x32xbf16, #tpu.memory_space<vmem>>, vector<32x32xbf16>,
    %c320 = arith.constant 320 : index
    %c0_1 = arith.constant 0 : index
    %2 = vector.load %arg11[%c320, %c0_1] : memref<352x32xbf16, #tpu.memory_space<vmem>>, vector<32x32xbf16>
    tpu.vector_store %arg11[%c320, %c0_1], %0 {strides = array<i32>} : memref<352x32xbf16, #tpu.memory_space<vmem>>, vector<32x32xbf16>,
    %c0_2 = arith.constant 0 : index
    %c0_3 = arith.constant 0 : index
    %3 = vector.load %arg1[%c0_2, %c0_3] : memref<288x72xbf16, #tpu.memory_space<vmem>>, vector<96x72xbf16>
    %c0_4 = arith.constant 0 : index
    %c0_5 = arith.constant 0 : index
    %4 = vector.load %arg2[%c0_4, %c0_5] : memref<72x32xbf16, #tpu.memory_space<vmem>>, vector<72x32xbf16>
    %cst_6 = arith.constant dense<0.000000e+00> : vector<96x32xf32>
    %5 = tpu.matmul %3, %4, %cst_6 {dimension_numbers = #tpu.dot_dimension_numbers<[1], [0], [0], [1], [0, 0, 1, 1], [], []>} : vector<96x72xbf16>, vector<72x32xbf16>, vector<96x32xf32> -> vector<96x32xf32>
    %c0_7 = arith.constant 0 : index
    %c0_8 = arith.constant 0 : index
    %6 = vector.load %arg3[%c0_7, %c0_8] : memref<1x32xf32, #tpu.memory_space<vmem>>, vector<1x32xf32>
    %7 = vector.broadcast %6 : vector<1x32xf32> to vector<96x32xf32>
    %8 = arith.addf %5, %7 : vector<96x32xf32>
    %cst_9 = arith.constant 0.000000e+00 : f32
    %9 = vector.broadcast %cst_9 : f32 to vector<96x32xf32>
    %10 = arith.maximumf %8, %9 : vector<96x32xf32>
    %c0_10 = arith.constant 0 : index
    %c0_11 = arith.constant 0 : index
    %11 = vector.load %arg8[%c0_10, %c0_11] : memref<288x1xf32, #tpu.memory_space<vmem>>, vector<96x1xf32>
    %12 = vector.broadcast %11 : vector<96x1xf32> to vector<96x32xf32>
    %13 = arith.mulf %10, %12 : vector<96x32xf32>
    %14 = arith.truncf %13 : vector<96x32xf32> to vector<96x32xbf16>
    %c32 = arith.constant 32 : index
    %c0_12 = arith.constant 0 : index
    %15 = vector.load %arg11[%c32, %c0_12] : memref<352x32xbf16, #tpu.memory_space<vmem>>, vector<96x32xbf16>
    tpu.vector_store %arg11[%c32, %c0_12], %14 {strides = array<i32>} : memref<352x32xbf16, #tpu.memory_space<vmem>>, vector<96x32xbf16>,
    %c96 = arith.constant 96 : index
    %c0_13 = arith.constant 0 : index
    %16 = vector.load %arg1[%c96, %c0_13] : memref<288x72xbf16, #tpu.memory_space<vmem>>, vector<96x72xbf16>
    %c0_14 = arith.constant 0 : index
    %c0_15 = arith.constant 0 : index
    %17 = vector.load %arg2[%c0_14, %c0_15] : memref<72x32xbf16, #tpu.memory_space<vmem>>, vector<72x32xbf16>
    %cst_16 = arith.constant dense<0.000000e+00> : vector<96x32xf32>
    %18 = tpu.matmul %16, %17, %cst_16 {dimension_numbers = #tpu.dot_dimension_numbers<[1], [0], [0], [1], [0, 0, 1, 1], [], []>} : vector<96x72xbf16>, vector<72x32xbf16>, vector<96x32xf32> -> vector<96x32xf32>
    %c0_17 = arith.constant 0 : index
    %c0_18 = arith.constant 0 : index
    %19 = vector.load %arg3[%c0_17, %c0_18] : memref<1x32xf32, #tpu.memory_space<vmem>>, vector<1x32xf32>
    %20 = vector.broadcast %19 : vector<1x32xf32> to vector<96x32xf32>
    %21 = arith.addf %18, %20 : vector<96x32xf32>
    %cst_19 = arith.constant 0.000000e+00 : f32
    %22 = vector.broadcast %cst_19 : f32 to vector<96x32xf32>
    %23 = arith.maximumf %21, %22 : vector<96x32xf32>
    %c96_20 = arith.constant 96 : index
    %c0_21 = arith.constant 0 : index
    %24 = vector.load %arg8[%c96_20, %c0_21] : memref<288x1xf32, #tpu.memory_space<vmem>>, vector<96x1xf32>
    %25 = vector.broadcast %24 : vector<96x1xf32> to vector<96x32xf32>
    %26 = arith.mulf %23, %25 : vector<96x32xf32>
    %27 = arith.truncf %26 : vector<96x32xf32> to vector<96x32xbf16>
    %c128 = arith.constant 128 : index
    %c0_22 = arith.constant 0 : index
    %28 = vector.load %arg11[%c128, %c0_22] : memref<352x32xbf16, #tpu.memory_space<vmem>>, vector<96x32xbf16>
    tpu.vector_store %arg11[%c128, %c0_22], %27 {strides = array<i32>} : memref<352x32xbf16, #tpu.memory_space<vmem>>, vector<96x32xbf16>,
    %c192 = arith.constant 192 : index
    %c0_23 = arith.constant 0 : index
    %29 = vector.load %arg1[%c192, %c0_23] : memref<288x72xbf16, #tpu.memory_space<vmem>>, vector<96x72xbf16>
    %c0_24 = arith.constant 0 : index
    %c0_25 = arith.constant 0 : index
    %30 = vector.load %arg2[%c0_24, %c0_25] : memref<72x32xbf16, #tpu.memory_space<vmem>>, vector<72x32xbf16>
    %cst_26 = arith.constant dense<0.000000e+00> : vector<96x32xf32>
    %31 = tpu.matmul %29, %30, %cst_26 {dimension_numbers = #tpu.dot_dimension_numbers<[1], [0], [0], [1], [0, 0, 1, 1], [], []>} : vector<96x72xbf16>, vector<72x32xbf16>, vector<96x32xf32> -> vector<96x32xf32>
    %c0_27 = arith.constant 0 : index
    %c0_28 = arith.constant 0 : index
    %32 = vector.load %arg3[%c0_27, %c0_28] : memref<1x32xf32, #tpu.memory_space<vmem>>, vector<1x32xf32>
    %33 = vector.broadcast %32 : vector<1x32xf32> to vector<96x32xf32>
    %34 = arith.addf %31, %33 : vector<96x32xf32>
    %cst_29 = arith.constant 0.000000e+00 : f32
    %35 = vector.broadcast %cst_29 : f32 to vector<96x32xf32>
    %36 = arith.maximumf %34, %35 : vector<96x32xf32>
    %c192_30 = arith.constant 192 : index
    %c0_31 = arith.constant 0 : index
    %37 = vector.load %arg8[%c192_30, %c0_31] : memref<288x1xf32, #tpu.memory_space<vmem>>, vector<96x1xf32>
    %38 = vector.broadcast %37 : vector<96x1xf32> to vector<96x32xf32>
    %39 = arith.mulf %36, %38 : vector<96x32xf32>
    %40 = arith.truncf %39 : vector<96x32xf32> to vector<96x32xbf16>
    %c224 = arith.constant 224 : index
    %c0_32 = arith.constant 0 : index
    %41 = vector.load %arg11[%c224, %c0_32] : memref<352x32xbf16, #tpu.memory_space<vmem>>, vector<96x32xbf16>
    tpu.vector_store %arg11[%c224, %c0_32], %40 {strides = array<i32>} : memref<352x32xbf16, #tpu.memory_space<vmem>>, vector<96x32xbf16>,
    %cst_33 = arith.constant 0.000000e+00 : f32
    %42 = vector.broadcast %cst_33 : f32 to vector<1x128xf32>
    %c13 = arith.constant 13 : index
    %c0_34 = arith.constant 0 : index
    %43 = vector.load %arg11[%c13, %c0_34] : memref<352x32xbf16, #tpu.memory_space<vmem>>, vector<96x32xbf16>
    %c0_35 = arith.constant 0 : index
    %c0_36 = arith.constant 0 : index
    %c0_37 = arith.constant 0 : index
    %44 = vector.load %arg4[%c0_35, %c0_36, %c0_37] : memref<9x32x128xbf16, #tpu.memory_space<vmem>>, vector<1x32x128xbf16>
    %45 = vector.shape_cast %44 : vector<1x32x128xbf16> to vector<32x128xbf16>
    %cst_38 = arith.constant dense<0.000000e+00> : vector<96x128xf32>
    %46 = tpu.matmul %43, %45, %cst_38 {dimension_numbers = #tpu.dot_dimension_numbers<[1], [0], [0], [1], [0, 0, 1, 1], [], []>} : vector<96x32xbf16>, vector<32x128xbf16>, vector<96x128xf32> -> vector<96x128xf32>
    %c14 = arith.constant 14 : index
    %c0_39 = arith.constant 0 : index
    %47 = vector.load %arg11[%c14, %c0_39] : memref<352x32xbf16, #tpu.memory_space<vmem>>, vector<96x32xbf16>
    %c1 = arith.constant 1 : index
    %c0_40 = arith.constant 0 : index
    %c0_41 = arith.constant 0 : index
    %48 = vector.load %arg4[%c1, %c0_40, %c0_41] : memref<9x32x128xbf16, #tpu.memory_space<vmem>>, vector<1x32x128xbf16>
    %49 = vector.shape_cast %48 : vector<1x32x128xbf16> to vector<32x128xbf16>
    %cst_42 = arith.constant dense<0.000000e+00> : vector<96x128xf32>
    %50 = tpu.matmul %47, %49, %cst_42 {dimension_numbers = #tpu.dot_dimension_numbers<[1], [0], [0], [1], [0, 0, 1, 1], [], []>} : vector<96x32xbf16>, vector<32x128xbf16>, vector<96x128xf32> -> vector<96x128xf32>
    %51 = arith.addf %46, %50 : vector<96x128xf32>
    %c15 = arith.constant 15 : index
    %c0_43 = arith.constant 0 : index
    %52 = vector.load %arg11[%c15, %c0_43] : memref<352x32xbf16, #tpu.memory_space<vmem>>, vector<96x32xbf16>
    %c2 = arith.constant 2 : index
    %c0_44 = arith.constant 0 : index
    %c0_45 = arith.constant 0 : index
    %53 = vector.load %arg4[%c2, %c0_44, %c0_45] : memref<9x32x128xbf16, #tpu.memory_space<vmem>>, vector<1x32x128xbf16>
    %54 = vector.shape_cast %53 : vector<1x32x128xbf16> to vector<32x128xbf16>
    %cst_46 = arith.constant dense<0.000000e+00> : vector<96x128xf32>
    %55 = tpu.matmul %52, %54, %cst_46 {dimension_numbers = #tpu.dot_dimension_numbers<[1], [0], [0], [1], [0, 0, 1, 1], [], []>} : vector<96x32xbf16>, vector<32x128xbf16>, vector<96x128xf32> -> vector<96x128xf32>
    %56 = arith.addf %51, %55 : vector<96x128xf32>
    %c31 = arith.constant 31 : index
    %c0_47 = arith.constant 0 : index
    %57 = vector.load %arg11[%c31, %c0_47] : memref<352x32xbf16, #tpu.memory_space<vmem>>, vector<96x32xbf16>
    %c3 = arith.constant 3 : index
    %c0_48 = arith.constant 0 : index
    %c0_49 = arith.constant 0 : index
    %58 = vector.load %arg4[%c3, %c0_48, %c0_49] : memref<9x32x128xbf16, #tpu.memory_space<vmem>>, vector<1x32x128xbf16>
    %59 = vector.shape_cast %58 : vector<1x32x128xbf16> to vector<32x128xbf16>
    %cst_50 = arith.constant dense<0.000000e+00> : vector<96x128xf32>
    %60 = tpu.matmul %57, %59, %cst_50 {dimension_numbers = #tpu.dot_dimension_numbers<[1], [0], [0], [1], [0, 0, 1, 1], [], []>} : vector<96x32xbf16>, vector<32x128xbf16>, vector<96x128xf32> -> vector<96x128xf32>
    %61 = arith.addf %56, %60 : vector<96x128xf32>
    %c32_51 = arith.constant 32 : index
    %c0_52 = arith.constant 0 : index
    %62 = vector.load %arg11[%c32_51, %c0_52] : memref<352x32xbf16, #tpu.memory_space<vmem>>, vector<96x32xbf16>
    %c4 = arith.constant 4 : index
    %c0_53 = arith.constant 0 : index
    %c0_54 = arith.constant 0 : index
    %63 = vector.load %arg4[%c4, %c0_53, %c0_54] : memref<9x32x128xbf16, #tpu.memory_space<vmem>>, vector<1x32x128xbf16>
    %64 = vector.shape_cast %63 : vector<1x32x128xbf16> to vector<32x128xbf16>
    %cst_55 = arith.constant dense<0.000000e+00> : vector<96x128xf32>
    %65 = tpu.matmul %62, %64, %cst_55 {dimension_numbers = #tpu.dot_dimension_numbers<[1], [0], [0], [1], [0, 0, 1, 1], [], []>} : vector<96x32xbf16>, vector<32x128xbf16>, vector<96x128xf32> -> vector<96x128xf32>
    %66 = arith.addf %61, %65 : vector<96x128xf32>
    %c33 = arith.constant 33 : index
    %c0_56 = arith.constant 0 : index
    %67 = vector.load %arg11[%c33, %c0_56] : memref<352x32xbf16, #tpu.memory_space<vmem>>, vector<96x32xbf16>
    %c5 = arith.constant 5 : index
    %c0_57 = arith.constant 0 : index
    %c0_58 = arith.constant 0 : index
    %68 = vector.load %arg4[%c5, %c0_57, %c0_58] : memref<9x32x128xbf16, #tpu.memory_space<vmem>>, vector<1x32x128xbf16>
    %69 = vector.shape_cast %68 : vector<1x32x128xbf16> to vector<32x128xbf16>
    %cst_59 = arith.constant dense<0.000000e+00> : vector<96x128xf32>
    %70 = tpu.matmul %67, %69, %cst_59 {dimension_numbers = #tpu.dot_dimension_numbers<[1], [0], [0], [1], [0, 0, 1, 1], [], []>} : vector<96x32xbf16>, vector<32x128xbf16>, vector<96x128xf32> -> vector<96x128xf32>
    %71 = arith.addf %66, %70 : vector<96x128xf32>
    %c49 = arith.constant 49 : index
    %c0_60 = arith.constant 0 : index
    %72 = vector.load %arg11[%c49, %c0_60] : memref<352x32xbf16, #tpu.memory_space<vmem>>, vector<96x32xbf16>
    %c6 = arith.constant 6 : index
    %c0_61 = arith.constant 0 : index
    %c0_62 = arith.constant 0 : index
    %73 = vector.load %arg4[%c6, %c0_61, %c0_62] : memref<9x32x128xbf16, #tpu.memory_space<vmem>>, vector<1x32x128xbf16>
    %74 = vector.shape_cast %73 : vector<1x32x128xbf16> to vector<32x128xbf16>
    %cst_63 = arith.constant dense<0.000000e+00> : vector<96x128xf32>
    %75 = tpu.matmul %72, %74, %cst_63 {dimension_numbers = #tpu.dot_dimension_numbers<[1], [0], [0], [1], [0, 0, 1, 1], [], []>} : vector<96x32xbf16>, vector<32x128xbf16>, vector<96x128xf32> -> vector<96x128xf32>
    %76 = arith.addf %71, %75 : vector<96x128xf32>
    %c50 = arith.constant 50 : index
    %c0_64 = arith.constant 0 : index
    %77 = vector.load %arg11[%c50, %c0_64] : memref<352x32xbf16, #tpu.memory_space<vmem>>, vector<96x32xbf16>
    %c7 = arith.constant 7 : index
    %c0_65 = arith.constant 0 : index
    %c0_66 = arith.constant 0 : index
    %78 = vector.load %arg4[%c7, %c0_65, %c0_66] : memref<9x32x128xbf16, #tpu.memory_space<vmem>>, vector<1x32x128xbf16>
    %79 = vector.shape_cast %78 : vector<1x32x128xbf16> to vector<32x128xbf16>
    %cst_67 = arith.constant dense<0.000000e+00> : vector<96x128xf32>
    %80 = tpu.matmul %77, %79, %cst_67 {dimension_numbers = #tpu.dot_dimension_numbers<[1], [0], [0], [1], [0, 0, 1, 1], [], []>} : vector<96x32xbf16>, vector<32x128xbf16>, vector<96x128xf32> -> vector<96x128xf32>
    %81 = arith.addf %76, %80 : vector<96x128xf32>
    %c51 = arith.constant 51 : index
    %c0_68 = arith.constant 0 : index
    %82 = vector.load %arg11[%c51, %c0_68] : memref<352x32xbf16, #tpu.memory_space<vmem>>, vector<96x32xbf16>
    %c8 = arith.constant 8 : index
    %c0_69 = arith.constant 0 : index
    %c0_70 = arith.constant 0 : index
    %83 = vector.load %arg4[%c8, %c0_69, %c0_70] : memref<9x32x128xbf16, #tpu.memory_space<vmem>>, vector<1x32x128xbf16>
    %84 = vector.shape_cast %83 : vector<1x32x128xbf16> to vector<32x128xbf16>
    %cst_71 = arith.constant dense<0.000000e+00> : vector<96x128xf32>
    %85 = tpu.matmul %82, %84, %cst_71 {dimension_numbers = #tpu.dot_dimension_numbers<[1], [0], [0], [1], [0, 0, 1, 1], [], []>} : vector<96x32xbf16>, vector<32x128xbf16>, vector<96x128xf32> -> vector<96x128xf32>
    %86 = arith.addf %81, %85 : vector<96x128xf32>
    %c0_72 = arith.constant 0 : index
    %c0_73 = arith.constant 0 : index
    %87 = vector.load %arg5[%c0_72, %c0_73] : memref<1x128xf32, #tpu.memory_space<vmem>>, vector<1x128xf32>
    %88 = vector.broadcast %87 : vector<1x128xf32> to vector<96x128xf32>
    %89 = arith.addf %86, %88 : vector<96x128xf32>
    %cst_74 = arith.constant 0.000000e+00 : f32
    %90 = vector.broadcast %cst_74 : f32 to vector<96x128xf32>
    %91 = arith.maximumf %89, %90 : vector<96x128xf32>
    %c0_75 = arith.constant 0 : index
    %c0_76 = arith.constant 0 : index
    %92 = vector.load %arg9[%c0_75, %c0_76] : memref<288x1xf32, #tpu.memory_space<vmem>>, vector<96x1xf32>
    %93 = vector.broadcast %92 : vector<96x1xf32> to vector<96x128xf32>
    %94 = arith.mulf %91, %93 : vector<96x128xf32>
    %cst_77 = arith.constant dense<0.000000e+00> : vector<128xf32>
    %95 = vector.multi_reduction <add>, %94, %cst_77 [0] : vector<96x128xf32> to vector<128xf32>
    %96 = vector.shape_cast %95 : vector<128xf32> to vector<1x128xf32>
    %97 = arith.addf %42, %96 : vector<1x128xf32>
    %c109 = arith.constant 109 : index
    %c0_78 = arith.constant 0 : index
    %98 = vector.load %arg11[%c109, %c0_78] : memref<352x32xbf16, #tpu.memory_space<vmem>>, vector<96x32xbf16>
    %c0_79 = arith.constant 0 : index
    %c0_80 = arith.constant 0 : index
    %c0_81 = arith.constant 0 : index
    %99 = vector.load %arg4[%c0_79, %c0_80, %c0_81] : memref<9x32x128xbf16, #tpu.memory_space<vmem>>, vector<1x32x128xbf16>
    %100 = vector.shape_cast %99 : vector<1x32x128xbf16> to vector<32x128xbf16>
    %cst_82 = arith.constant dense<0.000000e+00> : vector<96x128xf32>
    %101 = tpu.matmul %98, %100, %cst_82 {dimension_numbers = #tpu.dot_dimension_numbers<[1], [0], [0], [1], [0, 0, 1, 1], [], []>} : vector<96x32xbf16>, vector<32x128xbf16>, vector<96x128xf32> -> vector<96x128xf32>
    %c110 = arith.constant 110 : index
    %c0_83 = arith.constant 0 : index
    %102 = vector.load %arg11[%c110, %c0_83] : memref<352x32xbf16, #tpu.memory_space<vmem>>, vector<96x32xbf16>
    %c1_84 = arith.constant 1 : index
    %c0_85 = arith.constant 0 : index
    %c0_86 = arith.constant 0 : index
    %103 = vector.load %arg4[%c1_84, %c0_85, %c0_86] : memref<9x32x128xbf16, #tpu.memory_space<vmem>>, vector<1x32x128xbf16>
    %104 = vector.shape_cast %103 : vector<1x32x128xbf16> to vector<32x128xbf16>
    %cst_87 = arith.constant dense<0.000000e+00> : vector<96x128xf32>
    %105 = tpu.matmul %102, %104, %cst_87 {dimension_numbers = #tpu.dot_dimension_numbers<[1], [0], [0], [1], [0, 0, 1, 1], [], []>} : vector<96x32xbf16>, vector<32x128xbf16>, vector<96x128xf32> -> vector<96x128xf32>
    %106 = arith.addf %101, %105 : vector<96x128xf32>
    %c111 = arith.constant 111 : index
    %c0_88 = arith.constant 0 : index
    %107 = vector.load %arg11[%c111, %c0_88] : memref<352x32xbf16, #tpu.memory_space<vmem>>, vector<96x32xbf16>
    %c2_89 = arith.constant 2 : index
    %c0_90 = arith.constant 0 : index
    %c0_91 = arith.constant 0 : index
    %108 = vector.load %arg4[%c2_89, %c0_90, %c0_91] : memref<9x32x128xbf16, #tpu.memory_space<vmem>>, vector<1x32x128xbf16>
    %109 = vector.shape_cast %108 : vector<1x32x128xbf16> to vector<32x128xbf16>
    %cst_92 = arith.constant dense<0.000000e+00> : vector<96x128xf32>
    %110 = tpu.matmul %107, %109, %cst_92 {dimension_numbers = #tpu.dot_dimension_numbers<[1], [0], [0], [1], [0, 0, 1, 1], [], []>} : vector<96x32xbf16>, vector<32x128xbf16>, vector<96x128xf32> -> vector<96x128xf32>
    %111 = arith.addf %106, %110 : vector<96x128xf32>
    %c127 = arith.constant 127 : index
    %c0_93 = arith.constant 0 : index
    %112 = vector.load %arg11[%c127, %c0_93] : memref<352x32xbf16, #tpu.memory_space<vmem>>, vector<96x32xbf16>
    %c3_94 = arith.constant 3 : index
    %c0_95 = arith.constant 0 : index
    %c0_96 = arith.constant 0 : index
    %113 = vector.load %arg4[%c3_94, %c0_95, %c0_96] : memref<9x32x128xbf16, #tpu.memory_space<vmem>>, vector<1x32x128xbf16>
    %114 = vector.shape_cast %113 : vector<1x32x128xbf16> to vector<32x128xbf16>
    %cst_97 = arith.constant dense<0.000000e+00> : vector<96x128xf32>
    %115 = tpu.matmul %112, %114, %cst_97 {dimension_numbers = #tpu.dot_dimension_numbers<[1], [0], [0], [1], [0, 0, 1, 1], [], []>} : vector<96x32xbf16>, vector<32x128xbf16>, vector<96x128xf32> -> vector<96x128xf32>
    %116 = arith.addf %111, %115 : vector<96x128xf32>
    %c128_98 = arith.constant 128 : index
    %c0_99 = arith.constant 0 : index
    %117 = vector.load %arg11[%c128_98, %c0_99] : memref<352x32xbf16, #tpu.memory_space<vmem>>, vector<96x32xbf16>
    %c4_100 = arith.constant 4 : index
    %c0_101 = arith.constant 0 : index
    %c0_102 = arith.constant 0 : index
    %118 = vector.load %arg4[%c4_100, %c0_101, %c0_102] : memref<9x32x128xbf16, #tpu.memory_space<vmem>>, vector<1x32x128xbf16>
    %119 = vector.shape_cast %118 : vector<1x32x128xbf16> to vector<32x128xbf16>
    %cst_103 = arith.constant dense<0.000000e+00> : vector<96x128xf32>
    %120 = tpu.matmul %117, %119, %cst_103 {dimension_numbers = #tpu.dot_dimension_numbers<[1], [0], [0], [1], [0, 0, 1, 1], [], []>} : vector<96x32xbf16>, vector<32x128xbf16>, vector<96x128xf32> -> vector<96x128xf32>
    %121 = arith.addf %116, %120 : vector<96x128xf32>
    %c129 = arith.constant 129 : index
    %c0_104 = arith.constant 0 : index
    %122 = vector.load %arg11[%c129, %c0_104] : memref<352x32xbf16, #tpu.memory_space<vmem>>, vector<96x32xbf16>
    %c5_105 = arith.constant 5 : index
    %c0_106 = arith.constant 0 : index
    %c0_107 = arith.constant 0 : index
    %123 = vector.load %arg4[%c5_105, %c0_106, %c0_107] : memref<9x32x128xbf16, #tpu.memory_space<vmem>>, vector<1x32x128xbf16>
    %124 = vector.shape_cast %123 : vector<1x32x128xbf16> to vector<32x128xbf16>
    %cst_108 = arith.constant dense<0.000000e+00> : vector<96x128xf32>
    %125 = tpu.matmul %122, %124, %cst_108 {dimension_numbers = #tpu.dot_dimension_numbers<[1], [0], [0], [1], [0, 0, 1, 1], [], []>} : vector<96x32xbf16>, vector<32x128xbf16>, vector<96x128xf32> -> vector<96x128xf32>
    %126 = arith.addf %121, %125 : vector<96x128xf32>
    %c145 = arith.constant 145 : index
    %c0_109 = arith.constant 0 : index
    %127 = vector.load %arg11[%c145, %c0_109] : memref<352x32xbf16, #tpu.memory_space<vmem>>, vector<96x32xbf16>
    %c6_110 = arith.constant 6 : index
    %c0_111 = arith.constant 0 : index
    %c0_112 = arith.constant 0 : index
    %128 = vector.load %arg4[%c6_110, %c0_111, %c0_112] : memref<9x32x128xbf16, #tpu.memory_space<vmem>>, vector<1x32x128xbf16>
    %129 = vector.shape_cast %128 : vector<1x32x128xbf16> to vector<32x128xbf16>
    %cst_113 = arith.constant dense<0.000000e+00> : vector<96x128xf32>
    %130 = tpu.matmul %127, %129, %cst_113 {dimension_numbers = #tpu.dot_dimension_numbers<[1], [0], [0], [1], [0, 0, 1, 1], [], []>} : vector<96x32xbf16>, vector<32x128xbf16>, vector<96x128xf32> -> vector<96x128xf32>
    %131 = arith.addf %126, %130 : vector<96x128xf32>
    %c146 = arith.constant 146 : index
    %c0_114 = arith.constant 0 : index
    %132 = vector.load %arg11[%c146, %c0_114] : memref<352x32xbf16, #tpu.memory_space<vmem>>, vector<96x32xbf16>
    %c7_115 = arith.constant 7 : index
    %c0_116 = arith.constant 0 : index
    %c0_117 = arith.constant 0 : index
    %133 = vector.load %arg4[%c7_115, %c0_116, %c0_117] : memref<9x32x128xbf16, #tpu.memory_space<vmem>>, vector<1x32x128xbf16>
    %134 = vector.shape_cast %133 : vector<1x32x128xbf16> to vector<32x128xbf16>
    %cst_118 = arith.constant dense<0.000000e+00> : vector<96x128xf32>
    %135 = tpu.matmul %132, %134, %cst_118 {dimension_numbers = #tpu.dot_dimension_numbers<[1], [0], [0], [1], [0, 0, 1, 1], [], []>} : vector<96x32xbf16>, vector<32x128xbf16>, vector<96x128xf32> -> vector<96x128xf32>
    %136 = arith.addf %131, %135 : vector<96x128xf32>
    %c147 = arith.constant 147 : index
    %c0_119 = arith.constant 0 : index
    %137 = vector.load %arg11[%c147, %c0_119] : memref<352x32xbf16, #tpu.memory_space<vmem>>, vector<96x32xbf16>
    %c8_120 = arith.constant 8 : index
    %c0_121 = arith.constant 0 : index
    %c0_122 = arith.constant 0 : index
    %138 = vector.load %arg4[%c8_120, %c0_121, %c0_122] : memref<9x32x128xbf16, #tpu.memory_space<vmem>>, vector<1x32x128xbf16>
    %139 = vector.shape_cast %138 : vector<1x32x128xbf16> to vector<32x128xbf16>
    %cst_123 = arith.constant dense<0.000000e+00> : vector<96x128xf32>
    %140 = tpu.matmul %137, %139, %cst_123 {dimension_numbers = #tpu.dot_dimension_numbers<[1], [0], [0], [1], [0, 0, 1, 1], [], []>} : vector<96x32xbf16>, vector<32x128xbf16>, vector<96x128xf32> -> vector<96x128xf32>
    %141 = arith.addf %136, %140 : vector<96x128xf32>
    %c0_124 = arith.constant 0 : index
    %c0_125 = arith.constant 0 : index
    %142 = vector.load %arg5[%c0_124, %c0_125] : memref<1x128xf32, #tpu.memory_space<vmem>>, vector<1x128xf32>
    %143 = vector.broadcast %142 : vector<1x128xf32> to vector<96x128xf32>
    %144 = arith.addf %141, %143 : vector<96x128xf32>
    %cst_126 = arith.constant 0.000000e+00 : f32
    %145 = vector.broadcast %cst_126 : f32 to vector<96x128xf32>
    %146 = arith.maximumf %144, %145 : vector<96x128xf32>
    %c96_127 = arith.constant 96 : index
    %c0_128 = arith.constant 0 : index
    %147 = vector.load %arg9[%c96_127, %c0_128] : memref<288x1xf32, #tpu.memory_space<vmem>>, vector<96x1xf32>
    %148 = vector.broadcast %147 : vector<96x1xf32> to vector<96x128xf32>
    %149 = arith.mulf %146, %148 : vector<96x128xf32>
    %cst_129 = arith.constant dense<0.000000e+00> : vector<128xf32>
    %150 = vector.multi_reduction <add>, %149, %cst_129 [0] : vector<96x128xf32> to vector<128xf32>
    %151 = vector.shape_cast %150 : vector<128xf32> to vector<1x128xf32>
    %152 = arith.addf %97, %151 : vector<1x128xf32>
    %c205 = arith.constant 205 : index
    %c0_130 = arith.constant 0 : index
    %153 = vector.load %arg11[%c205, %c0_130] : memref<352x32xbf16, #tpu.memory_space<vmem>>, vector<96x32xbf16>
    %c0_131 = arith.constant 0 : index
    %c0_132 = arith.constant 0 : index
    %c0_133 = arith.constant 0 : index
    %154 = vector.load %arg4[%c0_131, %c0_132, %c0_133] : memref<9x32x128xbf16, #tpu.memory_space<vmem>>, vector<1x32x128xbf16>
    %155 = vector.shape_cast %154 : vector<1x32x128xbf16> to vector<32x128xbf16>
    %cst_134 = arith.constant dense<0.000000e+00> : vector<96x128xf32>
    %156 = tpu.matmul %153, %155, %cst_134 {dimension_numbers = #tpu.dot_dimension_numbers<[1], [0], [0], [1], [0, 0, 1, 1], [], []>} : vector<96x32xbf16>, vector<32x128xbf16>, vector<96x128xf32> -> vector<96x128xf32>
    %c206 = arith.constant 206 : index
    %c0_135 = arith.constant 0 : index
    %157 = vector.load %arg11[%c206, %c0_135] : memref<352x32xbf16, #tpu.memory_space<vmem>>, vector<96x32xbf16>
    %c1_136 = arith.constant 1 : index
    %c0_137 = arith.constant 0 : index
    %c0_138 = arith.constant 0 : index
    %158 = vector.load %arg4[%c1_136, %c0_137, %c0_138] : memref<9x32x128xbf16, #tpu.memory_space<vmem>>, vector<1x32x128xbf16>
    %159 = vector.shape_cast %158 : vector<1x32x128xbf16> to vector<32x128xbf16>
    %cst_139 = arith.constant dense<0.000000e+00> : vector<96x128xf32>
    %160 = tpu.matmul %157, %159, %cst_139 {dimension_numbers = #tpu.dot_dimension_numbers<[1], [0], [0], [1], [0, 0, 1, 1], [], []>} : vector<96x32xbf16>, vector<32x128xbf16>, vector<96x128xf32> -> vector<96x128xf32>
    %161 = arith.addf %156, %160 : vector<96x128xf32>
    %c207 = arith.constant 207 : index
    %c0_140 = arith.constant 0 : index
    %162 = vector.load %arg11[%c207, %c0_140] : memref<352x32xbf16, #tpu.memory_space<vmem>>, vector<96x32xbf16>
    %c2_141 = arith.constant 2 : index
    %c0_142 = arith.constant 0 : index
    %c0_143 = arith.constant 0 : index
    %163 = vector.load %arg4[%c2_141, %c0_142, %c0_143] : memref<9x32x128xbf16, #tpu.memory_space<vmem>>, vector<1x32x128xbf16>
    %164 = vector.shape_cast %163 : vector<1x32x128xbf16> to vector<32x128xbf16>
    %cst_144 = arith.constant dense<0.000000e+00> : vector<96x128xf32>
    %165 = tpu.matmul %162, %164, %cst_144 {dimension_numbers = #tpu.dot_dimension_numbers<[1], [0], [0], [1], [0, 0, 1, 1], [], []>} : vector<96x32xbf16>, vector<32x128xbf16>, vector<96x128xf32> -> vector<96x128xf32>
    %166 = arith.addf %161, %165 : vector<96x128xf32>
    %c223 = arith.constant 223 : index
    %c0_145 = arith.constant 0 : index
    %167 = vector.load %arg11[%c223, %c0_145] : memref<352x32xbf16, #tpu.memory_space<vmem>>, vector<96x32xbf16>
    %c3_146 = arith.constant 3 : index
    %c0_147 = arith.constant 0 : index
    %c0_148 = arith.constant 0 : index
    %168 = vector.load %arg4[%c3_146, %c0_147, %c0_148] : memref<9x32x128xbf16, #tpu.memory_space<vmem>>, vector<1x32x128xbf16>
    %169 = vector.shape_cast %168 : vector<1x32x128xbf16> to vector<32x128xbf16>
    %cst_149 = arith.constant dense<0.000000e+00> : vector<96x128xf32>
    %170 = tpu.matmul %167, %169, %cst_149 {dimension_numbers = #tpu.dot_dimension_numbers<[1], [0], [0], [1], [0, 0, 1, 1], [], []>} : vector<96x32xbf16>, vector<32x128xbf16>, vector<96x128xf32> -> vector<96x128xf32>
    %171 = arith.addf %166, %170 : vector<96x128xf32>
    %c224_150 = arith.constant 224 : index
    %c0_151 = arith.constant 0 : index
    %172 = vector.load %arg11[%c224_150, %c0_151] : memref<352x32xbf16, #tpu.memory_space<vmem>>, vector<96x32xbf16>
    %c4_152 = arith.constant 4 : index
    %c0_153 = arith.constant 0 : index
    %c0_154 = arith.constant 0 : index
    %173 = vector.load %arg4[%c4_152, %c0_153, %c0_154] : memref<9x32x128xbf16, #tpu.memory_space<vmem>>, vector<1x32x128xbf16>
    %174 = vector.shape_cast %173 : vector<1x32x128xbf16> to vector<32x128xbf16>
    %cst_155 = arith.constant dense<0.000000e+00> : vector<96x128xf32>
    %175 = tpu.matmul %172, %174, %cst_155 {dimension_numbers = #tpu.dot_dimension_numbers<[1], [0], [0], [1], [0, 0, 1, 1], [], []>} : vector<96x32xbf16>, vector<32x128xbf16>, vector<96x128xf32> -> vector<96x128xf32>
    %176 = arith.addf %171, %175 : vector<96x128xf32>
    %c225 = arith.constant 225 : index
    %c0_156 = arith.constant 0 : index
    %177 = vector.load %arg11[%c225, %c0_156] : memref<352x32xbf16, #tpu.memory_space<vmem>>, vector<96x32xbf16>
    %c5_157 = arith.constant 5 : index
    %c0_158 = arith.constant 0 : index
    %c0_159 = arith.constant 0 : index
    %178 = vector.load %arg4[%c5_157, %c0_158, %c0_159] : memref<9x32x128xbf16, #tpu.memory_space<vmem>>, vector<1x32x128xbf16>
    %179 = vector.shape_cast %178 : vector<1x32x128xbf16> to vector<32x128xbf16>
    %cst_160 = arith.constant dense<0.000000e+00> : vector<96x128xf32>
    %180 = tpu.matmul %177, %179, %cst_160 {dimension_numbers = #tpu.dot_dimension_numbers<[1], [0], [0], [1], [0, 0, 1, 1], [], []>} : vector<96x32xbf16>, vector<32x128xbf16>, vector<96x128xf32> -> vector<96x128xf32>
    %181 = arith.addf %176, %180 : vector<96x128xf32>
    %c241 = arith.constant 241 : index
    %c0_161 = arith.constant 0 : index
    %182 = vector.load %arg11[%c241, %c0_161] : memref<352x32xbf16, #tpu.memory_space<vmem>>, vector<96x32xbf16>
    %c6_162 = arith.constant 6 : index
    %c0_163 = arith.constant 0 : index
    %c0_164 = arith.constant 0 : index
    %183 = vector.load %arg4[%c6_162, %c0_163, %c0_164] : memref<9x32x128xbf16, #tpu.memory_space<vmem>>, vector<1x32x128xbf16>
    %184 = vector.shape_cast %183 : vector<1x32x128xbf16> to vector<32x128xbf16>
    %cst_165 = arith.constant dense<0.000000e+00> : vector<96x128xf32>
    %185 = tpu.matmul %182, %184, %cst_165 {dimension_numbers = #tpu.dot_dimension_numbers<[1], [0], [0], [1], [0, 0, 1, 1], [], []>} : vector<96x32xbf16>, vector<32x128xbf16>, vector<96x128xf32> -> vector<96x128xf32>
    %186 = arith.addf %181, %185 : vector<96x128xf32>
    %c242 = arith.constant 242 : index
    %c0_166 = arith.constant 0 : index
    %187 = vector.load %arg11[%c242, %c0_166] : memref<352x32xbf16, #tpu.memory_space<vmem>>, vector<96x32xbf16>
    %c7_167 = arith.constant 7 : index
    %c0_168 = arith.constant 0 : index
    %c0_169 = arith.constant 0 : index
    %188 = vector.load %arg4[%c7_167, %c0_168, %c0_169] : memref<9x32x128xbf16, #tpu.memory_space<vmem>>, vector<1x32x128xbf16>
    %189 = vector.shape_cast %188 : vector<1x32x128xbf16> to vector<32x128xbf16>
    %cst_170 = arith.constant dense<0.000000e+00> : vector<96x128xf32>
    %190 = tpu.matmul %187, %189, %cst_170 {dimension_numbers = #tpu.dot_dimension_numbers<[1], [0], [0], [1], [0, 0, 1, 1], [], []>} : vector<96x32xbf16>, vector<32x128xbf16>, vector<96x128xf32> -> vector<96x128xf32>
    %191 = arith.addf %186, %190 : vector<96x128xf32>
    %c243 = arith.constant 243 : index
    %c0_171 = arith.constant 0 : index
    %192 = vector.load %arg11[%c243, %c0_171] : memref<352x32xbf16, #tpu.memory_space<vmem>>, vector<96x32xbf16>
    %c8_172 = arith.constant 8 : index
    %c0_173 = arith.constant 0 : index
    %c0_174 = arith.constant 0 : index
    %193 = vector.load %arg4[%c8_172, %c0_173, %c0_174] : memref<9x32x128xbf16, #tpu.memory_space<vmem>>, vector<1x32x128xbf16>
    %194 = vector.shape_cast %193 : vector<1x32x128xbf16> to vector<32x128xbf16>
    %cst_175 = arith.constant dense<0.000000e+00> : vector<96x128xf32>
    %195 = tpu.matmul %192, %194, %cst_175 {dimension_numbers = #tpu.dot_dimension_numbers<[1], [0], [0], [1], [0, 0, 1, 1], [], []>} : vector<96x32xbf16>, vector<32x128xbf16>, vector<96x128xf32> -> vector<96x128xf32>
    %196 = arith.addf %191, %195 : vector<96x128xf32>
    %c0_176 = arith.constant 0 : index
    %c0_177 = arith.constant 0 : index
    %197 = vector.load %arg5[%c0_176, %c0_177] : memref<1x128xf32, #tpu.memory_space<vmem>>, vector<1x128xf32>
    %198 = vector.broadcast %197 : vector<1x128xf32> to vector<96x128xf32>
    %199 = arith.addf %196, %198 : vector<96x128xf32>
    %cst_178 = arith.constant 0.000000e+00 : f32
    %200 = vector.broadcast %cst_178 : f32 to vector<96x128xf32>
    %201 = arith.maximumf %199, %200 : vector<96x128xf32>
    %c192_179 = arith.constant 192 : index
    %c0_180 = arith.constant 0 : index
    %202 = vector.load %arg9[%c192_179, %c0_180] : memref<288x1xf32, #tpu.memory_space<vmem>>, vector<96x1xf32>
    %203 = vector.broadcast %202 : vector<96x1xf32> to vector<96x128xf32>
    %204 = arith.mulf %201, %203 : vector<96x128xf32>
    %cst_181 = arith.constant dense<0.000000e+00> : vector<128xf32>
    %205 = vector.multi_reduction <add>, %204, %cst_181 [0] : vector<96x128xf32> to vector<128xf32>
    %206 = vector.shape_cast %205 : vector<128xf32> to vector<1x128xf32>
    %207 = arith.addf %152, %206 : vector<1x128xf32>
    %208 = arith.truncf %207 : vector<1x128xf32> to vector<1x128xbf16>
    %c0_182 = arith.constant 0 : index
    %c0_183 = arith.constant 0 : index
    %209 = vector.load %arg6[%c0_182, %c0_183] : memref<128x128xbf16, #tpu.memory_space<vmem>>, vector<128x128xbf16>
    %cst_184 = arith.constant dense<0.000000e+00> : vector<1x128xf32>
    %210 = tpu.matmul %208, %209, %cst_184 {dimension_numbers = #tpu.dot_dimension_numbers<[1], [0], [0], [1], [0, 0, 1, 1], [], []>} : vector<1x128xbf16>, vector<128x128xbf16>, vector<1x128xf32> -> vector<1x128xf32>
    %c0_185 = arith.constant 0 : index
    %c0_186 = arith.constant 0 : index
    %211 = vector.load %arg7[%c0_185, %c0_186] : memref<1x128xf32, #tpu.memory_space<vmem>>, vector<1x128xf32>
    %212 = arith.addf %210, %211 : vector<1x128xf32>
    %c0_187 = arith.constant 0 : index
    %c0_188 = arith.constant 0 : index
    %c0_189 = arith.constant 0 : index
    %213 = vector.load %arg10[%c0_187, %c0_188, %c0_189] : memref<1x1x128xf32, #tpu.memory_space<vmem>>, vector<1x1x128xf32>
    %214 = vector.shape_cast %213 : vector<1x1x128xf32> to vector<1x128xf32>
    %215 = vector.shape_cast %212 : vector<1x128xf32> to vector<1x1x128xf32>
    tpu.vector_store %arg10[%c0_187, %c0_188, %c0_189], %215 {strides = array<i32>} : memref<1x1x128xf32, #tpu.memory_space<vmem>>, vector<1x1x128xf32>,
    return
  }
  func.func @transform_0(%arg0: i32) -> (i32, i32) {
    %c0_i32 = arith.constant 0 : i32
    %c0_i32_0 = arith.constant 0 : i32
    return %arg0, %c0_i32 : i32, i32
  }
  func.func @transform_1(%arg0: i32) -> (i32, i32) {
    %c0_i32 = arith.constant 0 : i32
    %c0_i32_0 = arith.constant 0 : i32
    %c0_i32_1 = arith.constant 0 : i32
    return %c0_i32, %c0_i32_0 : i32, i32
  }
  func.func @transform_2(%arg0: i32) -> (i32, i32) {
    %c0_i32 = arith.constant 0 : i32
    %c0_i32_0 = arith.constant 0 : i32
    %c0_i32_1 = arith.constant 0 : i32
    return %c0_i32, %c0_i32_0 : i32, i32
  }
  func.func @transform_3(%arg0: i32) -> (i32, i32, i32) {
    %c0_i32 = arith.constant 0 : i32
    %c0_i32_0 = arith.constant 0 : i32
    %c0_i32_1 = arith.constant 0 : i32
    %c0_i32_2 = arith.constant 0 : i32
    return %c0_i32, %c0_i32_0, %c0_i32_1 : i32, i32, i32
  }
  func.func @transform_4(%arg0: i32) -> (i32, i32) {
    %c0_i32 = arith.constant 0 : i32
    %c0_i32_0 = arith.constant 0 : i32
    %c0_i32_1 = arith.constant 0 : i32
    return %c0_i32, %c0_i32_0 : i32, i32
  }
  func.func @transform_5(%arg0: i32) -> (i32, i32) {
    %c0_i32 = arith.constant 0 : i32
    %c0_i32_0 = arith.constant 0 : i32
    %c0_i32_1 = arith.constant 0 : i32
    return %c0_i32, %c0_i32_0 : i32, i32
  }
  func.func @transform_6(%arg0: i32) -> (i32, i32) {
    %c0_i32 = arith.constant 0 : i32
    %c0_i32_0 = arith.constant 0 : i32
    %c0_i32_1 = arith.constant 0 : i32
    return %c0_i32, %c0_i32_0 : i32, i32
  }
  func.func @transform_7(%arg0: i32) -> (i32, i32) {
    %c0_i32 = arith.constant 0 : i32
    %c0_i32_0 = arith.constant 0 : i32
    %c0_i32_1 = arith.constant 0 : i32
    return %c0_i32, %c0_i32_0 : i32, i32
  }
  func.func @transform_8(%arg0: i32) -> (i32, i32) {
    %c0_i32 = arith.constant 0 : i32
    %c0_i32_0 = arith.constant 0 : i32
    %c0_i32_1 = arith.constant 0 : i32
    return %c0_i32, %c0_i32_0 : i32, i32
  }
  func.func @transform_9(%arg0: i32) -> (i32, i32, i32) {
    %c0_i32 = arith.constant 0 : i32
    %c0_i32_0 = arith.constant 0 : i32
    %c0_i32_1 = arith.constant 0 : i32
    return %arg0, %c0_i32, %c0_i32_0 : i32, i32, i32
  }
}

</mosaic_0001>

<llo_original>
// kernel: tilenet_forward.1
$region0: #{tilenet_forward.1}
  #allocation0 [shape = 'u32[]', space=smem, size = 0x4, offset = 0x4, fixed_abs, tag = 'smem constant byte address 0x4 - core index']
  #allocation1 [shape = 'u32[72,128]{1,0:T(1,128)}', space=vmem, size = 0x9000, scoped, tag = 'internal scratch']
  #allocation2 [shape = 'bf16[352,32]{1,0:T(8,128)(2,1)}', space=vmem, size = 0x16000, scoped, tag = 'scratch operand']
  %s0 = inlined_call_operand.vmem [shape: bf16[576,72], index: 0, kind: input, shape index: {}]
  %s1 = inlined_call_operand.vmem [shape: bf16[72,32], index: 1, kind: input, shape index: {}]
  %s2 = inlined_call_operand.vmem [shape: f32[1,32], index: 2, kind: input, shape index: {}]
  %s3 = inlined_call_operand.vmem [shape: bf16[9,32,128], index: 3, kind: input, shape index: {}]
  %s4 = inlined_call_operand.vmem [shape: f32[1,128], index: 4, kind: input, shape index: {}]
  %s5 = inlined_call_operand.vmem [shape: bf16[128,128], index: 5, kind: input, shape index: {}]
  %s6 = inlined_call_operand.vmem [shape: f32[1,128], index: 6, kind: input, shape index: {}]
  %s7 = inlined_call_operand.vmem [shape: f32[288,1], index: 7, kind: input, shape index: {}]
  %s8 = inlined_call_operand.vmem [shape: f32[288,1], index: 8, kind: input, shape index: {}]
  %s9 = inlined_call_operand.hbm [shape: f32[2,1,128], index: 9, kind: output, shape index: {}]
  %s10 = sld [smem:[#allocation0]]
  $region69: #{tilenet_forward.1} parent=0
    _
  %s12 = ssub.s32 1, %s10
  %s13 = scalar_select 0, %s12, %s10
  $region1: #{tilenet_forward.1} parent=0
    #allocation3 [shape = 'u8[1024]{0}', space=vmem, size = 0x400, scoped, tag = 'output window, operand 0']
    #allocation4 [shape = 's32[2]{0}', space=sflag, size = 0x8, scoped, tag = 'scoped memory for tilenet_forward.1']
    %14 = vsyncpa [#allocation4], 0
    %s15 = scalar_lea.sflag [#allocation4], 1
    %16 = vsyncpa %s15, 0
    loop: start=0, step=1, limit=4
    $region2: #{tilenet_forward.1} parent=1 // loop_pre_header
      _
    $region3: #{tilenet_forward.1} parent=1 // loop_header
      %s18 = sphi 0, %s22
      %p19 = scmp.ge.s32.totalorder %s18, 4
      %s28 = sphi 0, %s30
      %s31 = sphi 0, %s28
      %s32 = sphi 0, %s31
      %s48 = sphi 0, %s32
      %s52 = sphi 0, %s52
      %s54 = sphi 0, %s52
      %s55 = sphi 0, %s54
      %s69 = sphi 0, %s55
      %s73 = sphi 0, %s73
      %s75 = sphi 0, %s73
      %s76 = sphi 0, %s75
      %s90 = sphi 0, %s76
      %s94 = sphi 0, %s94
      %s96 = sphi 0, %s94
      %s97 = sphi 0, %s96
      %s111 = sphi 0, %s97
      %s115 = sphi 0, %s115
      %s117 = sphi 0, %s115
      %s118 = sphi 0, %s117
      %s132 = sphi 0, %s118
      %s136 = sphi 0, %s136
      %s138 = sphi 0, %s136
      %s139 = sphi 0, %s138
      %s153 = sphi 0, %s139
      %s157 = sphi 0, %s157
      %s159 = sphi 0, %s157
      %s160 = sphi 0, %s159
      %s174 = sphi 0, %s160
      %s178 = sphi 0, %s178
      %s180 = sphi 0, %s178
      %s181 = sphi 0, %s180
      %s195 = sphi 0, %s181
      %s199 = sphi 0, %s199
      %s201 = sphi 0, %s199
      %s202 = sphi 0, %s201
      %s216 = sphi 0, %s202
      %s222 = sphi 0, %s224
      %s225 = sphi 0, %s222
      %s226 = sphi 0, %s225
      %s242 = sphi 0, %s226
    $region4: #{tilenet_forward.1} parent=1 // loop_header_branch
      %21 = sbr.rel (%p19) target = $region8
    $region5: #{tilenet_forward.1} parent=1 // loop_body
      %s23 = ssub.s32 %s18, 1
      %s24 = ssub.s32 %s18, 2
      %s25 = sadd.s32 %s18, 1
      %s26 = ssub.s32 %s18, %s25
      %p27 = scmp.eq.s32.totalorder %s26, 0
      %s29 = sadd.s32 %s28, 1
      %s30 = scalar_select %p27, %s28, %s29
      %p33 = pneg %p27
      %p34 = scmp.eq.s32.totalorder %s18, 1
      %p35 = por %p33, %p34
      %p36 = scmp.ne.s32.totalorder %s28, %s31
      %p37 = scmp.eq.s32.totalorder %s18, 0
      %p38 = por %p36, %p37
      %p39 = scmp.ne.s32.totalorder %s28, %s31
      %p40 = scmp.eq.s32.totalorder %s23, 1
      %p41 = por %p39, %p40
      %p42 = scmp.ne.s32.totalorder %s31, %s32
      %p43 = scmp.eq.s32.totalorder %s23, 0
      %p44 = por %p42, %p43
      %p45 = scmp.ne.s32.totalorder %s31, %s32
      %p46 = scmp.eq.s32.totalorder %s24, 1
      %p47 = por %p45, %p46
      %p49 = scmp.ne.s32.totalorder %s32, %s48
      %p50 = scmp.eq.s32.totalorder %s24, 0
      %p51 = por %p49, %p50
      %s53 = sadd.s32 %s52, 1
      %p56 = scmp.eq.s32.totalorder %s18, 1
      %p57 = scmp.ne.s32.totalorder %s52, %s54
      %p58 = scmp.eq.s32.totalorder %s18, 0
      %p59 = por %p57, %p58
      %p60 = scmp.ne.s32.totalorder %s52, %s54
      %p61 = scmp.eq.s32.totalorder %s23, 1
      %p62 = por %p60, %p61
      %p63 = scmp.ne.s32.totalorder %s54, %s55
      %p64 = scmp.eq.s32.totalorder %s23, 0
      %p65 = por %p63, %p64
      %p66 = scmp.ne.s32.totalorder %s54, %s55
      %p67 = scmp.eq.s32.totalorder %s24, 1
      %p68 = por %p66, %p67
      %p70 = scmp.ne.s32.totalorder %s55, %s69
      %p71 = scmp.eq.s32.totalorder %s24, 0
      %p72 = por %p70, %p71
      %s74 = sadd.s32 %s73, 1
      %p77 = scmp.eq.s32.totalorder %s18, 1
      %p78 = scmp.ne.s32.totalorder %s73, %s75
      %p79 = scmp.eq.s32.totalorder %s18, 0
      %p80 = por %p78, %p79
      %p81 = scmp.ne.s32.totalorder %s73, %s75
      %p82 = scmp.eq.s32.totalorder %s23, 1
      %p83 = por %p81, %p82
      %p84 = scmp.ne.s32.totalorder %s75, %s76
      %p85 = scmp.eq.s32.totalorder %s23, 0
      %p86 = por %p84, %p85
      %p87 = scmp.ne.s32.totalorder %s75, %s76
      %p88 = scmp.eq.s32.totalorder %s24, 1
      %p89 = por %p87, %p88
      %p91 = scmp.ne.s32.totalorder %s76, %s90
      %p92 = scmp.eq.s32.totalorder %s24, 0
      %p93 = por %p91, %p92
      %s95 = sadd.s32 %s94, 1
      %p98 = scmp.eq.s32.totalorder %s18, 1
      %p99 = scmp.ne.s32.totalorder %s94, %s96
      %p100 = scmp.eq.s32.totalorder %s18, 0
      %p101 = por %p99, %p100
      %p102 = scmp.ne.s32.totalorder %s94, %s96
      %p103 = scmp.eq.s32.totalorder %s23, 1
      %p104 = por %p102, %p103
      %p105 = scmp.ne.s32.totalorder %s96, %s97
      %p106 = scmp.eq.s32.totalorder %s23, 0
      %p107 = por %p105, %p106
      %p108 = scmp.ne.s32.totalorder %s96, %s97
      %p109 = scmp.eq.s32.totalorder %s24, 1
      %p110 = por %p108, %p109
      %p112 = scmp.ne.s32.totalorder %s97, %s111
      %p113 = scmp.eq.s32.totalorder %s24, 0
      %p114 = por %p112, %p113
      %s116 = sadd.s32 %s115, 1
      %p119 = scmp.eq.s32.totalorder %s18, 1
      %p120 = scmp.ne.s32.totalorder %s115, %s117
      %p121 = scmp.eq.s32.totalorder %s18, 0
      %p122 = por %p120, %p121
      %p123 = scmp.ne.s32.totalorder %s115, %s117
      %p124 = scmp.eq.s32.totalorder %s23, 1
      %p125 = por %p123, %p124
      %p126 = scmp.ne.s32.totalorder %s117, %s118
      %p127 = scmp.eq.s32.totalorder %s23, 0
      %p128 = por %p126, %p127
      %p129 = scmp.ne.s32.totalorder %s117, %s118
      %p130 = scmp.eq.s32.totalorder %s24, 1
      %p131 = por %p129, %p130
      %p133 = scmp.ne.s32.totalorder %s118, %s132
      %p134 = scmp.eq.s32.totalorder %s24, 0
      %p135 = por %p133, %p134
      %s137 = sadd.s32 %s136, 1
      %p140 = scmp.eq.s32.totalorder %s18, 1
      %p141 = scmp.ne.s32.totalorder %s136, %s138
      %p142 = scmp.eq.s32.totalorder %s18, 0
      %p143 = por %p141, %p142
      %p144 = scmp.ne.s32.totalorder %s136, %s138
      %p145 = scmp.eq.s32.totalorder %s23, 1
      %p146 = por %p144, %p145
      %p147 = scmp.ne.s32.totalorder %s138, %s139
      %p148 = scmp.eq.s32.totalorder %s23, 0
      %p149 = por %p147, %p148
      %p150 = scmp.ne.s32.totalorder %s138, %s139
      %p151 = scmp.eq.s32.totalorder %s24, 1
      %p152 = por %p150, %p151
      %p154 = scmp.ne.s32.totalorder %s139, %s153
      %p155 = scmp.eq.s32.totalorder %s24, 0
      %p156 = por %p154, %p155
      %s158 = sadd.s32 %s157, 1
      %p161 = scmp.eq.s32.totalorder %s18, 1
      %p162 = scmp.ne.s32.totalorder %s157, %s159
      %p163 = scmp.eq.s32.totalorder %s18, 0
      %p164 = por %p162, %p163
      %p165 = scmp.ne.s32.totalorder %s157, %s159
      %p166 = scmp.eq.s32.totalorder %s23, 1
      %p167 = por %p165, %p166
      %p168 = scmp.ne.s32.totalorder %s159, %s160
      %p169 = scmp.eq.s32.totalorder %s23, 0
      %p170 = por %p168, %p169
      %p171 = scmp.ne.s32.totalorder %s159, %s160
      %p172 = scmp.eq.s32.totalorder %s24, 1
      %p173 = por %p171, %p172
      %p175 = scmp.ne.s32.totalorder %s160, %s174
      %p176 = scmp.eq.s32.totalorder %s24, 0
      %p177 = por %p175, %p176
      %s179 = sadd.s32 %s178, 1
      %p182 = scmp.eq.s32.totalorder %s18, 1
      %p183 = scmp.ne.s32.totalorder %s178, %s180
      %p184 = scmp.eq.s32.totalorder %s18, 0
      %p185 = por %p183, %p184
      %p186 = scmp.ne.s32.totalorder %s178, %s180
      %p187 = scmp.eq.s32.totalorder %s23, 1
      %p188 = por %p186, %p187
      %p189 = scmp.ne.s32.totalorder %s180, %s181
      %p190 = scmp.eq.s32.totalorder %s23, 0
      %p191 = por %p189, %p190
      %p192 = scmp.ne.s32.totalorder %s180, %s181
      %p193 = scmp.eq.s32.totalorder %s24, 1
      %p194 = por %p192, %p193
      %p196 = scmp.ne.s32.totalorder %s181, %s195
      %p197 = scmp.eq.s32.totalorder %s24, 0
      %p198 = por %p196, %p197
      %s200 = sadd.s32 %s199, 1
      %p203 = scmp.eq.s32.totalorder %s18, 1
      %p204 = scmp.ne.s32.totalorder %s199, %s201
      %p205 = scmp.eq.s32.totalorder %s18, 0
      %p206 = por %p204, %p205
      %p207 = scmp.ne.s32.totalorder %s199, %s201
      %p208 = scmp.eq.s32.totalorder %s23, 1
      %p209 = por %p207, %p208
      %p210 = scmp.ne.s32.totalorder %s201, %s202
      %p211 = scmp.eq.s32.totalorder %s23, 0
      %p212 = por %p210, %p211
      %p213 = scmp.ne.s32.totalorder %s201, %s202
      %p214 = scmp.eq.s32.totalorder %s24, 1
      %p215 = por %p213, %p214
      %p217 = scmp.ne.s32.totalorder %s202, %s216
      %p218 = scmp.eq.s32.totalorder %s24, 0
      %p219 = por %p217, %p218
      %s220 = ssub.s32 %s18, %s25
      %p221 = scmp.eq.s32.totalorder %s220, 0
      %s223 = sadd.s32 %s222, 1
      %s224 = scalar_select %p221, %s222, %s223
      %p227 = pneg %p221
      %p228 = scmp.eq.s32.totalorder %s18, 1
      %p229 = por %p227, %p228
      %p230 = scmp.ne.s32.totalorder %s222, %s225
      %p231 = scmp.eq.s32.totalorder %s18, 0
      %p232 = por %p230, %p231
      %p233 = scmp.ne.s32.totalorder %s222, %s225
      %p234 = scmp.eq.s32.totalorder %s23, 1
      %p235 = por %p233, %p234
      %p236 = scmp.ne.s32.totalorder %s225, %s226
      %p237 = scmp.eq.s32.totalorder %s23, 0
      %p238 = por %p236, %p237
      %p239 = scmp.ne.s32.totalorder %s225, %s226
      %p240 = scmp.eq.s32.totalorder %s24, 1
      %p241 = por %p239, %p240
      %p243 = scmp.ne.s32.totalorder %s226, %s242
      %p244 = scmp.eq.s32.totalorder %s24, 0
      %p245 = por %p243, %p244
      %p246 = scmp.le.s32.totalorder 1, %s18
      %p247 = scmp.lt.s32.totalorder %s18, 3
      %p248 = pnand %p246, %p247
      %p249 = pneg %p248
      // Predicated region
      $region9: #{tilenet_forward.1} parent=5 // pred_check
        _
      $region10: #{tilenet_forward.1} parent=5 // pred_check_branch
        %251 = sbr.rel (%p248) target = $region12
      $region11: #{tilenet_forward.1} parent=5 // pred_region
        %s252 = ssub.s32 %s18, 1
        // Predicated region
        $region13: #{tilenet_forward.1} parent=11 // pred_check
          %p253 = pneg %p65
        $region14: #{tilenet_forward.1} parent=11 // pred_check_branch
          %255 = sbr.rel (%p253) target = $region16
        $region15: #{tilenet_forward.1} parent=11 // pred_region
          _
        $region16: #{tilenet_forward.1} parent=11 // pred_fallthru
          _
        // Predicated region
        $region17: #{tilenet_forward.1} parent=11 // pred_check
          %p256 = pneg %p86
        $region18: #{tilenet_forward.1} parent=11 // pred_check_branch
          %258 = sbr.rel (%p256) target = $region20
        $region19: #{tilenet_forward.1} parent=11 // pred_region
          _
        $region20: #{tilenet_forward.1} parent=11 // pred_fallthru
          _
        // Predicated region
        $region21: #{tilenet_forward.1} parent=11 // pred_check
          %p259 = pneg %p107
        $region22: #{tilenet_forward.1} parent=11 // pred_check_branch
          %261 = sbr.rel (%p259) target = $region24
        $region23: #{tilenet_forward.1} parent=11 // pred_region
          _
        $region24: #{tilenet_forward.1} parent=11 // pred_fallthru
          _
        // Predicated region
        $region25: #{tilenet_forward.1} parent=11 // pred_check
          %p262 = pneg %p128
        $region26: #{tilenet_forward.1} parent=11 // pred_check_branch
          %264 = sbr.rel (%p262) target = $region28
        $region27: #{tilenet_forward.1} parent=11 // pred_region
          _
        $region28: #{tilenet_forward.1} parent=11 // pred_fallthru
          _
        // Predicated region
        $region29: #{tilenet_forward.1} parent=11 // pred_check
          %p265 = pneg %p149
        $region30: #{tilenet_forward.1} parent=11 // pred_check_branch
          %267 = sbr.rel (%p265) target = $region32
        $region31: #{tilenet_forward.1} parent=11 // pred_region
          _
        $region32: #{tilenet_forward.1} parent=11 // pred_fallthru
          _
        // Predicated region
        $region33: #{tilenet_forward.1} parent=11 // pred_check
          %p268 = pneg %p170
        $region34: #{tilenet_forward.1} parent=11 // pred_check_branch
          %270 = sbr.rel (%p268) target = $region36
        $region35: #{tilenet_forward.1} parent=11 // pred_region
          _
        $region36: #{tilenet_forward.1} parent=11 // pred_fallthru
          _
        // Predicated region
        $region37: #{tilenet_forward.1} parent=11 // pred_check
          %p271 = pneg %p191
        $region38: #{tilenet_forward.1} parent=11 // pred_check_branch
          %273 = sbr.rel (%p271) target = $region40
        $region39: #{tilenet_forward.1} parent=11 // pred_region
          _
        $region40: #{tilenet_forward.1} parent=11 // pred_fallthru
          _
        // Predicated region
        $region41: #{tilenet_forward.1} parent=11 // pred_check
          %p274 = pneg %p212
        $region42: #{tilenet_forward.1} parent=11 // pred_check_branch
          %276 = sbr.rel (%p274) target = $region44
        $region43: #{tilenet_forward.1} parent=11 // pred_region
          _
        $region44: #{tilenet_forward.1} parent=11 // pred_fallthru
          _
      $region12: #{tilenet_forward.1} parent=5 // pred_fallthru
        _
      %p277 = scmp.lt.s32.totalorder %s18, 2
      // Predicated region
      $region45: #{tilenet_forward.1} parent=5 // pred_check
        %p278 = pneg %p277
      $region46: #{tilenet_forward.1} parent=5 // pred_check_branch
        %280 = sbr.rel (%p278) target = $region48
      $region47: #{tilenet_forward.1} parent=5 // pred_region
        // Predicated region
        $region49: #{tilenet_forward.1} parent=47 // pred_check
          %p281 = pneg %p38
        $region50: #{tilenet_forward.1} parent=47 // pred_check_branch
          %283 = sbr.rel (%p281) target = $region52
        $region51: #{tilenet_forward.1} parent=47 // pred_region
          %s284 = smul.u32 36, %s18
          %p285 = scmp.lt.s32.totalorder %s284, 71
          %s286 = scalar_select %p285, %s284, 71
          %s287 = smul.addr %s286, 4
          %s288 = scalar_lea.vmem %s0, %s287
          %s289 = smul.u32 36, %s18
        $region52: #{tilenet_forward.1} parent=47 // pred_fallthru
          _
      $region48: #{tilenet_forward.1} parent=5 // pred_fallthru
        _
      %p290 = scmp.le.s32.totalorder 1, %s18
      %p291 = scmp.lt.s32.totalorder %s18, 3
      %p292 = pnand %p290, %p291
      %p293 = pneg %p292
      // Predicated region
      $region53: #{tilenet_forward.1} parent=5 // pred_check
        _
      $region54: #{tilenet_forward.1} parent=5 // pred_check_branch
        %295 = sbr.rel (%p292) target = $region56
      $region55: #{tilenet_forward.1} parent=5 // pred_region
        %s296 = ssub.s32 %s18, 1
        %s297 = smul.u32 36, %s23
        %p298 = scmp.lt.s32.totalorder %s297, 71
        %s299 = scalar_select %p298, %s297, 71
        %s300 = smul.addr %s299, 4
        %s301 = scalar_lea.vmem %s0, %s300
        %p302 = pneg %p44
        %p303 = pneg %p41
        %p304 = pneg %p65
        %p305 = pneg %p62
        %p306 = pneg %p86
        %p307 = pneg %p83
        %p308 = pneg %p107
        %p309 = pneg %p104
        %p310 = pneg %p128
        %p311 = pneg %p125
        %p312 = pneg %p149
        %p313 = pneg %p146
        %p314 = pneg %p170
        %p315 = pneg %p167
        %p316 = pneg %p191
        %p317 = pneg %p188
        %p318 = pneg %p212
        %p319 = pneg %p209
        %p320 = pneg %p238
        %p321 = pneg %p235
        %s322 = sand.u32 %s225, 1
        %s323 = scalar_lea.sflag [#allocation4], %s322
        %s324 = sand.u32 %s225, 1
        %s325 = scalar_lea.vmem [#allocation3], %s324
        %s326 = smul.u32 36, %s23
        %p327 = scmp.lt.s32.totalorder %s326, 71
        %s328 = scalar_select %p327, %s326, 71
        %s329 = smul.addr %s328, 4
        %s330 = scalar_lea.vmem %s0, %s329
        %s331 = smul.u32 36, %s23
        %vm333 = vcmask 257024
        %334 = vst.msk [vmem:[#allocation2] sm:$0xf] %vm333, 0
        %335 = vst.msk [vmem:[#allocation2 + $0x4] sm:$0xf] %vm333, 0
        %336 = vst.msk [vmem:[#allocation2 + $0x8] sm:$0xf] %vm333, 0
        %337 = vst.msk [vmem:[#allocation2 + $0xc] sm:$0xf] %vm333, 0
        %338 = vst.msk [vmem:[#allocation2 + $0xa0] sm:$0xf] %vm333, 0
        %339 = vst.msk [vmem:[#allocation2 + $0xa4] sm:$0xf] %vm333, 0
        %340 = vst.msk [vmem:[#allocation2 + $0xa8] sm:$0xf] %vm333, 0
        %341 = vst.msk [vmem:[#allocation2 + $0xac] sm:$0xf] %vm333, 0
        %v342 = vld [vmem:[%s330] sm:$0xf]
        %v343 = vld [vmem:[%s330 + $0x4] sm:$0xf]
        %v344 = vld [vmem:[%s330 + $0x8] sm:$0xf]
        %v345 = vld [vmem:[%s330 + $0xc] sm:$0xf]
        %v346 = vld [vmem:[%s330 + $0x10] sm:$0xf]
        %v347 = vld [vmem:[%s330 + $0x14] sm:$0xf]
        %v348 = vld [vmem:[%s330 + $0x18] sm:$0xf]
        %v349 = vld [vmem:[%s330 + $0x1c] sm:$0xf]
        %v350 = vld [vmem:[%s330 + $0x20] sm:$0xf]
        %v351 = vld [vmem:[%s330 + $0x24] sm:$0xf]
        %v352 = vld [vmem:[%s330 + $0x28] sm:$0xf]
        %v353 = vld [vmem:[%s330 + $0x2c] sm:$0xf]
        %v354 = vld [vmem:[%s1] sm:$0xf]
        %v355 = vld [vmem:[%s1 + $0x4] sm:$0xf]
        %v356 = vld [vmem:[%s1 + $0x8] sm:$0xf]
        %v357 = vld [vmem:[%s1 + $0xc] sm:$0xf]
        %v358 = vld [vmem:[%s1 + $0x10] sm:$0xf]
        %v359 = vld [vmem:[%s1 + $0x14] sm:$0xf]
        %v360 = vld [vmem:[%s1 + $0x18] sm:$0xf]
        %v361 = vld [vmem:[%s1 + $0x1c] sm:$0xf]
        %v362 = vld [vmem:[%s1 + $0x20] sm:$0xf]
        %v363 = vld [vmem:[%s2] sm:$0x1]
        %v365 = vperm.slane %v363, 0
        %v379 = vunpack.c.l.b16 %v342
        %v380 = vunpack.c.l.b16 %v343
        %v381 = vunpack.c.l.b16 %v344
        %v382 = vunpack.c.l.b16 %v345
        %v383 = vunpack.c.l.b16 %v346
        %v384 = vunpack.c.l.b16 %v347
        %v385 = vunpack.c.l.b16 %v348
        %v386 = vunpack.c.l.b16 %v349
        %v387 = vunpack.c.l.b16 %v350
        %v388 = vunpack.c.l.b16 %v351
        %v389 = vunpack.c.l.b16 %v352
        %v390 = vunpack.c.l.b16 %v353
        %v391 = vpack.c.b16 %v380, %v379
        %v392 = vpack.c.b16 %v382, %v381
        %v393 = vpack.c.b16 %v384, %v383
        %v394 = vpack.c.b16 %v386, %v385
        %v395 = vpack.c.b16 %v388, %v387
        %v396 = vpack.c.b16 %v390, %v389
        %v406 = vunpack.c.l.b16 %v354
        %v407 = vunpack.c.l.b16 %v355
        %v408 = vunpack.c.l.b16 %v356
        %v409 = vunpack.c.l.b16 %v357
        %v410 = vunpack.c.l.b16 %v358
        %v411 = vunpack.c.l.b16 %v359
        %v412 = vunpack.c.l.b16 %v360
        %v413 = vunpack.c.l.b16 %v361
        %v414 = vunpack.c.l.b16 %v362
        %v415 = vpack.c.b16 %v407, %v406
        %v416 = vpack.c.b16 %v409, %v408
        %v417 = vpack.c.b16 %v411, %v410
        %v418 = vpack.c.b16 %v413, %v412
        %v419 = vpack.c.b16 %v414, %v414
        %vm424 = vcmask 588800
        %v426 = vsel %vm424, %v391, 0
        %v429 = vsel %vm424, %v392, 0
        %v432 = vsel %vm424, %v393, 0
        %v435 = vsel %vm424, %v394, 0
        %v438 = vsel %vm424, %v395, 0
        %v441 = vsel %vm424, %v396, 0
        %vm443 = vcmask 1043456
        %v445 = vsel %vm443, %v419, 0
        %447 = vmatpush.bf16.msra.mxu0 0
        %448 = vmatpush.bf16.msra.mxu0 0
        %449 = vmatpush.bf16.msra.mxu0 0
        %450 = vmatpush.bf16.msra.mxu0 %v445
        %451 = vmatpush.bf16.msra.mxu0 %v418
        %452 = vmatpush.bf16.msra.mxu0 %v417
        %453 = vmatpush.bf16.msra.mxu0 %v416
        %454 = vmatpush.bf16.msra.mxu0 %v415
        %455 = vmatmul.bf16.gmra.mxu0 %v426
        %v456 = vpop.f32.mrf.mxu0
        %v457 = vadd.f32 %v365, %v456
        %v458 = vpop.f32.mrf.mxu0
        %v459 = vadd.f32 %v365, %v458
        %460 = vmatmul.bf16.gmra.mxu0 %v429
        %v461 = vpop.f32.mrf.mxu0
        %v462 = vadd.f32 %v365, %v461
        %v463 = vpop.f32.mrf.mxu0
        %v464 = vadd.f32 %v365, %v463
        %465 = vmatmul.bf16.gmra.mxu0 %v432
        %v466 = vpop.f32.mrf.mxu0
        %v467 = vadd.f32 %v365, %v466
        %v468 = vpop.f32.mrf.mxu0
        %v469 = vadd.f32 %v365, %v468
        %470 = vmatmul.bf16.gmra.mxu0 %v435
        %v471 = vpop.f32.mrf.mxu0
        %v472 = vadd.f32 %v365, %v471
        %v473 = vpop.f32.mrf.mxu0
        %v474 = vadd.f32 %v365, %v473
        %475 = vmatmul.bf16.gmra.mxu0 %v438
        %v476 = vpop.f32.mrf.mxu0
        %v477 = vadd.f32 %v365, %v476
        %v478 = vpop.f32.mrf.mxu0
        %v479 = vadd.f32 %v365, %v478
        %480 = vmatmul.bf16.gmra.mxu0 %v441
        %v481 = vpop.f32.mrf.mxu0
        %v482 = vadd.f32 %v365, %v481
        %v483 = vpop.f32.mrf.mxu0
        %v484 = vadd.f32 %v365, %v483
        %485 = vdwg.mxu0
        %v486 = vmax.f32 %v457, 0.0
        %v487 = vmax.f32 %v459, 0.0
        %v488 = vmax.f32 %v462, 0.0
        %v489 = vmax.f32 %v464, 0.0
        %v490 = vmax.f32 %v467, 0.0
        %v491 = vmax.f32 %v469, 0.0
        %v492 = vmax.f32 %v472, 0.0
        %v493 = vmax.f32 %v474, 0.0
        %v494 = vmax.f32 %v477, 0.0
        %v495 = vmax.f32 %v479, 0.0
        %v496 = vmax.f32 %v482, 0.0
        %v497 = vmax.f32 %v484, 0.0
        %v498 = vld [vmem:[%s7] sm:$0xff]
        %v499 = vld [vmem:[%s7 + $0x8] sm:$0xff]
        %v500 = vld [vmem:[%s7 + $0x10] sm:$0xff]
        %v501 = vld [vmem:[%s7 + $0x18] sm:$0xff]
        %v502 = vld [vmem:[%s7 + $0x20] sm:$0xff]
        %v503 = vld [vmem:[%s7 + $0x28] sm:$0xff]
        %v504 = vld [vmem:[%s7 + $0x30] sm:$0xff]
        %v505 = vld [vmem:[%s7 + $0x38] sm:$0xff]
        %v506 = vld [vmem:[%s7 + $0x40] sm:$0xff]
        %v507 = vld [vmem:[%s7 + $0x48] sm:$0xff]
        %v508 = vld [vmem:[%s7 + $0x50] sm:$0xff]
        %v509 = vld [vmem:[%s7 + $0x58] sm:$0xff]
        %511 = vset.pattern.permute.xlu0 0
        %512 = vperm.xlu0 %511, %v498
        %v513 = vpop.permute.xlu0 %512
        %516 = vset.pattern.permute.xlu0 0
        %517 = vperm.xlu0 %516, %v499
        %v518 = vpop.permute.xlu0 %517
        %521 = vset.pattern.permute.xlu0 0
        %522 = vperm.xlu0 %521, %v500
        %v523 = vpop.permute.xlu0 %522
        %526 = vset.pattern.permute.xlu0 0
        %527 = vperm.xlu0 %526, %v501
        %v528 = vpop.permute.xlu0 %527
        %531 = vset.pattern.permute.xlu0 0
        %532 = vperm.xlu0 %531, %v502
        %v533 = vpop.permute.xlu0 %532
        %536 = vset.pattern.permute.xlu0 0
        %537 = vperm.xlu0 %536, %v503
        %v538 = vpop.permute.xlu0 %537
        %541 = vset.pattern.permute.xlu0 0
        %542 = vperm.xlu0 %541, %v504
        %v543 = vpop.permute.xlu0 %542
        %546 = vset.pattern.permute.xlu0 0
        %547 = vperm.xlu0 %546, %v505
        %v548 = vpop.permute.xlu0 %547
        %551 = vset.pattern.permute.xlu0 0
        %552 = vperm.xlu0 %551, %v506
        %v553 = vpop.permute.xlu0 %552
        %556 = vset.pattern.permute.xlu0 0
        %557 = vperm.xlu0 %556, %v507
        %v558 = vpop.permute.xlu0 %557
        %561 = vset.pattern.permute.xlu0 0
        %562 = vperm.xlu0 %561, %v508
        %v563 = vpop.permute.xlu0 %562
        %566 = vset.pattern.permute.xlu0 0
        %567 = vperm.xlu0 %566, %v509
        %v568 = vpop.permute.xlu0 %567
        %v570 = vmul.f32 %v486, %v513
        %v571 = vmul.f32 %v487, %v518
        %v572 = vmul.f32 %v488, %v523
        %v573 = vmul.f32 %v489, %v528
        %v574 = vmul.f32 %v490, %v533
        %v575 = vmul.f32 %v491, %v538
        %v576 = vmul.f32 %v492, %v543
        %v577 = vmul.f32 %v493, %v548
        %v578 = vmul.f32 %v494, %v553
        %v579 = vmul.f32 %v495, %v558
        %v580 = vmul.f32 %v496, %v563
        %v581 = vmul.f32 %v497, %v568
        %v582 = vpack.c.bf16 %v570, %v570
        %v583 = vpack.c.bf16 %v571, %v571
        %v584 = vpack.c.bf16 %v572, %v572
        %v585 = vpack.c.bf16 %v573, %v573
        %v586 = vpack.c.bf16 %v574, %v574
        %v587 = vpack.c.bf16 %v575, %v575
        %v588 = vpack.c.bf16 %v576, %v576
        %v589 = vpack.c.bf16 %v577, %v577
        %v590 = vpack.c.bf16 %v578, %v578
        %v591 = vpack.c.bf16 %v579, %v579
        %v592 = vpack.c.bf16 %v580, %v580
        %v593 = vpack.c.bf16 %v581, %v581
        %594 = vst.msk [vmem:[#allocation2 + $0x10] sm:$0xf] %vm333, %v582
        %595 = vst.msk [vmem:[#allocation2 + $0x14] sm:$0xf] %vm333, %v583
        %596 = vst.msk [vmem:[#allocation2 + $0x18] sm:$0xf] %vm333, %v584
        %597 = vst.msk [vmem:[#allocation2 + $0x1c] sm:$0xf] %vm333, %v585
        %598 = vst.msk [vmem:[#allocation2 + $0x20] sm:$0xf] %vm333, %v586
        %599 = vst.msk [vmem:[#allocation2 + $0x24] sm:$0xf] %vm333, %v587
        %600 = vst.msk [vmem:[#allocation2 + $0x28] sm:$0xf] %vm333, %v588
        %601 = vst.msk [vmem:[#allocation2 + $0x2c] sm:$0xf] %vm333, %v589
        %602 = vst.msk [vmem:[#allocation2 + $0x30] sm:$0xf] %vm333, %v590
        %603 = vst.msk [vmem:[#allocation2 + $0x34] sm:$0xf] %vm333, %v591
        %604 = vst.msk [vmem:[#allocation2 + $0x38] sm:$0xf] %vm333, %v592
        %605 = vst.msk [vmem:[#allocation2 + $0x3c] sm:$0xf] %vm333, %v593
        %v606 = vld [vmem:[%s330 + $0x30] sm:$0xf]
        %v607 = vld [vmem:[%s330 + $0x34] sm:$0xf]
        %v608 = vld [vmem:[%s330 + $0x38] sm:$0xf]
        %v609 = vld [vmem:[%s330 + $0x3c] sm:$0xf]
        %v610 = vld [vmem:[%s330 + $0x40] sm:$0xf]
        %v611 = vld [vmem:[%s330 + $0x44] sm:$0xf]
        %v612 = vld [vmem:[%s330 + $0x48] sm:$0xf]
        %v613 = vld [vmem:[%s330 + $0x4c] sm:$0xf]
        %v614 = vld [vmem:[%s330 + $0x50] sm:$0xf]
        %v615 = vld [vmem:[%s330 + $0x54] sm:$0xf]
        %v616 = vld [vmem:[%s330 + $0x58] sm:$0xf]
        %v617 = vld [vmem:[%s330 + $0x5c] sm:$0xf]
        %v618 = vld [vmem:[%s1] sm:$0xf]
        %v619 = vld [vmem:[%s1 + $0x4] sm:$0xf]
        %v620 = vld [vmem:[%s1 + $0x8] sm:$0xf]
        %v621 = vld [vmem:[%s1 + $0xc] sm:$0xf]
        %v622 = vld [vmem:[%s1 + $0x10] sm:$0xf]
        %v623 = vld [vmem:[%s1 + $0x14] sm:$0xf]
        %v624 = vld [vmem:[%s1 + $0x18] sm:$0xf]
        %v625 = vld [vmem:[%s1 + $0x1c] sm:$0xf]
        %v626 = vld [vmem:[%s1 + $0x20] sm:$0xf]
        %v627 = vld [vmem:[%s2] sm:$0x1]
        %v629 = vperm.slane %v627, 0
        %v643 = vunpack.c.l.b16 %v606
        %v644 = vunpack.c.l.b16 %v607
        %v645 = vunpack.c.l.b16 %v608
        %v646 = vunpack.c.l.b16 %v609
        %v647 = vunpack.c.l.b16 %v610
        %v648 = vunpack.c.l.b16 %v611
        %v649 = vunpack.c.l.b16 %v612
        %v650 = vunpack.c.l.b16 %v613
        %v651 = vunpack.c.l.b16 %v614
        %v652 = vunpack.c.l.b16 %v615
        %v653 = vunpack.c.l.b16 %v616
        %v654 = vunpack.c.l.b16 %v617
        %v655 = vpack.c.b16 %v644, %v643
        %v656 = vpack.c.b16 %v646, %v645
        %v657 = vpack.c.b16 %v648, %v647
        %v658 = vpack.c.b16 %v650, %v649
        %v659 = vpack.c.b16 %v652, %v651
        %v660 = vpack.c.b16 %v654, %v653
        %v670 = vunpack.c.l.b16 %v618
        %v671 = vunpack.c.l.b16 %v619
        %v672 = vunpack.c.l.b16 %v620
        %v673 = vunpack.c.l.b16 %v621
        %v674 = vunpack.c.l.b16 %v622
        %v675 = vunpack.c.l.b16 %v623
        %v676 = vunpack.c.l.b16 %v624
        %v677 = vunpack.c.l.b16 %v625
        %v678 = vunpack.c.l.b16 %v626
        %v679 = vpack.c.b16 %v671, %v670
        %v680 = vpack.c.b16 %v673, %v672
        %v681 = vpack.c.b16 %v675, %v674
        %v682 = vpack.c.b16 %v677, %v676
        %v683 = vpack.c.b16 %v678, %v678
        %v689 = vsel %vm424, %v655, 0
        %v692 = vsel %vm424, %v656, 0
        %v695 = vsel %vm424, %v657, 0
        %v698 = vsel %vm424, %v658, 0
        %v701 = vsel %vm424, %v659, 0
        %v704 = vsel %vm424, %v660, 0
        %v707 = vsel %vm443, %v683, 0
        %709 = vmatpush.bf16.msra.mxu0 0
        %710 = vmatpush.bf16.msra.mxu0 0
        %711 = vmatpush.bf16.msra.mxu0 0
        %712 = vmatpush.bf16.msra.mxu0 %v707
        %713 = vmatpush.bf16.msra.mxu0 %v682
        %714 = vmatpush.bf16.msra.mxu0 %v681
        %715 = vmatpush.bf16.msra.mxu0 %v680
        %716 = vmatpush.bf16.msra.mxu0 %v679
        %717 = vmatmul.bf16.gmra.mxu0 %v689
        %v718 = vpop.f32.mrf.mxu0
        %v719 = vadd.f32 %v629, %v718
        %v720 = vpop.f32.mrf.mxu0
        %v721 = vadd.f32 %v629, %v720
        %722 = vmatmul.bf16.gmra.mxu0 %v692
        %v723 = vpop.f32.mrf.mxu0
        %v724 = vadd.f32 %v629, %v723
        %v725 = vpop.f32.mrf.mxu0
        %v726 = vadd.f32 %v629, %v725
        %727 = vmatmul.bf16.gmra.mxu0 %v695
        %v728 = vpop.f32.mrf.mxu0
        %v729 = vadd.f32 %v629, %v728
        %v730 = vpop.f32.mrf.mxu0
        %v731 = vadd.f32 %v629, %v730
        %732 = vmatmul.bf16.gmra.mxu0 %v698
        %v733 = vpop.f32.mrf.mxu0
        %v734 = vadd.f32 %v629, %v733
        %v735 = vpop.f32.mrf.mxu0
        %v736 = vadd.f32 %v629, %v735
        %737 = vmatmul.bf16.gmra.mxu0 %v701
        %v738 = vpop.f32.mrf.mxu0
        %v739 = vadd.f32 %v629, %v738
        %v740 = vpop.f32.mrf.mxu0
        %v741 = vadd.f32 %v629, %v740
        %742 = vmatmul.bf16.gmra.mxu0 %v704
        %v743 = vpop.f32.mrf.mxu0
        %v744 = vadd.f32 %v629, %v743
        %v745 = vpop.f32.mrf.mxu0
        %v746 = vadd.f32 %v629, %v745
        %747 = vdwg.mxu0
        %v748 = vmax.f32 %v719, 0.0
        %v749 = vmax.f32 %v721, 0.0
        %v750 = vmax.f32 %v724, 0.0
        %v751 = vmax.f32 %v726, 0.0
        %v752 = vmax.f32 %v729, 0.0
        %v753 = vmax.f32 %v731, 0.0
        %v754 = vmax.f32 %v734, 0.0
        %v755 = vmax.f32 %v736, 0.0
        %v756 = vmax.f32 %v739, 0.0
        %v757 = vmax.f32 %v741, 0.0
        %v758 = vmax.f32 %v744, 0.0
        %v759 = vmax.f32 %v746, 0.0
        %v760 = vld [vmem:[%s7 + $0x60] sm:$0xff]
        %v761 = vld [vmem:[%s7 + $0x68] sm:$0xff]
        %v762 = vld [vmem:[%s7 + $0x70] sm:$0xff]
        %v763 = vld [vmem:[%s7 + $0x78] sm:$0xff]
        %v764 = vld [vmem:[%s7 + $0x80] sm:$0xff]
        %v765 = vld [vmem:[%s7 + $0x88] sm:$0xff]
        %v766 = vld [vmem:[%s7 + $0x90] sm:$0xff]
        %v767 = vld [vmem:[%s7 + $0x98] sm:$0xff]
        %v768 = vld [vmem:[%s7 + $0xa0] sm:$0xff]
        %v769 = vld [vmem:[%s7 + $0xa8] sm:$0xff]
        %v770 = vld [vmem:[%s7 + $0xb0] sm:$0xff]
        %v771 = vld [vmem:[%s7 + $0xb8] sm:$0xff]
        %773 = vset.pattern.permute.xlu0 0
        %774 = vperm.xlu0 %773, %v760
        %v775 = vpop.permute.xlu0 %774
        %778 = vset.pattern.permute.xlu0 0
        %779 = vperm.xlu0 %778, %v761
        %v780 = vpop.permute.xlu0 %779
        %783 = vset.pattern.permute.xlu0 0
        %784 = vperm.xlu0 %783, %v762
        %v785 = vpop.permute.xlu0 %784
        %788 = vset.pattern.permute.xlu0 0
        %789 = vperm.xlu0 %788, %v763
        %v790 = vpop.permute.xlu0 %789
        %793 = vset.pattern.permute.xlu0 0
        %794 = vperm.xlu0 %793, %v764
        %v795 = vpop.permute.xlu0 %794
        %798 = vset.pattern.permute.xlu0 0
        %799 = vperm.xlu0 %798, %v765
        %v800 = vpop.permute.xlu0 %799
        %803 = vset.pattern.permute.xlu0 0
        %804 = vperm.xlu0 %803, %v766
        %v805 = vpop.permute.xlu0 %804
        %808 = vset.pattern.permute.xlu0 0
        %809 = vperm.xlu0 %808, %v767
        %v810 = vpop.permute.xlu0 %809
        %813 = vset.pattern.permute.xlu0 0
        %814 = vperm.xlu0 %813, %v768
        %v815 = vpop.permute.xlu0 %814
        %818 = vset.pattern.permute.xlu0 0
        %819 = vperm.xlu0 %818, %v769
        %v820 = vpop.permute.xlu0 %819
        %823 = vset.pattern.permute.xlu0 0
        %824 = vperm.xlu0 %823, %v770
        %v825 = vpop.permute.xlu0 %824
        %828 = vset.pattern.permute.xlu0 0
        %829 = vperm.xlu0 %828, %v771
        %v830 = vpop.permute.xlu0 %829
        %v832 = vmul.f32 %v748, %v775
        %v833 = vmul.f32 %v749, %v780
        %v834 = vmul.f32 %v750, %v785
        %v835 = vmul.f32 %v751, %v790
        %v836 = vmul.f32 %v752, %v795
        %v837 = vmul.f32 %v753, %v800
        %v838 = vmul.f32 %v754, %v805
        %v839 = vmul.f32 %v755, %v810
        %v840 = vmul.f32 %v756, %v815
        %v841 = vmul.f32 %v757, %v820
        %v842 = vmul.f32 %v758, %v825
        %v843 = vmul.f32 %v759, %v830
        %v844 = vpack.c.bf16 %v832, %v832
        %v845 = vpack.c.bf16 %v833, %v833
        %v846 = vpack.c.bf16 %v834, %v834
        %v847 = vpack.c.bf16 %v835, %v835
        %v848 = vpack.c.bf16 %v836, %v836
        %v849 = vpack.c.bf16 %v837, %v837
        %v850 = vpack.c.bf16 %v838, %v838
        %v851 = vpack.c.bf16 %v839, %v839
        %v852 = vpack.c.bf16 %v840, %v840
        %v853 = vpack.c.bf16 %v841, %v841
        %v854 = vpack.c.bf16 %v842, %v842
        %v855 = vpack.c.bf16 %v843, %v843
        %856 = vst.msk [vmem:[#allocation2 + $0x40] sm:$0xf] %vm333, %v844
        %857 = vst.msk [vmem:[#allocation2 + $0x44] sm:$0xf] %vm333, %v845
        %858 = vst.msk [vmem:[#allocation2 + $0x48] sm:$0xf] %vm333, %v846
        %859 = vst.msk [vmem:[#allocation2 + $0x4c] sm:$0xf] %vm333, %v847
        %860 = vst.msk [vmem:[#allocation2 + $0x50] sm:$0xf] %vm333, %v848
        %861 = vst.msk [vmem:[#allocation2 + $0x54] sm:$0xf] %vm333, %v849
        %862 = vst.msk [vmem:[#allocation2 + $0x58] sm:$0xf] %vm333, %v850
        %863 = vst.msk [vmem:[#allocation2 + $0x5c] sm:$0xf] %vm333, %v851
        %864 = vst.msk [vmem:[#allocation2 + $0x60] sm:$0xf] %vm333, %v852
        %865 = vst.msk [vmem:[#allocation2 + $0x64] sm:$0xf] %vm333, %v853
        %866 = vst.msk [vmem:[#allocation2 + $0x68] sm:$0xf] %vm333, %v854
        %867 = vst.msk [vmem:[#allocation2 + $0x6c] sm:$0xf] %vm333, %v855
        %v868 = vld [vmem:[%s330 + $0x60] sm:$0xf]
        %v869 = vld [vmem:[%s330 + $0x64] sm:$0xf]
        %v870 = vld [vmem:[%s330 + $0x68] sm:$0xf]
        %v871 = vld [vmem:[%s330 + $0x6c] sm:$0xf]
        %v872 = vld [vmem:[%s330 + $0x70] sm:$0xf]
        %v873 = vld [vmem:[%s330 + $0x74] sm:$0xf]
        %v874 = vld [vmem:[%s330 + $0x78] sm:$0xf]
        %v875 = vld [vmem:[%s330 + $0x7c] sm:$0xf]
        %v876 = vld [vmem:[%s330 + $0x80] sm:$0xf]
        %v877 = vld [vmem:[%s330 + $0x84] sm:$0xf]
        %v878 = vld [vmem:[%s330 + $0x88] sm:$0xf]
        %v879 = vld [vmem:[%s330 + $0x8c] sm:$0xf]
        %v880 = vld [vmem:[%s1] sm:$0xf]
        %v881 = vld [vmem:[%s1 + $0x4] sm:$0xf]
        %v882 = vld [vmem:[%s1 + $0x8] sm:$0xf]
        %v883 = vld [vmem:[%s1 + $0xc] sm:$0xf]
        %v884 = vld [vmem:[%s1 + $0x10] sm:$0xf]
        %v885 = vld [vmem:[%s1 + $0x14] sm:$0xf]
        %v886 = vld [vmem:[%s1 + $0x18] sm:$0xf]
        %v887 = vld [vmem:[%s1 + $0x1c] sm:$0xf]
        %v888 = vld [vmem:[%s1 + $0x20] sm:$0xf]
        %v889 = vld [vmem:[%s2] sm:$0x1]
        %v891 = vperm.slane %v889, 0
        %v905 = vunpack.c.l.b16 %v868
        %v906 = vunpack.c.l.b16 %v869
        %v907 = vunpack.c.l.b16 %v870
        %v908 = vunpack.c.l.b16 %v871
        %v909 = vunpack.c.l.b16 %v872
        %v910 = vunpack.c.l.b16 %v873
        %v911 = vunpack.c.l.b16 %v874
        %v912 = vunpack.c.l.b16 %v875
        %v913 = vunpack.c.l.b16 %v876
        %v914 = vunpack.c.l.b16 %v877
        %v915 = vunpack.c.l.b16 %v878
        %v916 = vunpack.c.l.b16 %v879
        %v917 = vpack.c.b16 %v906, %v905
        %v918 = vpack.c.b16 %v908, %v907
        %v919 = vpack.c.b16 %v910, %v909
        %v920 = vpack.c.b16 %v912, %v911
        %v921 = vpack.c.b16 %v914, %v913
        %v922 = vpack.c.b16 %v916, %v915
        %v932 = vunpack.c.l.b16 %v880
        %v933 = vunpack.c.l.b16 %v881
        %v934 = vunpack.c.l.b16 %v882
        %v935 = vunpack.c.l.b16 %v883
        %v936 = vunpack.c.l.b16 %v884
        %v937 = vunpack.c.l.b16 %v885
        %v938 = vunpack.c.l.b16 %v886
        %v939 = vunpack.c.l.b16 %v887
        %v940 = vunpack.c.l.b16 %v888
        %v941 = vpack.c.b16 %v933, %v932
        %v942 = vpack.c.b16 %v935, %v934
        %v943 = vpack.c.b16 %v937, %v936
        %v944 = vpack.c.b16 %v939, %v938
        %v945 = vpack.c.b16 %v940, %v940
        %v951 = vsel %vm424, %v917, 0
        %v954 = vsel %vm424, %v918, 0
        %v957 = vsel %vm424, %v919, 0
        %v960 = vsel %vm424, %v920, 0
        %v963 = vsel %vm424, %v921, 0
        %v966 = vsel %vm424, %v922, 0
        %v969 = vsel %vm443, %v945, 0
        %971 = vmatpush.bf16.msra.mxu0 0
        %972 = vmatpush.bf16.msra.mxu0 0
        %973 = vmatpush.bf16.msra.mxu0 0
        %974 = vmatpush.bf16.msra.mxu0 %v969
        %975 = vmatpush.bf16.msra.mxu0 %v944
        %976 = vmatpush.bf16.msra.mxu0 %v943
        %977 = vmatpush.bf16.msra.mxu0 %v942
        %978 = vmatpush.bf16.msra.mxu0 %v941
        %979 = vmatmul.bf16.gmra.mxu0 %v951
        %v980 = vpop.f32.mrf.mxu0
        %v981 = vadd.f32 %v891, %v980
        %v982 = vpop.f32.mrf.mxu0
        %v983 = vadd.f32 %v891, %v982
        %984 = vmatmul.bf16.gmra.mxu0 %v954
        %v985 = vpop.f32.mrf.mxu0
        %v986 = vadd.f32 %v891, %v985
        %v987 = vpop.f32.mrf.mxu0
        %v988 = vadd.f32 %v891, %v987
        %989 = vmatmul.bf16.gmra.mxu0 %v957
        %v990 = vpop.f32.mrf.mxu0
        %v991 = vadd.f32 %v891, %v990
        %v992 = vpop.f32.mrf.mxu0
        %v993 = vadd.f32 %v891, %v992
        %994 = vmatmul.bf16.gmra.mxu0 %v960
        %v995 = vpop.f32.mrf.mxu0
        %v996 = vadd.f32 %v891, %v995
        %v997 = vpop.f32.mrf.mxu0
        %v998 = vadd.f32 %v891, %v997
        %999 = vmatmul.bf16.gmra.mxu0 %v963
        %v1000 = vpop.f32.mrf.mxu0
        %v1001 = vadd.f32 %v891, %v1000
        %v1002 = vpop.f32.mrf.mxu0
        %v1003 = vadd.f32 %v891, %v1002
        %1004 = vmatmul.bf16.gmra.mxu0 %v966
        %v1005 = vpop.f32.mrf.mxu0
        %v1006 = vadd.f32 %v891, %v1005
        %v1007 = vpop.f32.mrf.mxu0
        %v1008 = vadd.f32 %v891, %v1007
        %1009 = vdwg.mxu0
        %v1010 = vmax.f32 %v981, 0.0
        %v1011 = vmax.f32 %v983, 0.0
        %v1012 = vmax.f32 %v986, 0.0
        %v1013 = vmax.f32 %v988, 0.0
        %v1014 = vmax.f32 %v991, 0.0
        %v1015 = vmax.f32 %v993, 0.0
        %v1016 = vmax.f32 %v996, 0.0
        %v1017 = vmax.f32 %v998, 0.0
        %v1018 = vmax.f32 %v1001, 0.0
        %v1019 = vmax.f32 %v1003, 0.0
        %v1020 = vmax.f32 %v1006, 0.0
        %v1021 = vmax.f32 %v1008, 0.0
        %v1022 = vld [vmem:[%s7 + $0xc0] sm:$0xff]
        %v1023 = vld [vmem:[%s7 + $0xc8] sm:$0xff]
        %v1024 = vld [vmem:[%s7 + $0xd0] sm:$0xff]
        %v1025 = vld [vmem:[%s7 + $0xd8] sm:$0xff]
        %v1026 = vld [vmem:[%s7 + $0xe0] sm:$0xff]
        %v1027 = vld [vmem:[%s7 + $0xe8] sm:$0xff]
        %v1028 = vld [vmem:[%s7 + $0xf0] sm:$0xff]
        %v1029 = vld [vmem:[%s7 + $0xf8] sm:$0xff]
        %v1030 = vld [vmem:[%s7 + $0x100] sm:$0xff]
        %v1031 = vld [vmem:[%s7 + $0x108] sm:$0xff]
        %v1032 = vld [vmem:[%s7 + $0x110] sm:$0xff]
        %v1033 = vld [vmem:[%s7 + $0x118] sm:$0xff]
        %1035 = vset.pattern.permute.xlu0 0
        %1036 = vperm.xlu0 %1035, %v1022
        %v1037 = vpop.permute.xlu0 %1036
        %1040 = vset.pattern.permute.xlu0 0
        %1041 = vperm.xlu0 %1040, %v1023
        %v1042 = vpop.permute.xlu0 %1041
        %1045 = vset.pattern.permute.xlu0 0
        %1046 = vperm.xlu0 %1045, %v1024
        %v1047 = vpop.permute.xlu0 %1046
        %1050 = vset.pattern.permute.xlu0 0
        %1051 = vperm.xlu0 %1050, %v1025
        %v1052 = vpop.permute.xlu0 %1051
        %1055 = vset.pattern.permute.xlu0 0
        %1056 = vperm.xlu0 %1055, %v1026
        %v1057 = vpop.permute.xlu0 %1056
        %1060 = vset.pattern.permute.xlu0 0
        %1061 = vperm.xlu0 %1060, %v1027
        %v1062 = vpop.permute.xlu0 %1061
        %1065 = vset.pattern.permute.xlu0 0
        %1066 = vperm.xlu0 %1065, %v1028
        %v1067 = vpop.permute.xlu0 %1066
        %1070 = vset.pattern.permute.xlu0 0
        %1071 = vperm.xlu0 %1070, %v1029
        %v1072 = vpop.permute.xlu0 %1071
        %1075 = vset.pattern.permute.xlu0 0
        %1076 = vperm.xlu0 %1075, %v1030
        %v1077 = vpop.permute.xlu0 %1076
        %1080 = vset.pattern.permute.xlu0 0
        %1081 = vperm.xlu0 %1080, %v1031
        %v1082 = vpop.permute.xlu0 %1081
        %1085 = vset.pattern.permute.xlu0 0
        %1086 = vperm.xlu0 %1085, %v1032
        %v1087 = vpop.permute.xlu0 %1086
        %1090 = vset.pattern.permute.xlu0 0
        %1091 = vperm.xlu0 %1090, %v1033
        %v1092 = vpop.permute.xlu0 %1091
        %v1094 = vmul.f32 %v1010, %v1037
        %v1095 = vmul.f32 %v1011, %v1042
        %v1096 = vmul.f32 %v1012, %v1047
        %v1097 = vmul.f32 %v1013, %v1052
        %v1098 = vmul.f32 %v1014, %v1057
        %v1099 = vmul.f32 %v1015, %v1062
        %v1100 = vmul.f32 %v1016, %v1067
        %v1101 = vmul.f32 %v1017, %v1072
        %v1102 = vmul.f32 %v1018, %v1077
        %v1103 = vmul.f32 %v1019, %v1082
        %v1104 = vmul.f32 %v1020, %v1087
        %v1105 = vmul.f32 %v1021, %v1092
        %v1106 = vpack.c.bf16 %v1094, %v1094
        %v1107 = vpack.c.bf16 %v1095, %v1095
        %v1108 = vpack.c.bf16 %v1096, %v1096
        %v1109 = vpack.c.bf16 %v1097, %v1097
        %v1110 = vpack.c.bf16 %v1098, %v1098
        %v1111 = vpack.c.bf16 %v1099, %v1099
        %v1112 = vpack.c.bf16 %v1100, %v1100
        %v1113 = vpack.c.bf16 %v1101, %v1101
        %v1114 = vpack.c.bf16 %v1102, %v1102
        %v1115 = vpack.c.bf16 %v1103, %v1103
        %v1116 = vpack.c.bf16 %v1104, %v1104
        %v1117 = vpack.c.bf16 %v1105, %v1105
        %1118 = vst.msk [vmem:[#allocation2 + $0x70] sm:$0xf] %vm333, %v1106
        %1119 = vst.msk [vmem:[#allocation2 + $0x74] sm:$0xf] %vm333, %v1107
        %1120 = vst.msk [vmem:[#allocation2 + $0x78] sm:$0xf] %vm333, %v1108
        %1121 = vst.msk [vmem:[#allocation2 + $0x7c] sm:$0xf] %vm333, %v1109
        %1122 = vst.msk [vmem:[#allocation2 + $0x80] sm:$0xf] %vm333, %v1110
        %1123 = vst.msk [vmem:[#allocation2 + $0x84] sm:$0xf] %vm333, %v1111
        %1124 = vst.msk [vmem:[#allocation2 + $0x88] sm:$0xf] %vm333, %v1112
        %1125 = vst.msk [vmem:[#allocation2 + $0x8c] sm:$0xf] %vm333, %v1113
        %1126 = vst.msk [vmem:[#allocation2 + $0x90] sm:$0xf] %vm333, %v1114
        %1127 = vst.msk [vmem:[#allocation2 + $0x94] sm:$0xf] %vm333, %v1115
        %1128 = vst.msk [vmem:[#allocation2 + $0x98] sm:$0xf] %vm333, %v1116
        %1129 = vst.msk [vmem:[#allocation2 + $0x9c] sm:$0xf] %vm333, %v1117
        %v1130 = vld [vmem:[#allocation2 + $0x4] sm:$0xc]
        %v1131 = vld [vmem:[#allocation2 + $0x8] sm:$0xf]
        %v1132 = vld [vmem:[#allocation2 + $0xc] sm:$0xf]
        %v1133 = vld [vmem:[#allocation2 + $0x10] sm:$0xf]
        %v1134 = vld [vmem:[#allocation2 + $0x14] sm:$0xf]
        %v1135 = vld [vmem:[#allocation2 + $0x18] sm:$0xf]
        %v1136 = vld [vmem:[#allocation2 + $0x1c] sm:$0xf]
        %v1137 = vld [vmem:[#allocation2 + $0x20] sm:$0xf]
        %v1138 = vld [vmem:[#allocation2 + $0x24] sm:$0xf]
        %v1139 = vld [vmem:[#allocation2 + $0x28] sm:$0xf]
        %v1140 = vld [vmem:[#allocation2 + $0x2c] sm:$0xf]
        %v1141 = vld [vmem:[#allocation2 + $0x30] sm:$0xf]
        %v1142 = vld [vmem:[#allocation2 + $0x34] sm:$0x7]
        %v1143 = vld [vmem:[%s3] sm:$0xf]
        %v1144 = vld [vmem:[%s3 + $0x4] sm:$0xf]
        %v1145 = vld [vmem:[%s3 + $0x8] sm:$0xf]
        %v1146 = vld [vmem:[%s3 + $0xc] sm:$0xf]
        %v1147 = vld [vmem:[#allocation2 + $0x4] sm:$0x8]
        %s1148 = scalar_lea.vmem %s3, 16
        %v1149 = vld [vmem:[%s1148] sm:$0xf]
        %v1150 = vld [vmem:[%s1148 + $0x4] sm:$0xf]
        %v1151 = vld [vmem:[%s1148 + $0x8] sm:$0xf]
        %v1152 = vld [vmem:[%s1148 + $0xc] sm:$0xf]
        %v1166 = vunpack.c.l.b16 %v1147
        %v1167 = vunpack.c.l.b16 %v1131
        %v1168 = vunpack.c.l.b16 %v1132
        %v1169 = vunpack.c.l.b16 %v1133
        %v1170 = vunpack.c.l.b16 %v1134
        %v1171 = vunpack.c.l.b16 %v1135
        %v1172 = vunpack.c.l.b16 %v1136
        %v1173 = vunpack.c.l.b16 %v1137
        %v1174 = vunpack.c.l.b16 %v1138
        %v1175 = vunpack.c.l.b16 %v1139
        %v1176 = vunpack.c.l.b16 %v1140
        %v1177 = vunpack.c.l.b16 %v1141
        %v1178 = vunpack.c.l.b16 %v1142
        %v1179 = vpack.c.b16 %v1167, %v1166
        %v1180 = vpack.c.b16 %v1169, %v1168
        %v1181 = vpack.c.b16 %v1171, %v1170
        %v1182 = vpack.c.b16 %v1173, %v1172
        %v1183 = vpack.c.b16 %v1175, %v1174
        %v1184 = vpack.c.b16 %v1177, %v1176
        %v1185 = vpack.c.b16 %v1178, %v1178
        %vm1186 = vcmask 1044480
        %v1187 = vrot.slane %v1179, 3
        %v1188 = vrot.slane %v1180, 3
        %v1189 = vsel %vm1186, %v1187, %v1188
        %v1190 = vrot.slane %v1181, 3
        %v1191 = vsel %vm1186, %v1188, %v1190
        %v1192 = vrot.slane %v1182, 3
        %v1193 = vsel %vm1186, %v1190, %v1192
        %v1194 = vrot.slane %v1183, 3
        %v1195 = vsel %vm1186, %v1192, %v1194
        %v1196 = vrot.slane %v1184, 3
        %v1197 = vsel %vm1186, %v1194, %v1196
        %v1198 = vrot.slane %v1185, 3
        %v1199 = vsel %vm1186, %v1196, %v1198
        %v1204 = vunpack.c.l.b16 %v1149
        %v1205 = vunpack.c.l.b16 %v1150
        %v1206 = vunpack.c.l.b16 %v1151
        %v1207 = vunpack.c.l.b16 %v1152
        %v1208 = vpack.c.b16 %v1205, %v1204
        %v1209 = vpack.c.b16 %v1207, %v1206
        %vm1212 = vcmask 261120
        %v1214 = vsel %vm1212, %v1189, 0
        %v1217 = vsel %vm1212, %v1191, 0
        %v1220 = vsel %vm1212, %v1193, 0
        %v1223 = vsel %vm1212, %v1195, 0
        %v1226 = vsel %vm1212, %v1197, 0
        %v1229 = vsel %vm1212, %v1199, 0
        %1231 = vmatpush.bf16.msra.mxu0 0
        %1232 = vmatpush.bf16.msra.mxu0 0
        %1233 = vmatpush.bf16.msra.mxu0 0
        %1234 = vmatpush.bf16.msra.mxu0 0
        %1235 = vmatpush.bf16.msra.mxu0 0
        %1236 = vmatpush.bf16.msra.mxu0 0
        %1237 = vmatpush.bf16.msra.mxu0 %v1209
        %1238 = vmatpush.bf16.msra.mxu0 %v1208
        %1239 = vmatmul.bf16.gmra.mxu0 %v1214
        %v1240 = vpop.f32.mrf.mxu0
        %v1241 = vadd.f32 0.0, %v1240
        %v1242 = vpop.f32.mrf.mxu0
        %v1243 = vadd.f32 0.0, %v1242
        %1244 = vmatmul.bf16.gmra.mxu0 %v1217
        %v1245 = vpop.f32.mrf.mxu0
        %v1246 = vadd.f32 0.0, %v1245
        %v1247 = vpop.f32.mrf.mxu0
        %v1248 = vadd.f32 0.0, %v1247
        %1249 = vmatmul.bf16.gmra.mxu0 %v1220
        %v1250 = vpop.f32.mrf.mxu0
        %v1251 = vadd.f32 0.0, %v1250
        %v1252 = vpop.f32.mrf.mxu0
        %v1253 = vadd.f32 0.0, %v1252
        %1254 = vmatmul.bf16.gmra.mxu0 %v1223
        %v1255 = vpop.f32.mrf.mxu0
        %v1256 = vadd.f32 0.0, %v1255
        %v1257 = vpop.f32.mrf.mxu0
        %v1258 = vadd.f32 0.0, %v1257
        %1259 = vmatmul.bf16.gmra.mxu0 %v1226
        %v1260 = vpop.f32.mrf.mxu0
        %v1261 = vadd.f32 0.0, %v1260
        %v1262 = vpop.f32.mrf.mxu0
        %v1263 = vadd.f32 0.0, %v1262
        %1264 = vmatmul.bf16.gmra.mxu0 %v1229
        %v1265 = vpop.f32.mrf.mxu0
        %v1266 = vadd.f32 0.0, %v1265
        %v1267 = vpop.f32.mrf.mxu0
        %v1268 = vadd.f32 0.0, %v1267
        %1269 = vdwg.mxu0
        %v1271 = vunpack.c.l.b16 %v1130
        %v1272 = vpack.c.b16 %v1167, %v1271
        %vm1273 = vsmask.f32 5376
        %v1275 = vshrl.u32 %v1272, 16
        %v1277 = vrot.slane %v1275, 2
        %v1278 = vshll.u32 %v1272, 16
        %v1280 = vrot.slane %v1278, 3
        %v1281 = vor.u32 %v1277, %v1280
        %v1283 = vshrl.u32 %v1180, 16
        %v1285 = vrot.slane %v1283, 2
        %v1286 = vshll.u32 %v1180, 16
        %v1288 = vrot.slane %v1286, 3
        %v1289 = vor.u32 %v1285, %v1288
        %v1290 = vsel %vm1273, %v1281, %v1289
        %v1292 = vshrl.u32 %v1181, 16
        %v1294 = vrot.slane %v1292, 2
        %v1295 = vshll.u32 %v1181, 16
        %v1297 = vrot.slane %v1295, 3
        %v1298 = vor.u32 %v1294, %v1297
        %v1299 = vsel %vm1273, %v1289, %v1298
        %v1301 = vshrl.u32 %v1182, 16
        %v1303 = vrot.slane %v1301, 2
        %v1304 = vshll.u32 %v1182, 16
        %v1306 = vrot.slane %v1304, 3
        %v1307 = vor.u32 %v1303, %v1306
        %v1308 = vsel %vm1273, %v1298, %v1307
        %v1310 = vshrl.u32 %v1183, 16
        %v1312 = vrot.slane %v1310, 2
        %v1313 = vshll.u32 %v1183, 16
        %v1315 = vrot.slane %v1313, 3
        %v1316 = vor.u32 %v1312, %v1315
        %v1317 = vsel %vm1273, %v1307, %v1316
        %v1319 = vshrl.u32 %v1184, 16
        %v1321 = vrot.slane %v1319, 2
        %v1322 = vshll.u32 %v1184, 16
        %v1324 = vrot.slane %v1322, 3
        %v1325 = vor.u32 %v1321, %v1324
        %v1326 = vsel %vm1273, %v1316, %v1325
        %v1328 = vshrl.u32 %v1185, 16
        %v1330 = vrot.slane %v1328, 2
        %v1331 = vshll.u32 %v1185, 16
        %v1333 = vrot.slane %v1331, 3
        %v1334 = vor.u32 %v1330, %v1333
        %v1335 = vsel %vm1273, %v1325, %v1334
        %v1340 = vunpack.c.l.b16 %v1143
        %v1341 = vunpack.c.l.b16 %v1144
        %v1342 = vunpack.c.l.b16 %v1145
        %v1343 = vunpack.c.l.b16 %v1146
        %v1344 = vpack.c.b16 %v1341, %v1340
        %v1345 = vpack.c.b16 %v1343, %v1342
        %v1349 = vsel %vm1212, %v1290, 0
        %v1352 = vsel %vm1212, %v1299, 0
        %v1355 = vsel %vm1212, %v1308, 0
        %v1358 = vsel %vm1212, %v1317, 0
        %v1361 = vsel %vm1212, %v1326, 0
        %v1364 = vsel %vm1212, %v1335, 0
        %1366 = vmatpush.bf16.msra.mxu0 0
        %1367 = vmatpush.bf16.msra.mxu0 0
        %1368 = vmatpush.bf16.msra.mxu0 0
        %1369 = vmatpush.bf16.msra.mxu0 0
        %1370 = vmatpush.bf16.msra.mxu0 0
        %1371 = vmatpush.bf16.msra.mxu0 0
        %1372 = vmatpush.bf16.msra.mxu0 %v1345
        %1373 = vmatpush.bf16.msra.mxu0 %v1344
        %1374 = vmatmul.bf16.gmra.mxu0 %v1349
        %v1375 = vpop.f32.mrf.mxu0
        %v1376 = vadd.f32 %v1241, %v1375
        %v1377 = vpop.f32.mrf.mxu0
        %v1378 = vadd.f32 %v1243, %v1377
        %1379 = vmatmul.bf16.gmra.mxu0 %v1352
        %v1380 = vpop.f32.mrf.mxu0
        %v1381 = vadd.f32 %v1246, %v1380
        %v1382 = vpop.f32.mrf.mxu0
        %v1383 = vadd.f32 %v1248, %v1382
        %1384 = vmatmul.bf16.gmra.mxu0 %v1355
        %v1385 = vpop.f32.mrf.mxu0
        %v1386 = vadd.f32 %v1251, %v1385
        %v1387 = vpop.f32.mrf.mxu0
        %v1388 = vadd.f32 %v1253, %v1387
        %1389 = vmatmul.bf16.gmra.mxu0 %v1358
        %v1390 = vpop.f32.mrf.mxu0
        %v1391 = vadd.f32 %v1256, %v1390
        %v1392 = vpop.f32.mrf.mxu0
        %v1393 = vadd.f32 %v1258, %v1392
        %1394 = vmatmul.bf16.gmra.mxu0 %v1361
        %v1395 = vpop.f32.mrf.mxu0
        %v1396 = vadd.f32 %v1261, %v1395
        %v1397 = vpop.f32.mrf.mxu0
        %v1398 = vadd.f32 %v1263, %v1397
        %1399 = vmatmul.bf16.gmra.mxu0 %v1364
        %v1400 = vpop.f32.mrf.mxu0
        %v1401 = vadd.f32 %v1266, %v1400
        %v1402 = vpop.f32.mrf.mxu0
        %v1403 = vadd.f32 %v1268, %v1402
        %1404 = vdwg.mxu0
        %v1405 = vld [vmem:[#allocation2 + $0x34] sm:$0xf]
        %s1406 = scalar_lea.vmem %s3, 32
        %v1407 = vld [vmem:[%s1406] sm:$0xf]
        %v1408 = vld [vmem:[%s1406 + $0x4] sm:$0xf]
        %v1409 = vld [vmem:[%s1406 + $0x8] sm:$0xf]
        %v1410 = vld [vmem:[%s1406 + $0xc] sm:$0xf]
        %v1412 = vunpack.c.l.b16 %v1405
        %v1413 = vpack.c.b16 %v1412, %v1412
        %vm1414 = vsmask.f32 4352
        %v1416 = vshrl.u32 %v1179, 16
        %v1418 = vrot.slane %v1416, 3
        %v1419 = vshll.u32 %v1179, 16
        %v1421 = vrot.slane %v1419, 4
        %v1422 = vor.u32 %v1418, %v1421
        %v1423 = vrot.slane %v1283, 3
        %v1424 = vrot.slane %v1286, 4
        %v1425 = vor.u32 %v1423, %v1424
        %v1426 = vsel %vm1414, %v1422, %v1425
        %v1427 = vrot.slane %v1292, 3
        %v1428 = vrot.slane %v1295, 4
        %v1429 = vor.u32 %v1427, %v1428
        %v1430 = vsel %vm1414, %v1425, %v1429
        %v1431 = vrot.slane %v1301, 3
        %v1432 = vrot.slane %v1304, 4
        %v1433 = vor.u32 %v1431, %v1432
        %v1434 = vsel %vm1414, %v1429, %v1433
        %v1435 = vrot.slane %v1310, 3
        %v1436 = vrot.slane %v1313, 4
        %v1437 = vor.u32 %v1435, %v1436
        %v1438 = vsel %vm1414, %v1433, %v1437
        %v1439 = vrot.slane %v1319, 3
        %v1440 = vrot.slane %v1322, 4
        %v1441 = vor.u32 %v1439, %v1440
        %v1442 = vsel %vm1414, %v1437, %v1441
        %v1444 = vshrl.u32 %v1413, 16
        %v1446 = vrot.slane %v1444, 3
        %v1447 = vshll.u32 %v1413, 16
        %v1449 = vrot.slane %v1447, 4
        %v1450 = vor.u32 %v1446, %v1449
        %v1451 = vsel %vm1414, %v1441, %v1450
        %v1456 = vunpack.c.l.b16 %v1407
        %v1457 = vunpack.c.l.b16 %v1408
        %v1458 = vunpack.c.l.b16 %v1409
        %v1459 = vunpack.c.l.b16 %v1410
        %v1460 = vpack.c.b16 %v1457, %v1456
        %v1461 = vpack.c.b16 %v1459, %v1458
        %v1465 = vsel %vm1212, %v1426, 0
        %v1468 = vsel %vm1212, %v1430, 0
        %v1471 = vsel %vm1212, %v1434, 0
        %v1474 = vsel %vm1212, %v1438, 0
        %v1477 = vsel %vm1212, %v1442, 0
        %v1480 = vsel %vm1212, %v1451, 0
        %1482 = vmatpush.bf16.msra.mxu0 0
        %1483 = vmatpush.bf16.msra.mxu0 0
        %1484 = vmatpush.bf16.msra.mxu0 0
        %1485 = vmatpush.bf16.msra.mxu0 0
        %1486 = vmatpush.bf16.msra.mxu0 0
        %1487 = vmatpush.bf16.msra.mxu0 0
        %1488 = vmatpush.bf16.msra.mxu0 %v1461
        %1489 = vmatpush.bf16.msra.mxu0 %v1460
        %1490 = vmatmul.bf16.gmra.mxu0 %v1465
        %v1491 = vpop.f32.mrf.mxu0
        %v1492 = vadd.f32 0.0, %v1491
        %v1493 = vpop.f32.mrf.mxu0
        %v1494 = vadd.f32 0.0, %v1493
        %1495 = vmatmul.bf16.gmra.mxu0 %v1468
        %v1496 = vpop.f32.mrf.mxu0
        %v1497 = vadd.f32 0.0, %v1496
        %v1498 = vpop.f32.mrf.mxu0
        %v1499 = vadd.f32 0.0, %v1498
        %1500 = vmatmul.bf16.gmra.mxu0 %v1471
        %v1501 = vpop.f32.mrf.mxu0
        %v1502 = vadd.f32 0.0, %v1501
        %v1503 = vpop.f32.mrf.mxu0
        %v1504 = vadd.f32 0.0, %v1503
        %1505 = vmatmul.bf16.gmra.mxu0 %v1474
        %v1506 = vpop.f32.mrf.mxu0
        %v1507 = vadd.f32 0.0, %v1506
        %v1508 = vpop.f32.mrf.mxu0
        %v1509 = vadd.f32 0.0, %v1508
        %1510 = vmatmul.bf16.gmra.mxu0 %v1477
        %v1511 = vpop.f32.mrf.mxu0
        %v1512 = vadd.f32 0.0, %v1511
        %v1513 = vpop.f32.mrf.mxu0
        %v1514 = vadd.f32 0.0, %v1513
        %1515 = vmatmul.bf16.gmra.mxu0 %v1480
        %v1516 = vpop.f32.mrf.mxu0
        %v1517 = vadd.f32 0.0, %v1516
        %v1518 = vpop.f32.mrf.mxu0
        %v1519 = vadd.f32 0.0, %v1518
        %1520 = vdwg.mxu0
        %v1521 = vadd.f32 %v1376, %v1492
        %v1522 = vadd.f32 %v1378, %v1494
        %v1523 = vadd.f32 %v1381, %v1497
        %v1524 = vadd.f32 %v1383, %v1499
        %v1525 = vadd.f32 %v1386, %v1502
        %v1526 = vadd.f32 %v1388, %v1504
        %v1527 = vadd.f32 %v1391, %v1507
        %v1528 = vadd.f32 %v1393, %v1509
        %v1529 = vadd.f32 %v1396, %v1512
        %v1530 = vadd.f32 %v1398, %v1514
        %v1531 = vadd.f32 %v1401, %v1517
        %v1532 = vadd.f32 %v1403, %v1519
        %v1533 = vld [vmem:[#allocation2 + $0xc] sm:$0x8]
        %v1534 = vld [vmem:[#allocation2 + $0x10] sm:$0xf]
        %v1535 = vld [vmem:[#allocation2 + $0x14] sm:$0xf]
        %v1536 = vld [vmem:[#allocation2 + $0x18] sm:$0xf]
        %v1537 = vld [vmem:[#allocation2 + $0x1c] sm:$0xf]
        %v1538 = vld [vmem:[#allocation2 + $0x20] sm:$0xf]
        %v1539 = vld [vmem:[#allocation2 + $0x24] sm:$0xf]
        %v1540 = vld [vmem:[#allocation2 + $0x28] sm:$0xf]
        %v1541 = vld [vmem:[#allocation2 + $0x2c] sm:$0xf]
        %v1542 = vld [vmem:[#allocation2 + $0x30] sm:$0xf]
        %v1543 = vld [vmem:[#allocation2 + $0x34] sm:$0xf]
        %v1544 = vld [vmem:[#allocation2 + $0x38] sm:$0xf]
        %v1545 = vld [vmem:[#allocation2 + $0x3c] sm:$0xf]
        %s1546 = scalar_lea.vmem %s3, 48
        %v1547 = vld [vmem:[%s1546] sm:$0xf]
        %v1548 = vld [vmem:[%s1546 + $0x4] sm:$0xf]
        %v1549 = vld [vmem:[%s1546 + $0x8] sm:$0xf]
        %v1550 = vld [vmem:[%s1546 + $0xc] sm:$0xf]
        %v1564 = vunpack.c.l.b16 %v1533
        %v1565 = vunpack.c.l.b16 %v1534
        %v1566 = vunpack.c.l.b16 %v1535
        %v1567 = vunpack.c.l.b16 %v1536
        %v1568 = vunpack.c.l.b16 %v1537
        %v1569 = vunpack.c.l.b16 %v1538
        %v1570 = vunpack.c.l.b16 %v1539
        %v1571 = vunpack.c.l.b16 %v1540
        %v1572 = vunpack.c.l.b16 %v1541
        %v1573 = vunpack.c.l.b16 %v1542
        %v1574 = vunpack.c.l.b16 %v1543
        %v1575 = vunpack.c.l.b16 %v1544
        %v1576 = vunpack.c.l.b16 %v1545
        %v1577 = vpack.c.b16 %v1565, %v1564
        %v1578 = vpack.c.b16 %v1567, %v1566
        %v1579 = vpack.c.b16 %v1569, %v1568
        %v1580 = vpack.c.b16 %v1571, %v1570
        %v1581 = vpack.c.b16 %v1573, %v1572
        %v1582 = vpack.c.b16 %v1575, %v1574
        %v1583 = vpack.c.b16 %v1576, %v1576
        %v1585 = vshrl.u32 %v1577, 16
        %v1587 = vrot.slane %v1585, 3
        %v1588 = vshll.u32 %v1577, 16
        %v1590 = vrot.slane %v1588, 4
        %v1591 = vor.u32 %v1587, %v1590
        %v1593 = vshrl.u32 %v1578, 16
        %v1595 = vrot.slane %v1593, 3
        %v1596 = vshll.u32 %v1578, 16
        %v1598 = vrot.slane %v1596, 4
        %v1599 = vor.u32 %v1595, %v1598
        %v1600 = vsel %vm1414, %v1591, %v1599
        %v1602 = vshrl.u32 %v1579, 16
        %v1604 = vrot.slane %v1602, 3
        %v1605 = vshll.u32 %v1579, 16
        %v1607 = vrot.slane %v1605, 4
        %v1608 = vor.u32 %v1604, %v1607
        %v1609 = vsel %vm1414, %v1599, %v1608
        %v1611 = vshrl.u32 %v1580, 16
        %v1613 = vrot.slane %v1611, 3
        %v1614 = vshll.u32 %v1580, 16
        %v1616 = vrot.slane %v1614, 4
        %v1617 = vor.u32 %v1613, %v1616
        %v1618 = vsel %vm1414, %v1608, %v1617
        %v1620 = vshrl.u32 %v1581, 16
        %v1622 = vrot.slane %v1620, 3
        %v1623 = vshll.u32 %v1581, 16
        %v1625 = vrot.slane %v1623, 4
        %v1626 = vor.u32 %v1622, %v1625
        %v1627 = vsel %vm1414, %v1617, %v1626
        %v1629 = vshrl.u32 %v1582, 16
        %v1631 = vrot.slane %v1629, 3
        %v1632 = vshll.u32 %v1582, 16
        %v1634 = vrot.slane %v1632, 4
        %v1635 = vor.u32 %v1631, %v1634
        %v1636 = vsel %vm1414, %v1626, %v1635
        %v1638 = vshrl.u32 %v1583, 16
        %v1640 = vrot.slane %v1638, 3
        %v1641 = vshll.u32 %v1583, 16
        %v1643 = vrot.slane %v1641, 4
        %v1644 = vor.u32 %v1640, %v1643
        %v1645 = vsel %vm1414, %v1635, %v1644
        %v1650 = vunpack.c.l.b16 %v1547
        %v1651 = vunpack.c.l.b16 %v1548
        %v1652 = vunpack.c.l.b16 %v1549
        %v1653 = vunpack.c.l.b16 %v1550
        %v1654 = vpack.c.b16 %v1651, %v1650
        %v1655 = vpack.c.b16 %v1653, %v1652
        %v1659 = vsel %vm1212, %v1600, 0
        %v1662 = vsel %vm1212, %v1609, 0
        %v1665 = vsel %vm1212, %v1618, 0
        %v1668 = vsel %vm1212, %v1627, 0
        %v1671 = vsel %vm1212, %v1636, 0
        %v1674 = vsel %vm1212, %v1645, 0
        %1676 = vmatpush.bf16.msra.mxu0 0
        %1677 = vmatpush.bf16.msra.mxu0 0
        %1678 = vmatpush.bf16.msra.mxu0 0
        %1679 = vmatpush.bf16.msra.mxu0 0
        %1680 = vmatpush.bf16.msra.mxu0 0
        %1681 = vmatpush.bf16.msra.mxu0 0
        %1682 = vmatpush.bf16.msra.mxu0 %v1655
        %1683 = vmatpush.bf16.msra.mxu0 %v1654
        %1684 = vmatmul.bf16.gmra.mxu0 %v1659
        %v1685 = vpop.f32.mrf.mxu0
        %v1686 = vadd.f32 0.0, %v1685
        %v1687 = vpop.f32.mrf.mxu0
        %v1688 = vadd.f32 0.0, %v1687
        %1689 = vmatmul.bf16.gmra.mxu0 %v1662
        %v1690 = vpop.f32.mrf.mxu0
        %v1691 = vadd.f32 0.0, %v1690
        %v1692 = vpop.f32.mrf.mxu0
        %v1693 = vadd.f32 0.0, %v1692
        %1694 = vmatmul.bf16.gmra.mxu0 %v1665
        %v1695 = vpop.f32.mrf.mxu0
        %v1696 = vadd.f32 0.0, %v1695
        %v1697 = vpop.f32.mrf.mxu0
        %v1698 = vadd.f32 0.0, %v1697
        %1699 = vmatmul.bf16.gmra.mxu0 %v1668
        %v1700 = vpop.f32.mrf.mxu0
        %v1701 = vadd.f32 0.0, %v1700
        %v1702 = vpop.f32.mrf.mxu0
        %v1703 = vadd.f32 0.0, %v1702
        %1704 = vmatmul.bf16.gmra.mxu0 %v1671
        %v1705 = vpop.f32.mrf.mxu0
        %v1706 = vadd.f32 0.0, %v1705
        %v1707 = vpop.f32.mrf.mxu0
        %v1708 = vadd.f32 0.0, %v1707
        %1709 = vmatmul.bf16.gmra.mxu0 %v1674
        %v1710 = vpop.f32.mrf.mxu0
        %v1711 = vadd.f32 0.0, %v1710
        %v1712 = vpop.f32.mrf.mxu0
        %v1713 = vadd.f32 0.0, %v1712
        %1714 = vdwg.mxu0
        %v1715 = vadd.f32 %v1521, %v1686
        %v1716 = vadd.f32 %v1522, %v1688
        %v1717 = vadd.f32 %v1523, %v1691
        %v1718 = vadd.f32 %v1524, %v1693
        %v1719 = vadd.f32 %v1525, %v1696
        %v1720 = vadd.f32 %v1526, %v1698
        %v1721 = vadd.f32 %v1527, %v1701
        %v1722 = vadd.f32 %v1528, %v1703
        %v1723 = vadd.f32 %v1529, %v1706
        %v1724 = vadd.f32 %v1530, %v1708
        %v1725 = vadd.f32 %v1531, %v1711
        %v1726 = vadd.f32 %v1532, %v1713
        %s1727 = scalar_lea.vmem %s3, 64
        %v1728 = vld [vmem:[%s1727] sm:$0xf]
        %v1729 = vld [vmem:[%s1727 + $0x4] sm:$0xf]
        %v1730 = vld [vmem:[%s1727 + $0x8] sm:$0xf]
        %v1731 = vld [vmem:[%s1727 + $0xc] sm:$0xf]
        %v1732 = vpack.c.b16 %v1566, %v1565
        %v1733 = vpack.c.b16 %v1568, %v1567
        %v1734 = vpack.c.b16 %v1570, %v1569
        %v1735 = vpack.c.b16 %v1572, %v1571
        %v1736 = vpack.c.b16 %v1574, %v1573
        %v1737 = vpack.c.b16 %v1576, %v1575
        %v1742 = vunpack.c.l.b16 %v1728
        %v1743 = vunpack.c.l.b16 %v1729
        %v1744 = vunpack.c.l.b16 %v1730
        %v1745 = vunpack.c.l.b16 %v1731
        %v1746 = vpack.c.b16 %v1743, %v1742
        %v1747 = vpack.c.b16 %v1745, %v1744
        %v1751 = vsel %vm1212, %v1732, 0
        %v1754 = vsel %vm1212, %v1733, 0
        %v1757 = vsel %vm1212, %v1734, 0
        %v1760 = vsel %vm1212, %v1735, 0
        %v1763 = vsel %vm1212, %v1736, 0
        %v1766 = vsel %vm1212, %v1737, 0
        %1768 = vmatpush.bf16.msra.mxu0 0
        %1769 = vmatpush.bf16.msra.mxu0 0
        %1770 = vmatpush.bf16.msra.mxu0 0
        %1771 = vmatpush.bf16.msra.mxu0 0
        %1772 = vmatpush.bf16.msra.mxu0 0
        %1773 = vmatpush.bf16.msra.mxu0 0
        %1774 = vmatpush.bf16.msra.mxu0 %v1747
        %1775 = vmatpush.bf16.msra.mxu0 %v1746
        %1776 = vmatmul.bf16.gmra.mxu0 %v1751
        %v1777 = vpop.f32.mrf.mxu0
        %v1778 = vadd.f32 0.0, %v1777
        %v1779 = vpop.f32.mrf.mxu0
        %v1780 = vadd.f32 0.0, %v1779
        %1781 = vmatmul.bf16.gmra.mxu0 %v1754
        %v1782 = vpop.f32.mrf.mxu0
        %v1783 = vadd.f32 0.0, %v1782
        %v1784 = vpop.f32.mrf.mxu0
        %v1785 = vadd.f32 0.0, %v1784
        %1786 = vmatmul.bf16.gmra.mxu0 %v1757
        %v1787 = vpop.f32.mrf.mxu0
        %v1788 = vadd.f32 0.0, %v1787
        %v1789 = vpop.f32.mrf.mxu0
        %v1790 = vadd.f32 0.0, %v1789
        %1791 = vmatmul.bf16.gmra.mxu0 %v1760
        %v1792 = vpop.f32.mrf.mxu0
        %v1793 = vadd.f32 0.0, %v1792
        %v1794 = vpop.f32.mrf.mxu0
        %v1795 = vadd.f32 0.0, %v1794
        %1796 = vmatmul.bf16.gmra.mxu0 %v1763
        %v1797 = vpop.f32.mrf.mxu0
        %v1798 = vadd.f32 0.0, %v1797
        %v1799 = vpop.f32.mrf.mxu0
        %v1800 = vadd.f32 0.0, %v1799
        %1801 = vmatmul.bf16.gmra.mxu0 %v1766
        %v1802 = vpop.f32.mrf.mxu0
        %v1803 = vadd.f32 0.0, %v1802
        %v1804 = vpop.f32.mrf.mxu0
        %v1805 = vadd.f32 0.0, %v1804
        %1806 = vdwg.mxu0
        %v1807 = vadd.f32 %v1715, %v1778
        %v1808 = vadd.f32 %v1716, %v1780
        %v1809 = vadd.f32 %v1717, %v1783
        %v1810 = vadd.f32 %v1718, %v1785
        %v1811 = vadd.f32 %v1719, %v1788
        %v1812 = vadd.f32 %v1720, %v1790
        %v1813 = vadd.f32 %v1721, %v1793
        %v1814 = vadd.f32 %v1722, %v1795
        %v1815 = vadd.f32 %v1723, %v1798
        %v1816 = vadd.f32 %v1724, %v1800
        %v1817 = vadd.f32 %v1725, %v1803
        %v1818 = vadd.f32 %v1726, %v1805
        %v1819 = vld [vmem:[#allocation2 + $0x10] sm:$0xf]
        %v1820 = vld [vmem:[#allocation2 + $0x14] sm:$0xf]
        %v1821 = vld [vmem:[#allocation2 + $0x18] sm:$0xf]
        %v1822 = vld [vmem:[#allocation2 + $0x1c] sm:$0xf]
        %v1823 = vld [vmem:[#allocation2 + $0x20] sm:$0xf]
        %v1824 = vld [vmem:[#allocation2 + $0x24] sm:$0xf]
        %v1825 = vld [vmem:[#allocation2 + $0x28] sm:$0xf]
        %v1826 = vld [vmem:[#allocation2 + $0x2c] sm:$0xf]
        %v1827 = vld [vmem:[#allocation2 + $0x30] sm:$0xf]
        %v1828 = vld [vmem:[#allocation2 + $0x34] sm:$0xf]
        %v1829 = vld [vmem:[#allocation2 + $0x38] sm:$0xf]
        %v1830 = vld [vmem:[#allocation2 + $0x3c] sm:$0xf]
        %v1831 = vld [vmem:[#allocation2 + $0x40] sm:$0x1]
        %s1832 = scalar_lea.vmem %s3, 80
        %v1833 = vld [vmem:[%s1832] sm:$0xf]
        %v1834 = vld [vmem:[%s1832 + $0x4] sm:$0xf]
        %v1835 = vld [vmem:[%s1832 + $0x8] sm:$0xf]
        %v1836 = vld [vmem:[%s1832 + $0xc] sm:$0xf]
        %v1850 = vunpack.c.l.b16 %v1819
        %v1851 = vunpack.c.l.b16 %v1820
        %v1852 = vunpack.c.l.b16 %v1821
        %v1853 = vunpack.c.l.b16 %v1822
        %v1854 = vunpack.c.l.b16 %v1823
        %v1855 = vunpack.c.l.b16 %v1824
        %v1856 = vunpack.c.l.b16 %v1825
        %v1857 = vunpack.c.l.b16 %v1826
        %v1858 = vunpack.c.l.b16 %v1827
        %v1859 = vunpack.c.l.b16 %v1828
        %v1860 = vunpack.c.l.b16 %v1829
        %v1861 = vunpack.c.l.b16 %v1830
        %v1862 = vunpack.c.l.b16 %v1831
        %v1863 = vpack.c.b16 %v1851, %v1850
        %v1864 = vpack.c.b16 %v1853, %v1852
        %v1865 = vpack.c.b16 %v1855, %v1854
        %v1866 = vpack.c.b16 %v1857, %v1856
        %v1867 = vpack.c.b16 %v1859, %v1858
        %v1868 = vpack.c.b16 %v1861, %v1860
        %v1869 = vpack.c.b16 %v1862, %v1862
        %vm1870 = vsmask.f32 7424
        %v1872 = vshrl.u32 %v1863, 16
        %v1874 = vshll.u32 %v1863, 16
        %v1876 = vrot.slane %v1874, 1
        %v1877 = vor.u32 %v1872, %v1876
        %v1879 = vshll.u32 %v1864, 16
        %v1881 = vrot.slane %v1879, 1
        %v1882 = vsel %vm1870, %v1877, %v1881
        %v1883 = vshrl.u32 %v1864, 16
        %v1885 = vor.u32 %v1883, %v1881
        %v1887 = vshll.u32 %v1865, 16
        %v1889 = vrot.slane %v1887, 1
        %v1890 = vsel %vm1870, %v1885, %v1889
        %v1891 = vshrl.u32 %v1865, 16
        %v1893 = vor.u32 %v1891, %v1889
        %v1895 = vshll.u32 %v1866, 16
        %v1897 = vrot.slane %v1895, 1
        %v1898 = vsel %vm1870, %v1893, %v1897
        %v1899 = vshrl.u32 %v1866, 16
        %v1901 = vor.u32 %v1899, %v1897
        %v1903 = vshll.u32 %v1867, 16
        %v1905 = vrot.slane %v1903, 1
        %v1906 = vsel %vm1870, %v1901, %v1905
        %v1907 = vshrl.u32 %v1867, 16
        %v1909 = vor.u32 %v1907, %v1905
        %v1911 = vshll.u32 %v1868, 16
        %v1913 = vrot.slane %v1911, 1
        %v1914 = vsel %vm1870, %v1909, %v1913
        %v1915 = vshrl.u32 %v1868, 16
        %v1917 = vor.u32 %v1915, %v1913
        %v1919 = vshll.u32 %v1869, 16
        %v1921 = vrot.slane %v1919, 1
        %v1922 = vsel %vm1870, %v1917, %v1921
        %v1927 = vunpack.c.l.b16 %v1833
        %v1928 = vunpack.c.l.b16 %v1834
        %v1929 = vunpack.c.l.b16 %v1835
        %v1930 = vunpack.c.l.b16 %v1836
        %v1931 = vpack.c.b16 %v1928, %v1927
        %v1932 = vpack.c.b16 %v1930, %v1929
        %v1936 = vsel %vm1212, %v1882, 0
        %v1939 = vsel %vm1212, %v1890, 0
        %v1942 = vsel %vm1212, %v1898, 0
        %v1945 = vsel %vm1212, %v1906, 0
        %v1948 = vsel %vm1212, %v1914, 0
        %v1951 = vsel %vm1212, %v1922, 0
        %1953 = vmatpush.bf16.msra.mxu0 0
        %1954 = vmatpush.bf16.msra.mxu0 0
        %1955 = vmatpush.bf16.msra.mxu0 0
        %1956 = vmatpush.bf16.msra.mxu0 0
        %1957 = vmatpush.bf16.msra.mxu0 0
        %1958 = vmatpush.bf16.msra.mxu0 0
        %1959 = vmatpush.bf16.msra.mxu0 %v1932
        %1960 = vmatpush.bf16.msra.mxu0 %v1931
        %1961 = vmatmul.bf16.gmra.mxu0 %v1936
        %v1962 = vpop.f32.mrf.mxu0
        %v1963 = vadd.f32 0.0, %v1962
        %v1964 = vpop.f32.mrf.mxu0
        %v1965 = vadd.f32 0.0, %v1964
        %1966 = vmatmul.bf16.gmra.mxu0 %v1939
        %v1967 = vpop.f32.mrf.mxu0
        %v1968 = vadd.f32 0.0, %v1967
        %v1969 = vpop.f32.mrf.mxu0
        %v1970 = vadd.f32 0.0, %v1969
        %1971 = vmatmul.bf16.gmra.mxu0 %v1942
        %v1972 = vpop.f32.mrf.mxu0
        %v1973 = vadd.f32 0.0, %v1972
        %v1974 = vpop.f32.mrf.mxu0
        %v1975 = vadd.f32 0.0, %v1974
        %1976 = vmatmul.bf16.gmra.mxu0 %v1945
        %v1977 = vpop.f32.mrf.mxu0
        %v1978 = vadd.f32 0.0, %v1977
        %v1979 = vpop.f32.mrf.mxu0
        %v1980 = vadd.f32 0.0, %v1979
        %1981 = vmatmul.bf16.gmra.mxu0 %v1948
        %v1982 = vpop.f32.mrf.mxu0
        %v1983 = vadd.f32 0.0, %v1982
        %v1984 = vpop.f32.mrf.mxu0
        %v1985 = vadd.f32 0.0, %v1984
        %1986 = vmatmul.bf16.gmra.mxu0 %v1951
        %v1987 = vpop.f32.mrf.mxu0
        %v1988 = vadd.f32 0.0, %v1987
        %v1989 = vpop.f32.mrf.mxu0
        %v1990 = vadd.f32 0.0, %v1989
        %1991 = vdwg.mxu0
        %v1992 = vadd.f32 %v1807, %v1963
        %v1993 = vadd.f32 %v1808, %v1965
        %v1994 = vadd.f32 %v1809, %v1968
        %v1995 = vadd.f32 %v1810, %v1970
        %v1996 = vadd.f32 %v1811, %v1973
        %v1997 = vadd.f32 %v1812, %v1975
        %v1998 = vadd.f32 %v1813, %v1978
        %v1999 = vadd.f32 %v1814, %v1980
        %v2000 = vadd.f32 %v1815, %v1983
        %v2001 = vadd.f32 %v1816, %v1985
        %v2002 = vadd.f32 %v1817, %v1988
        %v2003 = vadd.f32 %v1818, %v1990
        %v2004 = vld [vmem:[#allocation2 + $0x18] sm:$0xf]
        %v2005 = vld [vmem:[#allocation2 + $0x1c] sm:$0xf]
        %v2006 = vld [vmem:[#allocation2 + $0x20] sm:$0xf]
        %v2007 = vld [vmem:[#allocation2 + $0x24] sm:$0xf]
        %v2008 = vld [vmem:[#allocation2 + $0x28] sm:$0xf]
        %v2009 = vld [vmem:[#allocation2 + $0x2c] sm:$0xf]
        %v2010 = vld [vmem:[#allocation2 + $0x30] sm:$0xf]
        %v2011 = vld [vmem:[#allocation2 + $0x34] sm:$0xf]
        %v2012 = vld [vmem:[#allocation2 + $0x38] sm:$0xf]
        %v2013 = vld [vmem:[#allocation2 + $0x3c] sm:$0xf]
        %v2014 = vld [vmem:[#allocation2 + $0x40] sm:$0xf]
        %v2015 = vld [vmem:[#allocation2 + $0x44] sm:$0xf]
        %v2016 = vld [vmem:[#allocation2 + $0x48] sm:$0x1]
        %s2017 = scalar_lea.vmem %s3, 96
        %v2018 = vld [vmem:[%s2017] sm:$0xf]
        %v2019 = vld [vmem:[%s2017 + $0x4] sm:$0xf]
        %v2020 = vld [vmem:[%s2017 + $0x8] sm:$0xf]
        %v2021 = vld [vmem:[%s2017 + $0xc] sm:$0xf]
        %v2035 = vunpack.c.l.b16 %v2004
        %v2036 = vunpack.c.l.b16 %v2005
        %v2037 = vunpack.c.l.b16 %v2006
        %v2038 = vunpack.c.l.b16 %v2007
        %v2039 = vunpack.c.l.b16 %v2008
        %v2040 = vunpack.c.l.b16 %v2009
        %v2041 = vunpack.c.l.b16 %v2010
        %v2042 = vunpack.c.l.b16 %v2011
        %v2043 = vunpack.c.l.b16 %v2012
        %v2044 = vunpack.c.l.b16 %v2013
        %v2045 = vunpack.c.l.b16 %v2014
        %v2046 = vunpack.c.l.b16 %v2015
        %v2047 = vunpack.c.l.b16 %v2016
        %v2048 = vpack.c.b16 %v2036, %v2035
        %v2049 = vpack.c.b16 %v2038, %v2037
        %v2050 = vpack.c.b16 %v2040, %v2039
        %v2051 = vpack.c.b16 %v2042, %v2041
        %v2052 = vpack.c.b16 %v2044, %v2043
        %v2053 = vpack.c.b16 %v2046, %v2045
        %v2054 = vpack.c.b16 %v2047, %v2047
        %v2056 = vshrl.u32 %v2048, 16
        %v2058 = vshll.u32 %v2048, 16
        %v2060 = vrot.slane %v2058, 1
        %v2061 = vor.u32 %v2056, %v2060
        %v2063 = vshll.u32 %v2049, 16
        %v2065 = vrot.slane %v2063, 1
        %v2066 = vsel %vm1870, %v2061, %v2065
        %v2067 = vshrl.u32 %v2049, 16
        %v2069 = vor.u32 %v2067, %v2065
        %v2071 = vshll.u32 %v2050, 16
        %v2073 = vrot.slane %v2071, 1
        %v2074 = vsel %vm1870, %v2069, %v2073
        %v2075 = vshrl.u32 %v2050, 16
        %v2077 = vor.u32 %v2075, %v2073
        %v2079 = vshll.u32 %v2051, 16
        %v2081 = vrot.slane %v2079, 1
        %v2082 = vsel %vm1870, %v2077, %v2081
        %v2083 = vshrl.u32 %v2051, 16
        %v2085 = vor.u32 %v2083, %v2081
        %v2087 = vshll.u32 %v2052, 16
        %v2089 = vrot.slane %v2087, 1
        %v2090 = vsel %vm1870, %v2085, %v2089
        %v2091 = vshrl.u32 %v2052, 16
        %v2093 = vor.u32 %v2091, %v2089
        %v2095 = vshll.u32 %v2053, 16
        %v2097 = vrot.slane %v2095, 1
        %v2098 = vsel %vm1870, %v2093, %v2097
        %v2099 = vshrl.u32 %v2053, 16
        %v2101 = vor.u32 %v2099, %v2097
        %v2103 = vshll.u32 %v2054, 16
        %v2105 = vrot.slane %v2103, 1
        %v2106 = vsel %vm1870, %v2101, %v2105
        %v2111 = vunpack.c.l.b16 %v2018
        %v2112 = vunpack.c.l.b16 %v2019
        %v2113 = vunpack.c.l.b16 %v2020
        %v2114 = vunpack.c.l.b16 %v2021
        %v2115 = vpack.c.b16 %v2112, %v2111
        %v2116 = vpack.c.b16 %v2114, %v2113
        %v2120 = vsel %vm1212, %v2066, 0
        %v2123 = vsel %vm1212, %v2074, 0
        %v2126 = vsel %vm1212, %v2082, 0
        %v2129 = vsel %vm1212, %v2090, 0
        %v2132 = vsel %vm1212, %v2098, 0
        %v2135 = vsel %vm1212, %v2106, 0
        %2137 = vmatpush.bf16.msra.mxu0 0
        %2138 = vmatpush.bf16.msra.mxu0 0
        %2139 = vmatpush.bf16.msra.mxu0 0
        %2140 = vmatpush.bf16.msra.mxu0 0
        %2141 = vmatpush.bf16.msra.mxu0 0
        %2142 = vmatpush.bf16.msra.mxu0 0
        %2143 = vmatpush.bf16.msra.mxu0 %v2116
        %2144 = vmatpush.bf16.msra.mxu0 %v2115
        %2145 = vmatmul.bf16.gmra.mxu0 %v2120
        %v2146 = vpop.f32.mrf.mxu0
        %v2147 = vadd.f32 0.0, %v2146
        %v2148 = vpop.f32.mrf.mxu0
        %v2149 = vadd.f32 0.0, %v2148
        %2150 = vmatmul.bf16.gmra.mxu0 %v2123
        %v2151 = vpop.f32.mrf.mxu0
        %v2152 = vadd.f32 0.0, %v2151
        %v2153 = vpop.f32.mrf.mxu0
        %v2154 = vadd.f32 0.0, %v2153
        %2155 = vmatmul.bf16.gmra.mxu0 %v2126
        %v2156 = vpop.f32.mrf.mxu0
        %v2157 = vadd.f32 0.0, %v2156
        %v2158 = vpop.f32.mrf.mxu0
        %v2159 = vadd.f32 0.0, %v2158
        %2160 = vmatmul.bf16.gmra.mxu0 %v2129
        %v2161 = vpop.f32.mrf.mxu0
        %v2162 = vadd.f32 0.0, %v2161
        %v2163 = vpop.f32.mrf.mxu0
        %v2164 = vadd.f32 0.0, %v2163
        %2165 = vmatmul.bf16.gmra.mxu0 %v2132
        %v2166 = vpop.f32.mrf.mxu0
        %v2167 = vadd.f32 0.0, %v2166
        %v2168 = vpop.f32.mrf.mxu0
        %v2169 = vadd.f32 0.0, %v2168
        %2170 = vmatmul.bf16.gmra.mxu0 %v2135
        %v2171 = vpop.f32.mrf.mxu0
        %v2172 = vadd.f32 0.0, %v2171
        %v2173 = vpop.f32.mrf.mxu0
        %v2174 = vadd.f32 0.0, %v2173
        %2175 = vdwg.mxu0
        %v2176 = vadd.f32 %v1992, %v2147
        %v2177 = vadd.f32 %v1993, %v2149
        %v2178 = vadd.f32 %v1994, %v2152
        %v2179 = vadd.f32 %v1995, %v2154
        %v2180 = vadd.f32 %v1996, %v2157
        %v2181 = vadd.f32 %v1997, %v2159
        %v2182 = vadd.f32 %v1998, %v2162
        %v2183 = vadd.f32 %v1999, %v2164
        %v2184 = vadd.f32 %v2000, %v2167
        %v2185 = vadd.f32 %v2001, %v2169
        %v2186 = vadd.f32 %v2002, %v2172
        %v2187 = vadd.f32 %v2003, %v2174
        %v2188 = vld [vmem:[#allocation2 + $0x18] sm:$0xe]
        %s2189 = scalar_lea.vmem %s3, 112
        %v2190 = vld [vmem:[%s2189] sm:$0xf]
        %v2191 = vld [vmem:[%s2189 + $0x4] sm:$0xf]
        %v2192 = vld [vmem:[%s2189 + $0x8] sm:$0xf]
        %v2193 = vld [vmem:[%s2189 + $0xc] sm:$0xf]
        %v2195 = vunpack.c.l.b16 %v2188
        %v2196 = vpack.c.b16 %v2036, %v2195
        %vm2197 = vcmask 1046528
        %v2198 = vrot.slane %v2196, 1
        %v2199 = vrot.slane %v2049, 1
        %v2200 = vsel %vm2197, %v2198, %v2199
        %v2201 = vrot.slane %v2050, 1
        %v2202 = vsel %vm2197, %v2199, %v2201
        %v2203 = vrot.slane %v2051, 1
        %v2204 = vsel %vm2197, %v2201, %v2203
        %v2205 = vrot.slane %v2052, 1
        %v2206 = vsel %vm2197, %v2203, %v2205
        %v2207 = vrot.slane %v2053, 1
        %v2208 = vsel %vm2197, %v2205, %v2207
        %v2209 = vrot.slane %v2054, 1
        %v2210 = vsel %vm2197, %v2207, %v2209
        %v2215 = vunpack.c.l.b16 %v2190
        %v2216 = vunpack.c.l.b16 %v2191
        %v2217 = vunpack.c.l.b16 %v2192
        %v2218 = vunpack.c.l.b16 %v2193
        %v2219 = vpack.c.b16 %v2216, %v2215
        %v2220 = vpack.c.b16 %v2218, %v2217
        %v2224 = vsel %vm1212, %v2200, 0
        %v2227 = vsel %vm1212, %v2202, 0
        %v2230 = vsel %vm1212, %v2204, 0
        %v2233 = vsel %vm1212, %v2206, 0
        %v2236 = vsel %vm1212, %v2208, 0
        %v2239 = vsel %vm1212, %v2210, 0
        %2241 = vmatpush.bf16.msra.mxu0 0
        %2242 = vmatpush.bf16.msra.mxu0 0
        %2243 = vmatpush.bf16.msra.mxu0 0
        %2244 = vmatpush.bf16.msra.mxu0 0
        %2245 = vmatpush.bf16.msra.mxu0 0
        %2246 = vmatpush.bf16.msra.mxu0 0
        %2247 = vmatpush.bf16.msra.mxu0 %v2220
        %2248 = vmatpush.bf16.msra.mxu0 %v2219
        %2249 = vmatmul.bf16.gmra.mxu0 %v2224
        %v2250 = vpop.f32.mrf.mxu0
        %v2251 = vadd.f32 0.0, %v2250
        %v2252 = vpop.f32.mrf.mxu0
        %v2253 = vadd.f32 0.0, %v2252
        %2254 = vmatmul.bf16.gmra.mxu0 %v2227
        %v2255 = vpop.f32.mrf.mxu0
        %v2256 = vadd.f32 0.0, %v2255
        %v2257 = vpop.f32.mrf.mxu0
        %v2258 = vadd.f32 0.0, %v2257
        %2259 = vmatmul.bf16.gmra.mxu0 %v2230
        %v2260 = vpop.f32.mrf.mxu0
        %v2261 = vadd.f32 0.0, %v2260
        %v2262 = vpop.f32.mrf.mxu0
        %v2263 = vadd.f32 0.0, %v2262
        %2264 = vmatmul.bf16.gmra.mxu0 %v2233
        %v2265 = vpop.f32.mrf.mxu0
        %v2266 = vadd.f32 0.0, %v2265
        %v2267 = vpop.f32.mrf.mxu0
        %v2268 = vadd.f32 0.0, %v2267
        %2269 = vmatmul.bf16.gmra.mxu0 %v2236
        %v2270 = vpop.f32.mrf.mxu0
        %v2271 = vadd.f32 0.0, %v2270
        %v2272 = vpop.f32.mrf.mxu0
        %v2273 = vadd.f32 0.0, %v2272
        %2274 = vmatmul.bf16.gmra.mxu0 %v2239
        %v2275 = vpop.f32.mrf.mxu0
        %v2276 = vadd.f32 0.0, %v2275
        %v2277 = vpop.f32.mrf.mxu0
        %v2278 = vadd.f32 0.0, %v2277
        %2279 = vdwg.mxu0
        %v2280 = vadd.f32 %v2176, %v2251
        %v2281 = vadd.f32 %v2177, %v2253
        %v2282 = vadd.f32 %v2178, %v2256
        %v2283 = vadd.f32 %v2179, %v2258
        %v2284 = vadd.f32 %v2180, %v2261
        %v2285 = vadd.f32 %v2181, %v2263
        %v2286 = vadd.f32 %v2182, %v2266
        %v2287 = vadd.f32 %v2183, %v2268
        %v2288 = vadd.f32 %v2184, %v2271
        %v2289 = vadd.f32 %v2185, %v2273
        %v2290 = vadd.f32 %v2186, %v2276
        %v2291 = vadd.f32 %v2187, %v2278
        %v2292 = vld [vmem:[#allocation2 + $0x48] sm:$0x3]
        %s2293 = scalar_lea.vmem %s3, 128
        %v2294 = vld [vmem:[%s2293] sm:$0xf]
        %v2295 = vld [vmem:[%s2293 + $0x4] sm:$0xf]
        %v2296 = vld [vmem:[%s2293 + $0x8] sm:$0xf]
        %v2297 = vld [vmem:[%s2293 + $0xc] sm:$0xf]
        %v2299 = vunpack.c.l.b16 %v2292
        %v2300 = vpack.c.b16 %v2299, %v2299
        %vm2301 = vsmask.f32 6400
        %v2303 = vshrl.u32 %v2196, 16
        %v2305 = vrot.slane %v2303, 1
        %v2306 = vshll.u32 %v2196, 16
        %v2308 = vrot.slane %v2306, 2
        %v2309 = vor.u32 %v2305, %v2308
        %v2310 = vrot.slane %v2067, 1
        %v2311 = vrot.slane %v2063, 2
        %v2312 = vor.u32 %v2310, %v2311
        %v2313 = vsel %vm2301, %v2309, %v2312
        %v2314 = vrot.slane %v2075, 1
        %v2315 = vrot.slane %v2071, 2
        %v2316 = vor.u32 %v2314, %v2315
        %v2317 = vsel %vm2301, %v2312, %v2316
        %v2318 = vrot.slane %v2083, 1
        %v2319 = vrot.slane %v2079, 2
        %v2320 = vor.u32 %v2318, %v2319
        %v2321 = vsel %vm2301, %v2316, %v2320
        %v2322 = vrot.slane %v2091, 1
        %v2323 = vrot.slane %v2087, 2
        %v2324 = vor.u32 %v2322, %v2323
        %v2325 = vsel %vm2301, %v2320, %v2324
        %v2326 = vrot.slane %v2099, 1
        %v2327 = vrot.slane %v2095, 2
        %v2328 = vor.u32 %v2326, %v2327
        %v2329 = vsel %vm2301, %v2324, %v2328
        %v2331 = vshrl.u32 %v2300, 16
        %v2333 = vrot.slane %v2331, 1
        %v2334 = vshll.u32 %v2300, 16
        %v2336 = vrot.slane %v2334, 2
        %v2337 = vor.u32 %v2333, %v2336
        %v2338 = vsel %vm2301, %v2328, %v2337
        %v2343 = vunpack.c.l.b16 %v2294
        %v2344 = vunpack.c.l.b16 %v2295
        %v2345 = vunpack.c.l.b16 %v2296
        %v2346 = vunpack.c.l.b16 %v2297
        %v2347 = vpack.c.b16 %v2344, %v2343
        %v2348 = vpack.c.b16 %v2346, %v2345
        %v2352 = vsel %vm1212, %v2313, 0
        %v2355 = vsel %vm1212, %v2317, 0
        %v2358 = vsel %vm1212, %v2321, 0
        %v2361 = vsel %vm1212, %v2325, 0
        %v2364 = vsel %vm1212, %v2329, 0
        %v2367 = vsel %vm1212, %v2338, 0
        %2369 = vmatpush.bf16.msra.mxu0 0
        %2370 = vmatpush.bf16.msra.mxu0 0
        %2371 = vmatpush.bf16.msra.mxu0 0
        %2372 = vmatpush.bf16.msra.mxu0 0
        %2373 = vmatpush.bf16.msra.mxu0 0
        %2374 = vmatpush.bf16.msra.mxu0 0
        %2375 = vmatpush.bf16.msra.mxu0 %v2348
        %2376 = vmatpush.bf16.msra.mxu0 %v2347
        %2377 = vmatmul.bf16.gmra.mxu0 %v2352
        %v2378 = vpop.f32.mrf.mxu0
        %v2379 = vadd.f32 0.0, %v2378
        %v2380 = vpop.f32.mrf.mxu0
        %v2381 = vadd.f32 0.0, %v2380
        %2382 = vmatmul.bf16.gmra.mxu0 %v2355
        %v2383 = vpop.f32.mrf.mxu0
        %v2384 = vadd.f32 0.0, %v2383
        %v2385 = vpop.f32.mrf.mxu0
        %v2386 = vadd.f32 0.0, %v2385
        %2387 = vmatmul.bf16.gmra.mxu0 %v2358
        %v2388 = vpop.f32.mrf.mxu0
        %v2389 = vadd.f32 0.0, %v2388
        %v2390 = vpop.f32.mrf.mxu0
        %v2391 = vadd.f32 0.0, %v2390
        %2392 = vmatmul.bf16.gmra.mxu0 %v2361
        %v2393 = vpop.f32.mrf.mxu0
        %v2394 = vadd.f32 0.0, %v2393
        %v2395 = vpop.f32.mrf.mxu0
        %v2396 = vadd.f32 0.0, %v2395
        %2397 = vmatmul.bf16.gmra.mxu0 %v2364
        %v2398 = vpop.f32.mrf.mxu0
        %v2399 = vadd.f32 0.0, %v2398
        %v2400 = vpop.f32.mrf.mxu0
        %v2401 = vadd.f32 0.0, %v2400
        %2402 = vmatmul.bf16.gmra.mxu0 %v2367
        %v2403 = vpop.f32.mrf.mxu0
        %v2404 = vadd.f32 0.0, %v2403
        %v2405 = vpop.f32.mrf.mxu0
        %v2406 = vadd.f32 0.0, %v2405
        %2407 = vdwg.mxu0
        %v2408 = vadd.f32 %v2280, %v2379
        %v2409 = vadd.f32 %v2281, %v2381
        %v2410 = vadd.f32 %v2282, %v2384
        %v2411 = vadd.f32 %v2283, %v2386
        %v2412 = vadd.f32 %v2284, %v2389
        %v2413 = vadd.f32 %v2285, %v2391
        %v2414 = vadd.f32 %v2286, %v2394
        %v2415 = vadd.f32 %v2287, %v2396
        %v2416 = vadd.f32 %v2288, %v2399
        %v2417 = vadd.f32 %v2289, %v2401
        %v2418 = vadd.f32 %v2290, %v2404
        %v2419 = vadd.f32 %v2291, %v2406
        %v2420 = vld [vmem:[%s4] sm:$0x1]
        %v2422 = vperm.slane %v2420, 0
        %v2424 = vadd.f32 %v2408, %v2422
        %v2425 = vadd.f32 %v2409, %v2422
        %v2426 = vadd.f32 %v2410, %v2422
        %v2427 = vadd.f32 %v2411, %v2422
        %v2428 = vadd.f32 %v2412, %v2422
        %v2429 = vadd.f32 %v2413, %v2422
        %v2430 = vadd.f32 %v2414, %v2422
        %v2431 = vadd.f32 %v2415, %v2422
        %v2432 = vadd.f32 %v2416, %v2422
        %v2433 = vadd.f32 %v2417, %v2422
        %v2434 = vadd.f32 %v2418, %v2422
        %v2435 = vadd.f32 %v2419, %v2422
        %v2436 = vmax.f32 %v2424, 0.0
        %v2437 = vmax.f32 %v2425, 0.0
        %v2438 = vmax.f32 %v2426, 0.0
        %v2439 = vmax.f32 %v2427, 0.0
        %v2440 = vmax.f32 %v2428, 0.0
        %v2441 = vmax.f32 %v2429, 0.0
        %v2442 = vmax.f32 %v2430, 0.0
        %v2443 = vmax.f32 %v2431, 0.0
        %v2444 = vmax.f32 %v2432, 0.0
        %v2445 = vmax.f32 %v2433, 0.0
        %v2446 = vmax.f32 %v2434, 0.0
        %v2447 = vmax.f32 %v2435, 0.0
        %v2448 = vld [vmem:[%s8] sm:$0xff]
        %v2449 = vld [vmem:[%s8 + $0x8] sm:$0xff]
        %v2450 = vld [vmem:[%s8 + $0x10] sm:$0xff]
        %v2451 = vld [vmem:[%s8 + $0x18] sm:$0xff]
        %v2452 = vld [vmem:[%s8 + $0x20] sm:$0xff]
        %v2453 = vld [vmem:[%s8 + $0x28] sm:$0xff]
        %v2454 = vld [vmem:[%s8 + $0x30] sm:$0xff]
        %v2455 = vld [vmem:[%s8 + $0x38] sm:$0xff]
        %v2456 = vld [vmem:[%s8 + $0x40] sm:$0xff]
        %v2457 = vld [vmem:[%s8 + $0x48] sm:$0xff]
        %v2458 = vld [vmem:[%s8 + $0x50] sm:$0xff]
        %v2459 = vld [vmem:[%s8 + $0x58] sm:$0xff]
        %2461 = vset.pattern.permute.xlu0 0
        %2462 = vperm.xlu0 %2461, %v2448
        %v2463 = vpop.permute.xlu0 %2462
        %2466 = vset.pattern.permute.xlu0 0
        %2467 = vperm.xlu0 %2466, %v2449
        %v2468 = vpop.permute.xlu0 %2467
        %2471 = vset.pattern.permute.xlu0 0
        %2472 = vperm.xlu0 %2471, %v2450
        %v2473 = vpop.permute.xlu0 %2472
        %2476 = vset.pattern.permute.xlu0 0
        %2477 = vperm.xlu0 %2476, %v2451
        %v2478 = vpop.permute.xlu0 %2477
        %2481 = vset.pattern.permute.xlu0 0
        %2482 = vperm.xlu0 %2481, %v2452
        %v2483 = vpop.permute.xlu0 %2482
        %2486 = vset.pattern.permute.xlu0 0
        %2487 = vperm.xlu0 %2486, %v2453
        %v2488 = vpop.permute.xlu0 %2487
        %2491 = vset.pattern.permute.xlu0 0
        %2492 = vperm.xlu0 %2491, %v2454
        %v2493 = vpop.permute.xlu0 %2492
        %2496 = vset.pattern.permute.xlu0 0
        %2497 = vperm.xlu0 %2496, %v2455
        %v2498 = vpop.permute.xlu0 %2497
        %2501 = vset.pattern.permute.xlu0 0
        %2502 = vperm.xlu0 %2501, %v2456
        %v2503 = vpop.permute.xlu0 %2502
        %2506 = vset.pattern.permute.xlu0 0
        %2507 = vperm.xlu0 %2506, %v2457
        %v2508 = vpop.permute.xlu0 %2507
        %2511 = vset.pattern.permute.xlu0 0
        %2512 = vperm.xlu0 %2511, %v2458
        %v2513 = vpop.permute.xlu0 %2512
        %2516 = vset.pattern.permute.xlu0 0
        %2517 = vperm.xlu0 %2516, %v2459
        %v2518 = vpop.permute.xlu0 %2517
        %v2520 = vmul.f32 %v2436, %v2463
        %v2521 = vmul.f32 %v2437, %v2468
        %v2522 = vmul.f32 %v2438, %v2473
        %v2523 = vmul.f32 %v2439, %v2478
        %v2524 = vmul.f32 %v2440, %v2483
        %v2525 = vmul.f32 %v2441, %v2488
        %v2526 = vmul.f32 %v2442, %v2493
        %v2527 = vmul.f32 %v2443, %v2498
        %v2528 = vmul.f32 %v2444, %v2503
        %v2529 = vmul.f32 %v2445, %v2508
        %v2530 = vmul.f32 %v2446, %v2513
        %v2531 = vmul.f32 %v2447, %v2518
        %v2532 = vadd.f32 %v2520, %v2521
        %v2533 = vadd.f32 %v2532, %v2522
        %v2534 = vadd.f32 %v2533, %v2523
        %v2535 = vadd.f32 %v2534, %v2524
        %v2536 = vadd.f32 %v2535, %v2525
        %v2537 = vadd.f32 %v2536, %v2526
        %v2538 = vadd.f32 %v2537, %v2527
        %v2539 = vadd.f32 %v2538, %v2528
        %v2540 = vadd.f32 %v2539, %v2529
        %v2541 = vadd.f32 %v2540, %v2530
        %v2542 = vadd.f32 %v2541, %v2531
        %v2543 = vrot.slane %v2542, 4
        %v2544 = vadd.f32 %v2542, %v2543
        %v2545 = vrot.slane %v2544, 2
        %v2546 = vadd.f32 %v2544, %v2545
        %v2547 = vrot.slane %v2546, 1
        %v2548 = vadd.f32 %v2546, %v2547
        %v2549 = vadd.f32 %v2548, 0.0
        %v2550 = vld [vmem:[#allocation2 + $0x34] sm:$0xc]
        %v2551 = vld [vmem:[#allocation2 + $0x38] sm:$0xf]
        %v2552 = vld [vmem:[#allocation2 + $0x3c] sm:$0xf]
        %v2553 = vld [vmem:[#allocation2 + $0x40] sm:$0xf]
        %v2554 = vld [vmem:[#allocation2 + $0x44] sm:$0xf]
        %v2555 = vld [vmem:[#allocation2 + $0x48] sm:$0xf]
        %v2556 = vld [vmem:[#allocation2 + $0x4c] sm:$0xf]
        %v2557 = vld [vmem:[#allocation2 + $0x50] sm:$0xf]
        %v2558 = vld [vmem:[#allocation2 + $0x54] sm:$0xf]
        %v2559 = vld [vmem:[#allocation2 + $0x58] sm:$0xf]
        %v2560 = vld [vmem:[#allocation2 + $0x5c] sm:$0xf]
        %v2561 = vld [vmem:[#allocation2 + $0x60] sm:$0xf]
        %v2562 = vld [vmem:[#allocation2 + $0x64] sm:$0x7]
        %v2563 = vld [vmem:[#allocation2 + $0x34] sm:$0x8]
        %v2577 = vunpack.c.l.b16 %v2563
        %v2578 = vunpack.c.l.b16 %v2551
        %v2579 = vunpack.c.l.b16 %v2552
        %v2580 = vunpack.c.l.b16 %v2553
        %v2581 = vunpack.c.l.b16 %v2554
        %v2582 = vunpack.c.l.b16 %v2555
        %v2583 = vunpack.c.l.b16 %v2556
        %v2584 = vunpack.c.l.b16 %v2557
        %v2585 = vunpack.c.l.b16 %v2558
        %v2586 = vunpack.c.l.b16 %v2559
        %v2587 = vunpack.c.l.b16 %v2560
        %v2588 = vunpack.c.l.b16 %v2561
        %v2589 = vunpack.c.l.b16 %v2562
        %v2590 = vpack.c.b16 %v2578, %v2577
        %v2591 = vpack.c.b16 %v2580, %v2579
        %v2592 = vpack.c.b16 %v2582, %v2581
        %v2593 = vpack.c.b16 %v2584, %v2583
        %v2594 = vpack.c.b16 %v2586, %v2585
        %v2595 = vpack.c.b16 %v2588, %v2587
        %v2596 = vpack.c.b16 %v2589, %v2589
        %v2597 = vrot.slane %v2590, 3
        %v2598 = vrot.slane %v2591, 3
        %v2599 = vsel %vm1186, %v2597, %v2598
        %v2600 = vrot.slane %v2592, 3
        %v2601 = vsel %vm1186, %v2598, %v2600
        %v2602 = vrot.slane %v2593, 3
        %v2603 = vsel %vm1186, %v2600, %v2602
        %v2604 = vrot.slane %v2594, 3
        %v2605 = vsel %vm1186, %v2602, %v2604
        %v2606 = vrot.slane %v2595, 3
        %v2607 = vsel %vm1186, %v2604, %v2606
        %v2608 = vrot.slane %v2596, 3
        %v2609 = vsel %vm1186, %v2606, %v2608
        %v2611 = vsel %vm1212, %v2599, 0
        %v2614 = vsel %vm1212, %v2601, 0
        %v2617 = vsel %vm1212, %v2603, 0
        %v2620 = vsel %vm1212, %v2605, 0
        %v2623 = vsel %vm1212, %v2607, 0
        %v2626 = vsel %vm1212, %v2609, 0
        %2628 = vmatpush.bf16.msra.mxu0 0
        %2629 = vmatpush.bf16.msra.mxu0 0
        %2630 = vmatpush.bf16.msra.mxu0 0
        %2631 = vmatpush.bf16.msra.mxu0 0
        %2632 = vmatpush.bf16.msra.mxu0 0
        %2633 = vmatpush.bf16.msra.mxu0 0
        %2634 = vmatpush.bf16.msra.mxu0 %v1209
        %2635 = vmatpush.bf16.msra.mxu0 %v1208
        %2636 = vmatmul.bf16.gmra.mxu0 %v2611
        %v2637 = vpop.f32.mrf.mxu0
        %v2638 = vadd.f32 0.0, %v2637
        %v2639 = vpop.f32.mrf.mxu0
        %v2640 = vadd.f32 0.0, %v2639
        %2641 = vmatmul.bf16.gmra.mxu0 %v2614
        %v2642 = vpop.f32.mrf.mxu0
        %v2643 = vadd.f32 0.0, %v2642
        %v2644 = vpop.f32.mrf.mxu0
        %v2645 = vadd.f32 0.0, %v2644
        %2646 = vmatmul.bf16.gmra.mxu0 %v2617
        %v2647 = vpop.f32.mrf.mxu0
        %v2648 = vadd.f32 0.0, %v2647
        %v2649 = vpop.f32.mrf.mxu0
        %v2650 = vadd.f32 0.0, %v2649
        %2651 = vmatmul.bf16.gmra.mxu0 %v2620
        %v2652 = vpop.f32.mrf.mxu0
        %v2653 = vadd.f32 0.0, %v2652
        %v2654 = vpop.f32.mrf.mxu0
        %v2655 = vadd.f32 0.0, %v2654
        %2656 = vmatmul.bf16.gmra.mxu0 %v2623
        %v2657 = vpop.f32.mrf.mxu0
        %v2658 = vadd.f32 0.0, %v2657
        %v2659 = vpop.f32.mrf.mxu0
        %v2660 = vadd.f32 0.0, %v2659
        %2661 = vmatmul.bf16.gmra.mxu0 %v2626
        %v2662 = vpop.f32.mrf.mxu0
        %v2663 = vadd.f32 0.0, %v2662
        %v2664 = vpop.f32.mrf.mxu0
        %v2665 = vadd.f32 0.0, %v2664
        %2666 = vdwg.mxu0
        %v2668 = vunpack.c.l.b16 %v2550
        %v2669 = vpack.c.b16 %v2578, %v2668
        %v2671 = vshrl.u32 %v2669, 16
        %v2673 = vrot.slane %v2671, 2
        %v2674 = vshll.u32 %v2669, 16
        %v2676 = vrot.slane %v2674, 3
        %v2677 = vor.u32 %v2673, %v2676
        %v2679 = vshrl.u32 %v2591, 16
        %v2681 = vrot.slane %v2679, 2
        %v2682 = vshll.u32 %v2591, 16
        %v2684 = vrot.slane %v2682, 3
        %v2685 = vor.u32 %v2681, %v2684
        %v2686 = vsel %vm1273, %v2677, %v2685
        %v2688 = vshrl.u32 %v2592, 16
        %v2690 = vrot.slane %v2688, 2
        %v2691 = vshll.u32 %v2592, 16
        %v2693 = vrot.slane %v2691, 3
        %v2694 = vor.u32 %v2690, %v2693
        %v2695 = vsel %vm1273, %v2685, %v2694
        %v2697 = vshrl.u32 %v2593, 16
        %v2699 = vrot.slane %v2697, 2
        %v2700 = vshll.u32 %v2593, 16
        %v2702 = vrot.slane %v2700, 3
        %v2703 = vor.u32 %v2699, %v2702
        %v2704 = vsel %vm1273, %v2694, %v2703
        %v2706 = vshrl.u32 %v2594, 16
        %v2708 = vrot.slane %v2706, 2
        %v2709 = vshll.u32 %v2594, 16
        %v2711 = vrot.slane %v2709, 3
        %v2712 = vor.u32 %v2708, %v2711
        %v2713 = vsel %vm1273, %v2703, %v2712
        %v2715 = vshrl.u32 %v2595, 16
        %v2717 = vrot.slane %v2715, 2
        %v2718 = vshll.u32 %v2595, 16
        %v2720 = vrot.slane %v2718, 3
        %v2721 = vor.u32 %v2717, %v2720
        %v2722 = vsel %vm1273, %v2712, %v2721
        %v2724 = vshrl.u32 %v2596, 16
        %v2726 = vrot.slane %v2724, 2
        %v2727 = vshll.u32 %v2596, 16
        %v2729 = vrot.slane %v2727, 3
        %v2730 = vor.u32 %v2726, %v2729
        %v2731 = vsel %vm1273, %v2721, %v2730
        %v2733 = vsel %vm1212, %v2686, 0
        %v2736 = vsel %vm1212, %v2695, 0
        %v2739 = vsel %vm1212, %v2704, 0
        %v2742 = vsel %vm1212, %v2713, 0
        %v2745 = vsel %vm1212, %v2722, 0
        %v2748 = vsel %vm1212, %v2731, 0
        %2750 = vmatpush.bf16.msra.mxu0 0
        %2751 = vmatpush.bf16.msra.mxu0 0
        %2752 = vmatpush.bf16.msra.mxu0 0
        %2753 = vmatpush.bf16.msra.mxu0 0
        %2754 = vmatpush.bf16.msra.mxu0 0
        %2755 = vmatpush.bf16.msra.mxu0 0
        %2756 = vmatpush.bf16.msra.mxu0 %v1345
        %2757 = vmatpush.bf16.msra.mxu0 %v1344
        %2758 = vmatmul.bf16.gmra.mxu0 %v2733
        %v2759 = vpop.f32.mrf.mxu0
        %v2760 = vadd.f32 %v2638, %v2759
        %v2761 = vpop.f32.mrf.mxu0
        %v2762 = vadd.f32 %v2640, %v2761
        %2763 = vmatmul.bf16.gmra.mxu0 %v2736
        %v2764 = vpop.f32.mrf.mxu0
        %v2765 = vadd.f32 %v2643, %v2764
        %v2766 = vpop.f32.mrf.mxu0
        %v2767 = vadd.f32 %v2645, %v2766
        %2768 = vmatmul.bf16.gmra.mxu0 %v2739
        %v2769 = vpop.f32.mrf.mxu0
        %v2770 = vadd.f32 %v2648, %v2769
        %v2771 = vpop.f32.mrf.mxu0
        %v2772 = vadd.f32 %v2650, %v2771
        %2773 = vmatmul.bf16.gmra.mxu0 %v2742
        %v2774 = vpop.f32.mrf.mxu0
        %v2775 = vadd.f32 %v2653, %v2774
        %v2776 = vpop.f32.mrf.mxu0
        %v2777 = vadd.f32 %v2655, %v2776
        %2778 = vmatmul.bf16.gmra.mxu0 %v2745
        %v2779 = vpop.f32.mrf.mxu0
        %v2780 = vadd.f32 %v2658, %v2779
        %v2781 = vpop.f32.mrf.mxu0
        %v2782 = vadd.f32 %v2660, %v2781
        %2783 = vmatmul.bf16.gmra.mxu0 %v2748
        %v2784 = vpop.f32.mrf.mxu0
        %v2785 = vadd.f32 %v2663, %v2784
        %v2786 = vpop.f32.mrf.mxu0
        %v2787 = vadd.f32 %v2665, %v2786
        %2788 = vdwg.mxu0
        %v2789 = vld [vmem:[#allocation2 + $0x64] sm:$0xf]
        %v2791 = vunpack.c.l.b16 %v2789
        %v2792 = vpack.c.b16 %v2791, %v2791
        %v2794 = vshrl.u32 %v2590, 16
        %v2796 = vrot.slane %v2794, 3
        %v2797 = vshll.u32 %v2590, 16
        %v2799 = vrot.slane %v2797, 4
        %v2800 = vor.u32 %v2796, %v2799
        %v2801 = vrot.slane %v2679, 3
        %v2802 = vrot.slane %v2682, 4
        %v2803 = vor.u32 %v2801, %v2802
        %v2804 = vsel %vm1414, %v2800, %v2803
        %v2805 = vrot.slane %v2688, 3
        %v2806 = vrot.slane %v2691, 4
        %v2807 = vor.u32 %v2805, %v2806
        %v2808 = vsel %vm1414, %v2803, %v2807
        %v2809 = vrot.slane %v2697, 3
        %v2810 = vrot.slane %v2700, 4
        %v2811 = vor.u32 %v2809, %v2810
        %v2812 = vsel %vm1414, %v2807, %v2811
        %v2813 = vrot.slane %v2706, 3
        %v2814 = vrot.slane %v2709, 4
        %v2815 = vor.u32 %v2813, %v2814
        %v2816 = vsel %vm1414, %v2811, %v2815
        %v2817 = vrot.slane %v2715, 3
        %v2818 = vrot.slane %v2718, 4
        %v2819 = vor.u32 %v2817, %v2818
        %v2820 = vsel %vm1414, %v2815, %v2819
        %v2822 = vshrl.u32 %v2792, 16
        %v2824 = vrot.slane %v2822, 3
        %v2825 = vshll.u32 %v2792, 16
        %v2827 = vrot.slane %v2825, 4
        %v2828 = vor.u32 %v2824, %v2827
        %v2829 = vsel %vm1414, %v2819, %v2828
        %v2831 = vsel %vm1212, %v2804, 0
        %v2834 = vsel %vm1212, %v2808, 0
        %v2837 = vsel %vm1212, %v2812, 0
        %v2840 = vsel %vm1212, %v2816, 0
        %v2843 = vsel %vm1212, %v2820, 0
        %v2846 = vsel %vm1212, %v2829, 0
        %2848 = vmatpush.bf16.msra.mxu0 0
        %2849 = vmatpush.bf16.msra.mxu0 0
        %2850 = vmatpush.bf16.msra.mxu0 0
        %2851 = vmatpush.bf16.msra.mxu0 0
        %2852 = vmatpush.bf16.msra.mxu0 0
        %2853 = vmatpush.bf16.msra.mxu0 0
        %2854 = vmatpush.bf16.msra.mxu0 %v1461
        %2855 = vmatpush.bf16.msra.mxu0 %v1460
        %2856 = vmatmul.bf16.gmra.mxu0 %v2831
        %v2857 = vpop.f32.mrf.mxu0
        %v2858 = vadd.f32 0.0, %v2857
        %v2859 = vpop.f32.mrf.mxu0
        %v2860 = vadd.f32 0.0, %v2859
        %2861 = vmatmul.bf16.gmra.mxu0 %v2834
        %v2862 = vpop.f32.mrf.mxu0
        %v2863 = vadd.f32 0.0, %v2862
        %v2864 = vpop.f32.mrf.mxu0
        %v2865 = vadd.f32 0.0, %v2864
        %2866 = vmatmul.bf16.gmra.mxu0 %v2837
        %v2867 = vpop.f32.mrf.mxu0
        %v2868 = vadd.f32 0.0, %v2867
        %v2869 = vpop.f32.mrf.mxu0
        %v2870 = vadd.f32 0.0, %v2869
        %2871 = vmatmul.bf16.gmra.mxu0 %v2840
        %v2872 = vpop.f32.mrf.mxu0
        %v2873 = vadd.f32 0.0, %v2872
        %v2874 = vpop.f32.mrf.mxu0
        %v2875 = vadd.f32 0.0, %v2874
        %2876 = vmatmul.bf16.gmra.mxu0 %v2843
        %v2877 = vpop.f32.mrf.mxu0
        %v2878 = vadd.f32 0.0, %v2877
        %v2879 = vpop.f32.mrf.mxu0
        %v2880 = vadd.f32 0.0, %v2879
        %2881 = vmatmul.bf16.gmra.mxu0 %v2846
        %v2882 = vpop.f32.mrf.mxu0
        %v2883 = vadd.f32 0.0, %v2882
        %v2884 = vpop.f32.mrf.mxu0
        %v2885 = vadd.f32 0.0, %v2884
        %2886 = vdwg.mxu0
        %v2887 = vadd.f32 %v2760, %v2858
        %v2888 = vadd.f32 %v2762, %v2860
        %v2889 = vadd.f32 %v2765, %v2863
        %v2890 = vadd.f32 %v2767, %v2865
        %v2891 = vadd.f32 %v2770, %v2868
        %v2892 = vadd.f32 %v2772, %v2870
        %v2893 = vadd.f32 %v2775, %v2873
        %v2894 = vadd.f32 %v2777, %v2875
        %v2895 = vadd.f32 %v2780, %v2878
        %v2896 = vadd.f32 %v2782, %v2880
        %v2897 = vadd.f32 %v2785, %v2883
        %v2898 = vadd.f32 %v2787, %v2885
        %v2899 = vld [vmem:[#allocation2 + $0x3c] sm:$0x8]
        %v2900 = vld [vmem:[#allocation2 + $0x40] sm:$0xf]
        %v2901 = vld [vmem:[#allocation2 + $0x44] sm:$0xf]
        %v2902 = vld [vmem:[#allocation2 + $0x48] sm:$0xf]
        %v2903 = vld [vmem:[#allocation2 + $0x4c] sm:$0xf]
        %v2904 = vld [vmem:[#allocation2 + $0x50] sm:$0xf]
        %v2905 = vld [vmem:[#allocation2 + $0x54] sm:$0xf]
        %v2906 = vld [vmem:[#allocation2 + $0x58] sm:$0xf]
        %v2907 = vld [vmem:[#allocation2 + $0x5c] sm:$0xf]
        %v2908 = vld [vmem:[#allocation2 + $0x60] sm:$0xf]
        %v2909 = vld [vmem:[#allocation2 + $0x64] sm:$0xf]
        %v2910 = vld [vmem:[#allocation2 + $0x68] sm:$0xf]
        %v2911 = vld [vmem:[#allocation2 + $0x6c] sm:$0xf]
        %v2925 = vunpack.c.l.b16 %v2899
        %v2926 = vunpack.c.l.b16 %v2900
        %v2927 = vunpack.c.l.b16 %v2901
        %v2928 = vunpack.c.l.b16 %v2902
        %v2929 = vunpack.c.l.b16 %v2903
        %v2930 = vunpack.c.l.b16 %v2904
        %v2931 = vunpack.c.l.b16 %v2905
        %v2932 = vunpack.c.l.b16 %v2906
        %v2933 = vunpack.c.l.b16 %v2907
        %v2934 = vunpack.c.l.b16 %v2908
        %v2935 = vunpack.c.l.b16 %v2909
        %v2936 = vunpack.c.l.b16 %v2910
        %v2937 = vunpack.c.l.b16 %v2911
        %v2938 = vpack.c.b16 %v2926, %v2925
        %v2939 = vpack.c.b16 %v2928, %v2927
        %v2940 = vpack.c.b16 %v2930, %v2929
        %v2941 = vpack.c.b16 %v2932, %v2931
        %v2942 = vpack.c.b16 %v2934, %v2933
        %v2943 = vpack.c.b16 %v2936, %v2935
        %v2944 = vpack.c.b16 %v2937, %v2937
        %v2946 = vshrl.u32 %v2938, 16
        %v2948 = vrot.slane %v2946, 3
        %v2949 = vshll.u32 %v2938, 16
        %v2951 = vrot.slane %v2949, 4
        %v2952 = vor.u32 %v2948, %v2951
        %v2954 = vshrl.u32 %v2939, 16
        %v2956 = vrot.slane %v2954, 3
        %v2957 = vshll.u32 %v2939, 16
        %v2959 = vrot.slane %v2957, 4
        %v2960 = vor.u32 %v2956, %v2959
        %v2961 = vsel %vm1414, %v2952, %v2960
        %v2963 = vshrl.u32 %v2940, 16
        %v2965 = vrot.slane %v2963, 3
        %v2966 = vshll.u32 %v2940, 16
        %v2968 = vrot.slane %v2966, 4
        %v2969 = vor.u32 %v2965, %v2968
        %v2970 = vsel %vm1414, %v2960, %v2969
        %v2972 = vshrl.u32 %v2941, 16
        %v2974 = vrot.slane %v2972, 3
        %v2975 = vshll.u32 %v2941, 16
        %v2977 = vrot.slane %v2975, 4
        %v2978 = vor.u32 %v2974, %v2977
        %v2979 = vsel %vm1414, %v2969, %v2978
        %v2981 = vshrl.u32 %v2942, 16
        %v2983 = vrot.slane %v2981, 3
        %v2984 = vshll.u32 %v2942, 16
        %v2986 = vrot.slane %v2984, 4
        %v2987 = vor.u32 %v2983, %v2986
        %v2988 = vsel %vm1414, %v2978, %v2987
        %v2990 = vshrl.u32 %v2943, 16
        %v2992 = vrot.slane %v2990, 3
        %v2993 = vshll.u32 %v2943, 16
        %v2995 = vrot.slane %v2993, 4
        %v2996 = vor.u32 %v2992, %v2995
        %v2997 = vsel %vm1414, %v2987, %v2996
        %v2999 = vshrl.u32 %v2944, 16
        %v3001 = vrot.slane %v2999, 3
        %v3002 = vshll.u32 %v2944, 16
        %v3004 = vrot.slane %v3002, 4
        %v3005 = vor.u32 %v3001, %v3004
        %v3006 = vsel %vm1414, %v2996, %v3005
        %v3008 = vsel %vm1212, %v2961, 0
        %v3011 = vsel %vm1212, %v2970, 0
        %v3014 = vsel %vm1212, %v2979, 0
        %v3017 = vsel %vm1212, %v2988, 0
        %v3020 = vsel %vm1212, %v2997, 0
        %v3023 = vsel %vm1212, %v3006, 0
        %3025 = vmatpush.bf16.msra.mxu0 0
        %3026 = vmatpush.bf16.msra.mxu0 0
        %3027 = vmatpush.bf16.msra.mxu0 0
        %3028 = vmatpush.bf16.msra.mxu0 0
        %3029 = vmatpush.bf16.msra.mxu0 0
        %3030 = vmatpush.bf16.msra.mxu0 0
        %3031 = vmatpush.bf16.msra.mxu0 %v1655
        %3032 = vmatpush.bf16.msra.mxu0 %v1654
        %3033 = vmatmul.bf16.gmra.mxu0 %v3008
        %v3034 = vpop.f32.mrf.mxu0
        %v3035 = vadd.f32 0.0, %v3034
        %v3036 = vpop.f32.mrf.mxu0
        %v3037 = vadd.f32 0.0, %v3036
        %3038 = vmatmul.bf16.gmra.mxu0 %v3011
        %v3039 = vpop.f32.mrf.mxu0
        %v3040 = vadd.f32 0.0, %v3039
        %v3041 = vpop.f32.mrf.mxu0
        %v3042 = vadd.f32 0.0, %v3041
        %3043 = vmatmul.bf16.gmra.mxu0 %v3014
        %v3044 = vpop.f32.mrf.mxu0
        %v3045 = vadd.f32 0.0, %v3044
        %v3046 = vpop.f32.mrf.mxu0
        %v3047 = vadd.f32 0.0, %v3046
        %3048 = vmatmul.bf16.gmra.mxu0 %v3017
        %v3049 = vpop.f32.mrf.mxu0
        %v3050 = vadd.f32 0.0, %v3049
        %v3051 = vpop.f32.mrf.mxu0
        %v3052 = vadd.f32 0.0, %v3051
        %3053 = vmatmul.bf16.gmra.mxu0 %v3020
        %v3054 = vpop.f32.mrf.mxu0
        %v3055 = vadd.f32 0.0, %v3054
        %v3056 = vpop.f32.mrf.mxu0
        %v3057 = vadd.f32 0.0, %v3056
        %3058 = vmatmul.bf16.gmra.mxu0 %v3023
        %v3059 = vpop.f32.mrf.mxu0
        %v3060 = vadd.f32 0.0, %v3059
        %v3061 = vpop.f32.mrf.mxu0
        %v3062 = vadd.f32 0.0, %v3061
        %3063 = vdwg.mxu0
        %v3064 = vadd.f32 %v2887, %v3035
        %v3065 = vadd.f32 %v2888, %v3037
        %v3066 = vadd.f32 %v2889, %v3040
        %v3067 = vadd.f32 %v2890, %v3042
        %v3068 = vadd.f32 %v2891, %v3045
        %v3069 = vadd.f32 %v2892, %v3047
        %v3070 = vadd.f32 %v2893, %v3050
        %v3071 = vadd.f32 %v2894, %v3052
        %v3072 = vadd.f32 %v2895, %v3055
        %v3073 = vadd.f32 %v2896, %v3057
        %v3074 = vadd.f32 %v2897, %v3060
        %v3075 = vadd.f32 %v2898, %v3062
        %v3076 = vpack.c.b16 %v2927, %v2926
        %v3077 = vpack.c.b16 %v2929, %v2928
        %v3078 = vpack.c.b16 %v2931, %v2930
        %v3079 = vpack.c.b16 %v2933, %v2932
        %v3080 = vpack.c.b16 %v2935, %v2934
        %v3081 = vpack.c.b16 %v2937, %v2936
        %v3083 = vsel %vm1212, %v3076, 0
        %v3086 = vsel %vm1212, %v3077, 0
        %v3089 = vsel %vm1212, %v3078, 0
        %v3092 = vsel %vm1212, %v3079, 0
        %v3095 = vsel %vm1212, %v3080, 0
        %v3098 = vsel %vm1212, %v3081, 0
        %3100 = vmatpush.bf16.msra.mxu0 0
        %3101 = vmatpush.bf16.msra.mxu0 0
        %3102 = vmatpush.bf16.msra.mxu0 0
        %3103 = vmatpush.bf16.msra.mxu0 0
        %3104 = vmatpush.bf16.msra.mxu0 0
        %3105 = vmatpush.bf16.msra.mxu0 0
        %3106 = vmatpush.bf16.msra.mxu0 %v1747
        %3107 = vmatpush.bf16.msra.mxu0 %v1746
        %3108 = vmatmul.bf16.gmra.mxu0 %v3083
        %v3109 = vpop.f32.mrf.mxu0
        %v3110 = vadd.f32 0.0, %v3109
        %v3111 = vpop.f32.mrf.mxu0
        %v3112 = vadd.f32 0.0, %v3111
        %3113 = vmatmul.bf16.gmra.mxu0 %v3086
        %v3114 = vpop.f32.mrf.mxu0
        %v3115 = vadd.f32 0.0, %v3114
        %v3116 = vpop.f32.mrf.mxu0
        %v3117 = vadd.f32 0.0, %v3116
        %3118 = vmatmul.bf16.gmra.mxu0 %v3089
        %v3119 = vpop.f32.mrf.mxu0
        %v3120 = vadd.f32 0.0, %v3119
        %v3121 = vpop.f32.mrf.mxu0
        %v3122 = vadd.f32 0.0, %v3121
        %3123 = vmatmul.bf16.gmra.mxu0 %v3092
        %v3124 = vpop.f32.mrf.mxu0
        %v3125 = vadd.f32 0.0, %v3124
        %v3126 = vpop.f32.mrf.mxu0
        %v3127 = vadd.f32 0.0, %v3126
        %3128 = vmatmul.bf16.gmra.mxu0 %v3095
        %v3129 = vpop.f32.mrf.mxu0
        %v3130 = vadd.f32 0.0, %v3129
        %v3131 = vpop.f32.mrf.mxu0
        %v3132 = vadd.f32 0.0, %v3131
        %3133 = vmatmul.bf16.gmra.mxu0 %v3098
        %v3134 = vpop.f32.mrf.mxu0
        %v3135 = vadd.f32 0.0, %v3134
        %v3136 = vpop.f32.mrf.mxu0
        %v3137 = vadd.f32 0.0, %v3136
        %3138 = vdwg.mxu0
        %v3139 = vadd.f32 %v3064, %v3110
        %v3140 = vadd.f32 %v3065, %v3112
        %v3141 = vadd.f32 %v3066, %v3115
        %v3142 = vadd.f32 %v3067, %v3117
        %v3143 = vadd.f32 %v3068, %v3120
        %v3144 = vadd.f32 %v3069, %v3122
        %v3145 = vadd.f32 %v3070, %v3125
        %v3146 = vadd.f32 %v3071, %v3127
        %v3147 = vadd.f32 %v3072, %v3130
        %v3148 = vadd.f32 %v3073, %v3132
        %v3149 = vadd.f32 %v3074, %v3135
        %v3150 = vadd.f32 %v3075, %v3137
        %v3151 = vld [vmem:[#allocation2 + $0x40] sm:$0xf]
        %v3152 = vld [vmem:[#allocation2 + $0x44] sm:$0xf]
        %v3153 = vld [vmem:[#allocation2 + $0x48] sm:$0xf]
        %v3154 = vld [vmem:[#allocation2 + $0x4c] sm:$0xf]
        %v3155 = vld [vmem:[#allocation2 + $0x50] sm:$0xf]
        %v3156 = vld [vmem:[#allocation2 + $0x54] sm:$0xf]
        %v3157 = vld [vmem:[#allocation2 + $0x58] sm:$0xf]
        %v3158 = vld [vmem:[#allocation2 + $0x5c] sm:$0xf]
        %v3159 = vld [vmem:[#allocation2 + $0x60] sm:$0xf]
        %v3160 = vld [vmem:[#allocation2 + $0x64] sm:$0xf]
        %v3161 = vld [vmem:[#allocation2 + $0x68] sm:$0xf]
        %v3162 = vld [vmem:[#allocation2 + $0x6c] sm:$0xf]
        %v3163 = vld [vmem:[#allocation2 + $0x70] sm:$0x1]
        %v3177 = vunpack.c.l.b16 %v3151
        %v3178 = vunpack.c.l.b16 %v3152
        %v3179 = vunpack.c.l.b16 %v3153
        %v3180 = vunpack.c.l.b16 %v3154
        %v3181 = vunpack.c.l.b16 %v3155
        %v3182 = vunpack.c.l.b16 %v3156
        %v3183 = vunpack.c.l.b16 %v3157
        %v3184 = vunpack.c.l.b16 %v3158
        %v3185 = vunpack.c.l.b16 %v3159
        %v3186 = vunpack.c.l.b16 %v3160
        %v3187 = vunpack.c.l.b16 %v3161
        %v3188 = vunpack.c.l.b16 %v3162
        %v3189 = vunpack.c.l.b16 %v3163
        %v3190 = vpack.c.b16 %v3178, %v3177
        %v3191 = vpack.c.b16 %v3180, %v3179
        %v3192 = vpack.c.b16 %v3182, %v3181
        %v3193 = vpack.c.b16 %v3184, %v3183
        %v3194 = vpack.c.b16 %v3186, %v3185
        %v3195 = vpack.c.b16 %v3188, %v3187
        %v3196 = vpack.c.b16 %v3189, %v3189
        %v3198 = vshrl.u32 %v3190, 16
        %v3200 = vshll.u32 %v3190, 16
        %v3202 = vrot.slane %v3200, 1
        %v3203 = vor.u32 %v3198, %v3202
        %v3205 = vshll.u32 %v3191, 16
        %v3207 = vrot.slane %v3205, 1
        %v3208 = vsel %vm1870, %v3203, %v3207
        %v3209 = vshrl.u32 %v3191, 16
        %v3211 = vor.u32 %v3209, %v3207
        %v3213 = vshll.u32 %v3192, 16
        %v3215 = vrot.slane %v3213, 1
        %v3216 = vsel %vm1870, %v3211, %v3215
        %v3217 = vshrl.u32 %v3192, 16
        %v3219 = vor.u32 %v3217, %v3215
        %v3221 = vshll.u32 %v3193, 16
        %v3223 = vrot.slane %v3221, 1
        %v3224 = vsel %vm1870, %v3219, %v3223
        %v3225 = vshrl.u32 %v3193, 16
        %v3227 = vor.u32 %v3225, %v3223
        %v3229 = vshll.u32 %v3194, 16
        %v3231 = vrot.slane %v3229, 1
        %v3232 = vsel %vm1870, %v3227, %v3231
        %v3233 = vshrl.u32 %v3194, 16
        %v3235 = vor.u32 %v3233, %v3231
        %v3237 = vshll.u32 %v3195, 16
        %v3239 = vrot.slane %v3237, 1
        %v3240 = vsel %vm1870, %v3235, %v3239
        %v3241 = vshrl.u32 %v3195, 16
        %v3243 = vor.u32 %v3241, %v3239
        %v3245 = vshll.u32 %v3196, 16
        %v3247 = vrot.slane %v3245, 1
        %v3248 = vsel %vm1870, %v3243, %v3247
        %v3250 = vsel %vm1212, %v3208, 0
        %v3253 = vsel %vm1212, %v3216, 0
        %v3256 = vsel %vm1212, %v3224, 0
        %v3259 = vsel %vm1212, %v3232, 0
        %v3262 = vsel %vm1212, %v3240, 0
        %v3265 = vsel %vm1212, %v3248, 0
        %3267 = vmatpush.bf16.msra.mxu0 0
        %3268 = vmatpush.bf16.msra.mxu0 0
        %3269 = vmatpush.bf16.msra.mxu0 0
        %3270 = vmatpush.bf16.msra.mxu0 0
        %3271 = vmatpush.bf16.msra.mxu0 0
        %3272 = vmatpush.bf16.msra.mxu0 0
        %3273 = vmatpush.bf16.msra.mxu0 %v1932
        %3274 = vmatpush.bf16.msra.mxu0 %v1931
        %3275 = vmatmul.bf16.gmra.mxu0 %v3250
        %v3276 = vpop.f32.mrf.mxu0
        %v3277 = vadd.f32 0.0, %v3276
        %v3278 = vpop.f32.mrf.mxu0
        %v3279 = vadd.f32 0.0, %v3278
        %3280 = vmatmul.bf16.gmra.mxu0 %v3253
        %v3281 = vpop.f32.mrf.mxu0
        %v3282 = vadd.f32 0.0, %v3281
        %v3283 = vpop.f32.mrf.mxu0
        %v3284 = vadd.f32 0.0, %v3283
        %3285 = vmatmul.bf16.gmra.mxu0 %v3256
        %v3286 = vpop.f32.mrf.mxu0
        %v3287 = vadd.f32 0.0, %v3286
        %v3288 = vpop.f32.mrf.mxu0
        %v3289 = vadd.f32 0.0, %v3288
        %3290 = vmatmul.bf16.gmra.mxu0 %v3259
        %v3291 = vpop.f32.mrf.mxu0
        %v3292 = vadd.f32 0.0, %v3291
        %v3293 = vpop.f32.mrf.mxu0
        %v3294 = vadd.f32 0.0, %v3293
        %3295 = vmatmul.bf16.gmra.mxu0 %v3262
        %v3296 = vpop.f32.mrf.mxu0
        %v3297 = vadd.f32 0.0, %v3296
        %v3298 = vpop.f32.mrf.mxu0
        %v3299 = vadd.f32 0.0, %v3298
        %3300 = vmatmul.bf16.gmra.mxu0 %v3265
        %v3301 = vpop.f32.mrf.mxu0
        %v3302 = vadd.f32 0.0, %v3301
        %v3303 = vpop.f32.mrf.mxu0
        %v3304 = vadd.f32 0.0, %v3303
        %3305 = vdwg.mxu0
        %v3306 = vadd.f32 %v3139, %v3277
        %v3307 = vadd.f32 %v3140, %v3279
        %v3308 = vadd.f32 %v3141, %v3282
        %v3309 = vadd.f32 %v3142, %v3284
        %v3310 = vadd.f32 %v3143, %v3287
        %v3311 = vadd.f32 %v3144, %v3289
        %v3312 = vadd.f32 %v3145, %v3292
        %v3313 = vadd.f32 %v3146, %v3294
        %v3314 = vadd.f32 %v3147, %v3297
        %v3315 = vadd.f32 %v3148, %v3299
        %v3316 = vadd.f32 %v3149, %v3302
        %v3317 = vadd.f32 %v3150, %v3304
        %v3318 = vld [vmem:[#allocation2 + $0x48] sm:$0xf]
        %v3319 = vld [vmem:[#allocation2 + $0x4c] sm:$0xf]
        %v3320 = vld [vmem:[#allocation2 + $0x50] sm:$0xf]
        %v3321 = vld [vmem:[#allocation2 + $0x54] sm:$0xf]
        %v3322 = vld [vmem:[#allocation2 + $0x58] sm:$0xf]
        %v3323 = vld [vmem:[#allocation2 + $0x5c] sm:$0xf]
        %v3324 = vld [vmem:[#allocation2 + $0x60] sm:$0xf]
        %v3325 = vld [vmem:[#allocation2 + $0x64] sm:$0xf]
        %v3326 = vld [vmem:[#allocation2 + $0x68] sm:$0xf]
        %v3327 = vld [vmem:[#allocation2 + $0x6c] sm:$0xf]
        %v3328 = vld [vmem:[#allocation2 + $0x70] sm:$0xf]
        %v3329 = vld [vmem:[#allocation2 + $0x74] sm:$0xf]
        %v3330 = vld [vmem:[#allocation2 + $0x78] sm:$0x1]
        %v3344 = vunpack.c.l.b16 %v3318
        %v3345 = vunpack.c.l.b16 %v3319
        %v3346 = vunpack.c.l.b16 %v3320
        %v3347 = vunpack.c.l.b16 %v3321
        %v3348 = vunpack.c.l.b16 %v3322
        %v3349 = vunpack.c.l.b16 %v3323
        %v3350 = vunpack.c.l.b16 %v3324
        %v3351 = vunpack.c.l.b16 %v3325
        %v3352 = vunpack.c.l.b16 %v3326
        %v3353 = vunpack.c.l.b16 %v3327
        %v3354 = vunpack.c.l.b16 %v3328
        %v3355 = vunpack.c.l.b16 %v3329
        %v3356 = vunpack.c.l.b16 %v3330
        %v3357 = vpack.c.b16 %v3345, %v3344
        %v3358 = vpack.c.b16 %v3347, %v3346
        %v3359 = vpack.c.b16 %v3349, %v3348
        %v3360 = vpack.c.b16 %v3351, %v3350
        %v3361 = vpack.c.b16 %v3353, %v3352
        %v3362 = vpack.c.b16 %v3355, %v3354
        %v3363 = vpack.c.b16 %v3356, %v3356
        %v3365 = vshrl.u32 %v3357, 16
        %v3367 = vshll.u32 %v3357, 16
        %v3369 = vrot.slane %v3367, 1
        %v3370 = vor.u32 %v3365, %v3369
        %v3372 = vshll.u32 %v3358, 16
        %v3374 = vrot.slane %v3372, 1
        %v3375 = vsel %vm1870, %v3370, %v3374
        %v3376 = vshrl.u32 %v3358, 16
        %v3378 = vor.u32 %v3376, %v3374
        %v3380 = vshll.u32 %v3359, 16
        %v3382 = vrot.slane %v3380, 1
        %v3383 = vsel %vm1870, %v3378, %v3382
        %v3384 = vshrl.u32 %v3359, 16
        %v3386 = vor.u32 %v3384, %v3382
        %v3388 = vshll.u32 %v3360, 16
        %v3390 = vrot.slane %v3388, 1
        %v3391 = vsel %vm1870, %v3386, %v3390
        %v3392 = vshrl.u32 %v3360, 16
        %v3394 = vor.u32 %v3392, %v3390
        %v3396 = vshll.u32 %v3361, 16
        %v3398 = vrot.slane %v3396, 1
        %v3399 = vsel %vm1870, %v3394, %v3398
        %v3400 = vshrl.u32 %v3361, 16
        %v3402 = vor.u32 %v3400, %v3398
        %v3404 = vshll.u32 %v3362, 16
        %v3406 = vrot.slane %v3404, 1
        %v3407 = vsel %vm1870, %v3402, %v3406
        %v3408 = vshrl.u32 %v3362, 16
        %v3410 = vor.u32 %v3408, %v3406
        %v3412 = vshll.u32 %v3363, 16
        %v3414 = vrot.slane %v3412, 1
        %v3415 = vsel %vm1870, %v3410, %v3414
        %v3417 = vsel %vm1212, %v3375, 0
        %v3420 = vsel %vm1212, %v3383, 0
        %v3423 = vsel %vm1212, %v3391, 0
        %v3426 = vsel %vm1212, %v3399, 0
        %v3429 = vsel %vm1212, %v3407, 0
        %v3432 = vsel %vm1212, %v3415, 0
        %3434 = vmatpush.bf16.msra.mxu0 0
        %3435 = vmatpush.bf16.msra.mxu0 0
        %3436 = vmatpush.bf16.msra.mxu0 0
        %3437 = vmatpush.bf16.msra.mxu0 0
        %3438 = vmatpush.bf16.msra.mxu0 0
        %3439 = vmatpush.bf16.msra.mxu0 0
        %3440 = vmatpush.bf16.msra.mxu0 %v2116
        %3441 = vmatpush.bf16.msra.mxu0 %v2115
        %3442 = vmatmul.bf16.gmra.mxu0 %v3417
        %v3443 = vpop.f32.mrf.mxu0
        %v3444 = vadd.f32 0.0, %v3443
        %v3445 = vpop.f32.mrf.mxu0
        %v3446 = vadd.f32 0.0, %v3445
        %3447 = vmatmul.bf16.gmra.mxu0 %v3420
        %v3448 = vpop.f32.mrf.mxu0
        %v3449 = vadd.f32 0.0, %v3448
        %v3450 = vpop.f32.mrf.mxu0
        %v3451 = vadd.f32 0.0, %v3450
        %3452 = vmatmul.bf16.gmra.mxu0 %v3423
        %v3453 = vpop.f32.mrf.mxu0
        %v3454 = vadd.f32 0.0, %v3453
        %v3455 = vpop.f32.mrf.mxu0
        %v3456 = vadd.f32 0.0, %v3455
        %3457 = vmatmul.bf16.gmra.mxu0 %v3426
        %v3458 = vpop.f32.mrf.mxu0
        %v3459 = vadd.f32 0.0, %v3458
        %v3460 = vpop.f32.mrf.mxu0
        %v3461 = vadd.f32 0.0, %v3460
        %3462 = vmatmul.bf16.gmra.mxu0 %v3429
        %v3463 = vpop.f32.mrf.mxu0
        %v3464 = vadd.f32 0.0, %v3463
        %v3465 = vpop.f32.mrf.mxu0
        %v3466 = vadd.f32 0.0, %v3465
        %3467 = vmatmul.bf16.gmra.mxu0 %v3432
        %v3468 = vpop.f32.mrf.mxu0
        %v3469 = vadd.f32 0.0, %v3468
        %v3470 = vpop.f32.mrf.mxu0
        %v3471 = vadd.f32 0.0, %v3470
        %3472 = vdwg.mxu0
        %v3473 = vadd.f32 %v3306, %v3444
        %v3474 = vadd.f32 %v3307, %v3446
        %v3475 = vadd.f32 %v3308, %v3449
        %v3476 = vadd.f32 %v3309, %v3451
        %v3477 = vadd.f32 %v3310, %v3454
        %v3478 = vadd.f32 %v3311, %v3456
        %v3479 = vadd.f32 %v3312, %v3459
        %v3480 = vadd.f32 %v3313, %v3461
        %v3481 = vadd.f32 %v3314, %v3464
        %v3482 = vadd.f32 %v3315, %v3466
        %v3483 = vadd.f32 %v3316, %v3469
        %v3484 = vadd.f32 %v3317, %v3471
        %v3485 = vld [vmem:[#allocation2 + $0x48] sm:$0xe]
        %v3487 = vunpack.c.l.b16 %v3485
        %v3488 = vpack.c.b16 %v3345, %v3487
        %v3489 = vrot.slane %v3488, 1
        %v3490 = vrot.slane %v3358, 1
        %v3491 = vsel %vm2197, %v3489, %v3490
        %v3492 = vrot.slane %v3359, 1
        %v3493 = vsel %vm2197, %v3490, %v3492
        %v3494 = vrot.slane %v3360, 1
        %v3495 = vsel %vm2197, %v3492, %v3494
        %v3496 = vrot.slane %v3361, 1
        %v3497 = vsel %vm2197, %v3494, %v3496
        %v3498 = vrot.slane %v3362, 1
        %v3499 = vsel %vm2197, %v3496, %v3498
        %v3500 = vrot.slane %v3363, 1
        %v3501 = vsel %vm2197, %v3498, %v3500
        %v3503 = vsel %vm1212, %v3491, 0
        %v3506 = vsel %vm1212, %v3493, 0
        %v3509 = vsel %vm1212, %v3495, 0
        %v3512 = vsel %vm1212, %v3497, 0
        %v3515 = vsel %vm1212, %v3499, 0
        %v3518 = vsel %vm1212, %v3501, 0
        %3520 = vmatpush.bf16.msra.mxu0 0
        %3521 = vmatpush.bf16.msra.mxu0 0
        %3522 = vmatpush.bf16.msra.mxu0 0
        %3523 = vmatpush.bf16.msra.mxu0 0
        %3524 = vmatpush.bf16.msra.mxu0 0
        %3525 = vmatpush.bf16.msra.mxu0 0
        %3526 = vmatpush.bf16.msra.mxu0 %v2220
        %3527 = vmatpush.bf16.msra.mxu0 %v2219
        %3528 = vmatmul.bf16.gmra.mxu0 %v3503
        %v3529 = vpop.f32.mrf.mxu0
        %v3530 = vadd.f32 0.0, %v3529
        %v3531 = vpop.f32.mrf.mxu0
        %v3532 = vadd.f32 0.0, %v3531
        %3533 = vmatmul.bf16.gmra.mxu0 %v3506
        %v3534 = vpop.f32.mrf.mxu0
        %v3535 = vadd.f32 0.0, %v3534
        %v3536 = vpop.f32.mrf.mxu0
        %v3537 = vadd.f32 0.0, %v3536
        %3538 = vmatmul.bf16.gmra.mxu0 %v3509
        %v3539 = vpop.f32.mrf.mxu0
        %v3540 = vadd.f32 0.0, %v3539
        %v3541 = vpop.f32.mrf.mxu0
        %v3542 = vadd.f32 0.0, %v3541
        %3543 = vmatmul.bf16.gmra.mxu0 %v3512
        %v3544 = vpop.f32.mrf.mxu0
        %v3545 = vadd.f32 0.0, %v3544
        %v3546 = vpop.f32.mrf.mxu0
        %v3547 = vadd.f32 0.0, %v3546
        %3548 = vmatmul.bf16.gmra.mxu0 %v3515
        %v3549 = vpop.f32.mrf.mxu0
        %v3550 = vadd.f32 0.0, %v3549
        %v3551 = vpop.f32.mrf.mxu0
        %v3552 = vadd.f32 0.0, %v3551
        %3553 = vmatmul.bf16.gmra.mxu0 %v3518
        %v3554 = vpop.f32.mrf.mxu0
        %v3555 = vadd.f32 0.0, %v3554
        %v3556 = vpop.f32.mrf.mxu0
        %v3557 = vadd.f32 0.0, %v3556
        %3558 = vdwg.mxu0
        %v3559 = vadd.f32 %v3473, %v3530
        %v3560 = vadd.f32 %v3474, %v3532
        %v3561 = vadd.f32 %v3475, %v3535
        %v3562 = vadd.f32 %v3476, %v3537
        %v3563 = vadd.f32 %v3477, %v3540
        %v3564 = vadd.f32 %v3478, %v3542
        %v3565 = vadd.f32 %v3479, %v3545
        %v3566 = vadd.f32 %v3480, %v3547
        %v3567 = vadd.f32 %v3481, %v3550
        %v3568 = vadd.f32 %v3482, %v3552
        %v3569 = vadd.f32 %v3483, %v3555
        %v3570 = vadd.f32 %v3484, %v3557
        %v3571 = vld [vmem:[#allocation2 + $0x78] sm:$0x3]
        %v3573 = vunpack.c.l.b16 %v3571
        %v3574 = vpack.c.b16 %v3573, %v3573
        %v3576 = vshrl.u32 %v3488, 16
        %v3578 = vrot.slane %v3576, 1
        %v3579 = vshll.u32 %v3488, 16
        %v3581 = vrot.slane %v3579, 2
        %v3582 = vor.u32 %v3578, %v3581
        %v3583 = vrot.slane %v3376, 1
        %v3584 = vrot.slane %v3372, 2
        %v3585 = vor.u32 %v3583, %v3584
        %v3586 = vsel %vm2301, %v3582, %v3585
        %v3587 = vrot.slane %v3384, 1
        %v3588 = vrot.slane %v3380, 2
        %v3589 = vor.u32 %v3587, %v3588
        %v3590 = vsel %vm2301, %v3585, %v3589
        %v3591 = vrot.slane %v3392, 1
        %v3592 = vrot.slane %v3388, 2
        %v3593 = vor.u32 %v3591, %v3592
        %v3594 = vsel %vm2301, %v3589, %v3593
        %v3595 = vrot.slane %v3400, 1
        %v3596 = vrot.slane %v3396, 2
        %v3597 = vor.u32 %v3595, %v3596
        %v3598 = vsel %vm2301, %v3593, %v3597
        %v3599 = vrot.slane %v3408, 1
        %v3600 = vrot.slane %v3404, 2
        %v3601 = vor.u32 %v3599, %v3600
        %v3602 = vsel %vm2301, %v3597, %v3601
        %v3604 = vshrl.u32 %v3574, 16
        %v3606 = vrot.slane %v3604, 1
        %v3607 = vshll.u32 %v3574, 16
        %v3609 = vrot.slane %v3607, 2
        %v3610 = vor.u32 %v3606, %v3609
        %v3611 = vsel %vm2301, %v3601, %v3610
        %v3613 = vsel %vm1212, %v3586, 0
        %v3616 = vsel %vm1212, %v3590, 0
        %v3619 = vsel %vm1212, %v3594, 0
        %v3622 = vsel %vm1212, %v3598, 0
        %v3625 = vsel %vm1212, %v3602, 0
        %v3628 = vsel %vm1212, %v3611, 0
        %3630 = vmatpush.bf16.msra.mxu0 0
        %3631 = vmatpush.bf16.msra.mxu0 0
        %3632 = vmatpush.bf16.msra.mxu0 0
        %3633 = vmatpush.bf16.msra.mxu0 0
        %3634 = vmatpush.bf16.msra.mxu0 0
        %3635 = vmatpush.bf16.msra.mxu0 0
        %3636 = vmatpush.bf16.msra.mxu0 %v2348
        %3637 = vmatpush.bf16.msra.mxu0 %v2347
        %3638 = vmatmul.bf16.gmra.mxu0 %v3613
        %v3639 = vpop.f32.mrf.mxu0
        %v3640 = vadd.f32 0.0, %v3639
        %v3641 = vpop.f32.mrf.mxu0
        %v3642 = vadd.f32 0.0, %v3641
        %3643 = vmatmul.bf16.gmra.mxu0 %v3616
        %v3644 = vpop.f32.mrf.mxu0
        %v3645 = vadd.f32 0.0, %v3644
        %v3646 = vpop.f32.mrf.mxu0
        %v3647 = vadd.f32 0.0, %v3646
        %3648 = vmatmul.bf16.gmra.mxu0 %v3619
        %v3649 = vpop.f32.mrf.mxu0
        %v3650 = vadd.f32 0.0, %v3649
        %v3651 = vpop.f32.mrf.mxu0
        %v3652 = vadd.f32 0.0, %v3651
        %3653 = vmatmul.bf16.gmra.mxu0 %v3622
        %v3654 = vpop.f32.mrf.mxu0
        %v3655 = vadd.f32 0.0, %v3654
        %v3656 = vpop.f32.mrf.mxu0
        %v3657 = vadd.f32 0.0, %v3656
        %3658 = vmatmul.bf16.gmra.mxu0 %v3625
        %v3659 = vpop.f32.mrf.mxu0
        %v3660 = vadd.f32 0.0, %v3659
        %v3661 = vpop.f32.mrf.mxu0
        %v3662 = vadd.f32 0.0, %v3661
        %3663 = vmatmul.bf16.gmra.mxu0 %v3628
        %v3664 = vpop.f32.mrf.mxu0
        %v3665 = vadd.f32 0.0, %v3664
        %v3666 = vpop.f32.mrf.mxu0
        %v3667 = vadd.f32 0.0, %v3666
        %3668 = vdwg.mxu0
        %v3669 = vadd.f32 %v3559, %v3640
        %v3670 = vadd.f32 %v3560, %v3642
        %v3671 = vadd.f32 %v3561, %v3645
        %v3672 = vadd.f32 %v3562, %v3647
        %v3673 = vadd.f32 %v3563, %v3650
        %v3674 = vadd.f32 %v3564, %v3652
        %v3675 = vadd.f32 %v3565, %v3655
        %v3676 = vadd.f32 %v3566, %v3657
        %v3677 = vadd.f32 %v3567, %v3660
        %v3678 = vadd.f32 %v3568, %v3662
        %v3679 = vadd.f32 %v3569, %v3665
        %v3680 = vadd.f32 %v3570, %v3667
        %v3681 = vadd.f32 %v3669, %v2422
        %v3682 = vadd.f32 %v3670, %v2422
        %v3683 = vadd.f32 %v3671, %v2422
        %v3684 = vadd.f32 %v3672, %v2422
        %v3685 = vadd.f32 %v3673, %v2422
        %v3686 = vadd.f32 %v3674, %v2422
        %v3687 = vadd.f32 %v3675, %v2422
        %v3688 = vadd.f32 %v3676, %v2422
        %v3689 = vadd.f32 %v3677, %v2422
        %v3690 = vadd.f32 %v3678, %v2422
        %v3691 = vadd.f32 %v3679, %v2422
        %v3692 = vadd.f32 %v3680, %v2422
        %v3693 = vmax.f32 %v3681, 0.0
        %v3694 = vmax.f32 %v3682, 0.0
        %v3695 = vmax.f32 %v3683, 0.0
        %v3696 = vmax.f32 %v3684, 0.0
        %v3697 = vmax.f32 %v3685, 0.0
        %v3698 = vmax.f32 %v3686, 0.0
        %v3699 = vmax.f32 %v3687, 0.0
        %v3700 = vmax.f32 %v3688, 0.0
        %v3701 = vmax.f32 %v3689, 0.0
        %v3702 = vmax.f32 %v3690, 0.0
        %v3703 = vmax.f32 %v3691, 0.0
        %v3704 = vmax.f32 %v3692, 0.0
        %v3705 = vld [vmem:[%s8 + $0x60] sm:$0xff]
        %v3706 = vld [vmem:[%s8 + $0x68] sm:$0xff]
        %v3707 = vld [vmem:[%s8 + $0x70] sm:$0xff]
        %v3708 = vld [vmem:[%s8 + $0x78] sm:$0xff]
        %v3709 = vld [vmem:[%s8 + $0x80] sm:$0xff]
        %v3710 = vld [vmem:[%s8 + $0x88] sm:$0xff]
        %v3711 = vld [vmem:[%s8 + $0x90] sm:$0xff]
        %v3712 = vld [vmem:[%s8 + $0x98] sm:$0xff]
        %v3713 = vld [vmem:[%s8 + $0xa0] sm:$0xff]
        %v3714 = vld [vmem:[%s8 + $0xa8] sm:$0xff]
        %v3715 = vld [vmem:[%s8 + $0xb0] sm:$0xff]
        %v3716 = vld [vmem:[%s8 + $0xb8] sm:$0xff]
        %3718 = vset.pattern.permute.xlu0 0
        %3719 = vperm.xlu0 %3718, %v3705
        %v3720 = vpop.permute.xlu0 %3719
        %3723 = vset.pattern.permute.xlu0 0
        %3724 = vperm.xlu0 %3723, %v3706
        %v3725 = vpop.permute.xlu0 %3724
        %3728 = vset.pattern.permute.xlu0 0
        %3729 = vperm.xlu0 %3728, %v3707
        %v3730 = vpop.permute.xlu0 %3729
        %3733 = vset.pattern.permute.xlu0 0
        %3734 = vperm.xlu0 %3733, %v3708
        %v3735 = vpop.permute.xlu0 %3734
        %3738 = vset.pattern.permute.xlu0 0
        %3739 = vperm.xlu0 %3738, %v3709
        %v3740 = vpop.permute.xlu0 %3739
        %3743 = vset.pattern.permute.xlu0 0
        %3744 = vperm.xlu0 %3743, %v3710
        %v3745 = vpop.permute.xlu0 %3744
        %3748 = vset.pattern.permute.xlu0 0
        %3749 = vperm.xlu0 %3748, %v3711
        %v3750 = vpop.permute.xlu0 %3749
        %3753 = vset.pattern.permute.xlu0 0
        %3754 = vperm.xlu0 %3753, %v3712
        %v3755 = vpop.permute.xlu0 %3754
        %3758 = vset.pattern.permute.xlu0 0
        %3759 = vperm.xlu0 %3758, %v3713
        %v3760 = vpop.permute.xlu0 %3759
        %3763 = vset.pattern.permute.xlu0 0
        %3764 = vperm.xlu0 %3763, %v3714
        %v3765 = vpop.permute.xlu0 %3764
        %3768 = vset.pattern.permute.xlu0 0
        %3769 = vperm.xlu0 %3768, %v3715
        %v3770 = vpop.permute.xlu0 %3769
        %3773 = vset.pattern.permute.xlu0 0
        %3774 = vperm.xlu0 %3773, %v3716
        %v3775 = vpop.permute.xlu0 %3774
        %v3777 = vmul.f32 %v3693, %v3720
        %v3778 = vmul.f32 %v3694, %v3725
        %v3779 = vmul.f32 %v3695, %v3730
        %v3780 = vmul.f32 %v3696, %v3735
        %v3781 = vmul.f32 %v3697, %v3740
        %v3782 = vmul.f32 %v3698, %v3745
        %v3783 = vmul.f32 %v3699, %v3750
        %v3784 = vmul.f32 %v3700, %v3755
        %v3785 = vmul.f32 %v3701, %v3760
        %v3786 = vmul.f32 %v3702, %v3765
        %v3787 = vmul.f32 %v3703, %v3770
        %v3788 = vmul.f32 %v3704, %v3775
        %v3789 = vadd.f32 %v3777, %v3778
        %v3790 = vadd.f32 %v3789, %v3779
        %v3791 = vadd.f32 %v3790, %v3780
        %v3792 = vadd.f32 %v3791, %v3781
        %v3793 = vadd.f32 %v3792, %v3782
        %v3794 = vadd.f32 %v3793, %v3783
        %v3795 = vadd.f32 %v3794, %v3784
        %v3796 = vadd.f32 %v3795, %v3785
        %v3797 = vadd.f32 %v3796, %v3786
        %v3798 = vadd.f32 %v3797, %v3787
        %v3799 = vadd.f32 %v3798, %v3788
        %v3800 = vrot.slane %v3799, 4
        %v3801 = vadd.f32 %v3799, %v3800
        %v3802 = vrot.slane %v3801, 2
        %v3803 = vadd.f32 %v3801, %v3802
        %v3804 = vrot.slane %v3803, 1
        %v3805 = vadd.f32 %v3803, %v3804
        %v3806 = vadd.f32 %v2549, %v3805
        %v3807 = vld [vmem:[#allocation2 + $0x64] sm:$0xc]
        %v3808 = vld [vmem:[#allocation2 + $0x68] sm:$0xf]
        %v3809 = vld [vmem:[#allocation2 + $0x6c] sm:$0xf]
        %v3810 = vld [vmem:[#allocation2 + $0x70] sm:$0xf]
        %v3811 = vld [vmem:[#allocation2 + $0x74] sm:$0xf]
        %v3812 = vld [vmem:[#allocation2 + $0x78] sm:$0xf]
        %v3813 = vld [vmem:[#allocation2 + $0x7c] sm:$0xf]
        %v3814 = vld [vmem:[#allocation2 + $0x80] sm:$0xf]
        %v3815 = vld [vmem:[#allocation2 + $0x84] sm:$0xf]
        %v3816 = vld [vmem:[#allocation2 + $0x88] sm:$0xf]
        %v3817 = vld [vmem:[#allocation2 + $0x8c] sm:$0xf]
        %v3818 = vld [vmem:[#allocation2 + $0x90] sm:$0xf]
        %v3819 = vld [vmem:[#allocation2 + $0x94] sm:$0x7]
        %v3820 = vld [vmem:[#allocation2 + $0x64] sm:$0x8]
        %v3834 = vunpack.c.l.b16 %v3820
        %v3835 = vunpack.c.l.b16 %v3808
        %v3836 = vunpack.c.l.b16 %v3809
        %v3837 = vunpack.c.l.b16 %v3810
        %v3838 = vunpack.c.l.b16 %v3811
        %v3839 = vunpack.c.l.b16 %v3812
        %v3840 = vunpack.c.l.b16 %v3813
        %v3841 = vunpack.c.l.b16 %v3814
        %v3842 = vunpack.c.l.b16 %v3815
        %v3843 = vunpack.c.l.b16 %v3816
        %v3844 = vunpack.c.l.b16 %v3817
        %v3845 = vunpack.c.l.b16 %v3818
        %v3846 = vunpack.c.l.b16 %v3819
        %v3847 = vpack.c.b16 %v3835, %v3834
        %v3848 = vpack.c.b16 %v3837, %v3836
        %v3849 = vpack.c.b16 %v3839, %v3838
        %v3850 = vpack.c.b16 %v3841, %v3840
        %v3851 = vpack.c.b16 %v3843, %v3842
        %v3852 = vpack.c.b16 %v3845, %v3844
        %v3853 = vpack.c.b16 %v3846, %v3846
        %v3854 = vrot.slane %v3847, 3
        %v3855 = vrot.slane %v3848, 3
        %v3856 = vsel %vm1186, %v3854, %v3855
        %v3857 = vrot.slane %v3849, 3
        %v3858 = vsel %vm1186, %v3855, %v3857
        %v3859 = vrot.slane %v3850, 3
        %v3860 = vsel %vm1186, %v3857, %v3859
        %v3861 = vrot.slane %v3851, 3
        %v3862 = vsel %vm1186, %v3859, %v3861
        %v3863 = vrot.slane %v3852, 3
        %v3864 = vsel %vm1186, %v3861, %v3863
        %v3865 = vrot.slane %v3853, 3
        %v3866 = vsel %vm1186, %v3863, %v3865
        %v3868 = vsel %vm1212, %v3856, 0
        %v3871 = vsel %vm1212, %v3858, 0
        %v3874 = vsel %vm1212, %v3860, 0
        %v3877 = vsel %vm1212, %v3862, 0
        %v3880 = vsel %vm1212, %v3864, 0
        %v3883 = vsel %vm1212, %v3866, 0
        %3885 = vmatpush.bf16.msra.mxu0 0
        %3886 = vmatpush.bf16.msra.mxu0 0
        %3887 = vmatpush.bf16.msra.mxu0 0
        %3888 = vmatpush.bf16.msra.mxu0 0
        %3889 = vmatpush.bf16.msra.mxu0 0
        %3890 = vmatpush.bf16.msra.mxu0 0
        %3891 = vmatpush.bf16.msra.mxu0 %v1209
        %3892 = vmatpush.bf16.msra.mxu0 %v1208
        %3893 = vmatmul.bf16.gmra.mxu0 %v3868
        %v3894 = vpop.f32.mrf.mxu0
        %v3895 = vadd.f32 0.0, %v3894
        %v3896 = vpop.f32.mrf.mxu0
        %v3897 = vadd.f32 0.0, %v3896
        %3898 = vmatmul.bf16.gmra.mxu0 %v3871
        %v3899 = vpop.f32.mrf.mxu0
        %v3900 = vadd.f32 0.0, %v3899
        %v3901 = vpop.f32.mrf.mxu0
        %v3902 = vadd.f32 0.0, %v3901
        %3903 = vmatmul.bf16.gmra.mxu0 %v3874
        %v3904 = vpop.f32.mrf.mxu0
        %v3905 = vadd.f32 0.0, %v3904
        %v3906 = vpop.f32.mrf.mxu0
        %v3907 = vadd.f32 0.0, %v3906
        %3908 = vmatmul.bf16.gmra.mxu0 %v3877
        %v3909 = vpop.f32.mrf.mxu0
        %v3910 = vadd.f32 0.0, %v3909
        %v3911 = vpop.f32.mrf.mxu0
        %v3912 = vadd.f32 0.0, %v3911
        %3913 = vmatmul.bf16.gmra.mxu0 %v3880
        %v3914 = vpop.f32.mrf.mxu0
        %v3915 = vadd.f32 0.0, %v3914
        %v3916 = vpop.f32.mrf.mxu0
        %v3917 = vadd.f32 0.0, %v3916
        %3918 = vmatmul.bf16.gmra.mxu0 %v3883
        %v3919 = vpop.f32.mrf.mxu0
        %v3920 = vadd.f32 0.0, %v3919
        %v3921 = vpop.f32.mrf.mxu0
        %v3922 = vadd.f32 0.0, %v3921
        %3923 = vdwg.mxu0
        %v3925 = vunpack.c.l.b16 %v3807
        %v3926 = vpack.c.b16 %v3835, %v3925
        %v3928 = vshrl.u32 %v3926, 16
        %v3930 = vrot.slane %v3928, 2
        %v3931 = vshll.u32 %v3926, 16
        %v3933 = vrot.slane %v3931, 3
        %v3934 = vor.u32 %v3930, %v3933
        %v3936 = vshrl.u32 %v3848, 16
        %v3938 = vrot.slane %v3936, 2
        %v3939 = vshll.u32 %v3848, 16
        %v3941 = vrot.slane %v3939, 3
        %v3942 = vor.u32 %v3938, %v3941
        %v3943 = vsel %vm1273, %v3934, %v3942
        %v3945 = vshrl.u32 %v3849, 16
        %v3947 = vrot.slane %v3945, 2
        %v3948 = vshll.u32 %v3849, 16
        %v3950 = vrot.slane %v3948, 3
        %v3951 = vor.u32 %v3947, %v3950
        %v3952 = vsel %vm1273, %v3942, %v3951
        %v3954 = vshrl.u32 %v3850, 16
        %v3956 = vrot.slane %v3954, 2
        %v3957 = vshll.u32 %v3850, 16
        %v3959 = vrot.slane %v3957, 3
        %v3960 = vor.u32 %v3956, %v3959
        %v3961 = vsel %vm1273, %v3951, %v3960
        %v3963 = vshrl.u32 %v3851, 16
        %v3965 = vrot.slane %v3963, 2
        %v3966 = vshll.u32 %v3851, 16
        %v3968 = vrot.slane %v3966, 3
        %v3969 = vor.u32 %v3965, %v3968
        %v3970 = vsel %vm1273, %v3960, %v3969
        %v3972 = vshrl.u32 %v3852, 16
        %v3974 = vrot.slane %v3972, 2
        %v3975 = vshll.u32 %v3852, 16
        %v3977 = vrot.slane %v3975, 3
        %v3978 = vor.u32 %v3974, %v3977
        %v3979 = vsel %vm1273, %v3969, %v3978
        %v3981 = vshrl.u32 %v3853, 16
        %v3983 = vrot.slane %v3981, 2
        %v3984 = vshll.u32 %v3853, 16
        %v3986 = vrot.slane %v3984, 3
        %v3987 = vor.u32 %v3983, %v3986
        %v3988 = vsel %vm1273, %v3978, %v3987
        %v3990 = vsel %vm1212, %v3943, 0
        %v3993 = vsel %vm1212, %v3952, 0
        %v3996 = vsel %vm1212, %v3961, 0
        %v3999 = vsel %vm1212, %v3970, 0
        %v4002 = vsel %vm1212, %v3979, 0
        %v4005 = vsel %vm1212, %v3988, 0
        %4007 = vmatpush.bf16.msra.mxu0 0
        %4008 = vmatpush.bf16.msra.mxu0 0
        %4009 = vmatpush.bf16.msra.mxu0 0
        %4010 = vmatpush.bf16.msra.mxu0 0
        %4011 = vmatpush.bf16.msra.mxu0 0
        %4012 = vmatpush.bf16.msra.mxu0 0
        %4013 = vmatpush.bf16.msra.mxu0 %v1345
        %4014 = vmatpush.bf16.msra.mxu0 %v1344
        %4015 = vmatmul.bf16.gmra.mxu0 %v3990
        %v4016 = vpop.f32.mrf.mxu0
        %v4017 = vadd.f32 %v3895, %v4016
        %v4018 = vpop.f32.mrf.mxu0
        %v4019 = vadd.f32 %v3897, %v4018
        %4020 = vmatmul.bf16.gmra.mxu0 %v3993
        %v4021 = vpop.f32.mrf.mxu0
        %v4022 = vadd.f32 %v3900, %v4021
        %v4023 = vpop.f32.mrf.mxu0
        %v4024 = vadd.f32 %v3902, %v4023
        %4025 = vmatmul.bf16.gmra.mxu0 %v3996
        %v4026 = vpop.f32.mrf.mxu0
        %v4027 = vadd.f32 %v3905, %v4026
        %v4028 = vpop.f32.mrf.mxu0
        %v4029 = vadd.f32 %v3907, %v4028
        %4030 = vmatmul.bf16.gmra.mxu0 %v3999
        %v4031 = vpop.f32.mrf.mxu0
        %v4032 = vadd.f32 %v3910, %v4031
        %v4033 = vpop.f32.mrf.mxu0
        %v4034 = vadd.f32 %v3912, %v4033
        %4035 = vmatmul.bf16.gmra.mxu0 %v4002
        %v4036 = vpop.f32.mrf.mxu0
        %v4037 = vadd.f32 %v3915, %v4036
        %v4038 = vpop.f32.mrf.mxu0
        %v4039 = vadd.f32 %v3917, %v4038
        %4040 = vmatmul.bf16.gmra.mxu0 %v4005
        %v4041 = vpop.f32.mrf.mxu0
        %v4042 = vadd.f32 %v3920, %v4041
        %v4043 = vpop.f32.mrf.mxu0
        %v4044 = vadd.f32 %v3922, %v4043
        %4045 = vdwg.mxu0
        %v4046 = vld [vmem:[#allocation2 + $0x94] sm:$0xf]
        %v4048 = vunpack.c.l.b16 %v4046
        %v4049 = vpack.c.b16 %v4048, %v4048
        %v4051 = vshrl.u32 %v3847, 16
        %v4053 = vrot.slane %v4051, 3
        %v4054 = vshll.u32 %v3847, 16
        %v4056 = vrot.slane %v4054, 4
        %v4057 = vor.u32 %v4053, %v4056
        %v4058 = vrot.slane %v3936, 3
        %v4059 = vrot.slane %v3939, 4
        %v4060 = vor.u32 %v4058, %v4059
        %v4061 = vsel %vm1414, %v4057, %v4060
        %v4062 = vrot.slane %v3945, 3
        %v4063 = vrot.slane %v3948, 4
        %v4064 = vor.u32 %v4062, %v4063
        %v4065 = vsel %vm1414, %v4060, %v4064
        %v4066 = vrot.slane %v3954, 3
        %v4067 = vrot.slane %v3957, 4
        %v4068 = vor.u32 %v4066, %v4067
        %v4069 = vsel %vm1414, %v4064, %v4068
        %v4070 = vrot.slane %v3963, 3
        %v4071 = vrot.slane %v3966, 4
        %v4072 = vor.u32 %v4070, %v4071
        %v4073 = vsel %vm1414, %v4068, %v4072
        %v4074 = vrot.slane %v3972, 3
        %v4075 = vrot.slane %v3975, 4
        %v4076 = vor.u32 %v4074, %v4075
        %v4077 = vsel %vm1414, %v4072, %v4076
        %v4079 = vshrl.u32 %v4049, 16
        %v4081 = vrot.slane %v4079, 3
        %v4082 = vshll.u32 %v4049, 16
        %v4084 = vrot.slane %v4082, 4
        %v4085 = vor.u32 %v4081, %v4084
        %v4086 = vsel %vm1414, %v4076, %v4085
        %v4088 = vsel %vm1212, %v4061, 0
        %v4091 = vsel %vm1212, %v4065, 0
        %v4094 = vsel %vm1212, %v4069, 0
        %v4097 = vsel %vm1212, %v4073, 0
        %v4100 = vsel %vm1212, %v4077, 0
        %v4103 = vsel %vm1212, %v4086, 0
        %4105 = vmatpush.bf16.msra.mxu0 0
        %4106 = vmatpush.bf16.msra.mxu0 0
        %4107 = vmatpush.bf16.msra.mxu0 0
        %4108 = vmatpush.bf16.msra.mxu0 0
        %4109 = vmatpush.bf16.msra.mxu0 0
        %4110 = vmatpush.bf16.msra.mxu0 0
        %4111 = vmatpush.bf16.msra.mxu0 %v1461
        %4112 = vmatpush.bf16.msra.mxu0 %v1460
        %4113 = vmatmul.bf16.gmra.mxu0 %v4088
        %v4114 = vpop.f32.mrf.mxu0
        %v4115 = vadd.f32 0.0, %v4114
        %v4116 = vpop.f32.mrf.mxu0
        %v4117 = vadd.f32 0.0, %v4116
        %4118 = vmatmul.bf16.gmra.mxu0 %v4091
        %v4119 = vpop.f32.mrf.mxu0
        %v4120 = vadd.f32 0.0, %v4119
        %v4121 = vpop.f32.mrf.mxu0
        %v4122 = vadd.f32 0.0, %v4121
        %4123 = vmatmul.bf16.gmra.mxu0 %v4094
        %v4124 = vpop.f32.mrf.mxu0
        %v4125 = vadd.f32 0.0, %v4124
        %v4126 = vpop.f32.mrf.mxu0
        %v4127 = vadd.f32 0.0, %v4126
        %4128 = vmatmul.bf16.gmra.mxu0 %v4097
        %v4129 = vpop.f32.mrf.mxu0
        %v4130 = vadd.f32 0.0, %v4129
        %v4131 = vpop.f32.mrf.mxu0
        %v4132 = vadd.f32 0.0, %v4131
        %4133 = vmatmul.bf16.gmra.mxu0 %v4100
        %v4134 = vpop.f32.mrf.mxu0
        %v4135 = vadd.f32 0.0, %v4134
        %v4136 = vpop.f32.mrf.mxu0
        %v4137 = vadd.f32 0.0, %v4136
        %4138 = vmatmul.bf16.gmra.mxu0 %v4103
        %v4139 = vpop.f32.mrf.mxu0
        %v4140 = vadd.f32 0.0, %v4139
        %v4141 = vpop.f32.mrf.mxu0
        %v4142 = vadd.f32 0.0, %v4141
        %4143 = vdwg.mxu0
        %v4144 = vadd.f32 %v4017, %v4115
        %v4145 = vadd.f32 %v4019, %v4117
        %v4146 = vadd.f32 %v4022, %v4120
        %v4147 = vadd.f32 %v4024, %v4122
        %v4148 = vadd.f32 %v4027, %v4125
        %v4149 = vadd.f32 %v4029, %v4127
        %v4150 = vadd.f32 %v4032, %v4130
        %v4151 = vadd.f32 %v4034, %v4132
        %v4152 = vadd.f32 %v4037, %v4135
        %v4153 = vadd.f32 %v4039, %v4137
        %v4154 = vadd.f32 %v4042, %v4140
        %v4155 = vadd.f32 %v4044, %v4142
        %v4156 = vld [vmem:[#allocation2 + $0x6c] sm:$0x8]
        %v4157 = vld [vmem:[#allocation2 + $0x70] sm:$0xf]
        %v4158 = vld [vmem:[#allocation2 + $0x74] sm:$0xf]
        %v4159 = vld [vmem:[#allocation2 + $0x78] sm:$0xf]
        %v4160 = vld [vmem:[#allocation2 + $0x7c] sm:$0xf]
        %v4161 = vld [vmem:[#allocation2 + $0x80] sm:$0xf]
        %v4162 = vld [vmem:[#allocation2 + $0x84] sm:$0xf]
        %v4163 = vld [vmem:[#allocation2 + $0x88] sm:$0xf]
        %v4164 = vld [vmem:[#allocation2 + $0x8c] sm:$0xf]
        %v4165 = vld [vmem:[#allocation2 + $0x90] sm:$0xf]
        %v4166 = vld [vmem:[#allocation2 + $0x94] sm:$0xf]
        %v4167 = vld [vmem:[#allocation2 + $0x98] sm:$0xf]
        %v4168 = vld [vmem:[#allocation2 + $0x9c] sm:$0xf]
        %v4182 = vunpack.c.l.b16 %v4156
        %v4183 = vunpack.c.l.b16 %v4157
        %v4184 = vunpack.c.l.b16 %v4158
        %v4185 = vunpack.c.l.b16 %v4159
        %v4186 = vunpack.c.l.b16 %v4160
        %v4187 = vunpack.c.l.b16 %v4161
        %v4188 = vunpack.c.l.b16 %v4162
        %v4189 = vunpack.c.l.b16 %v4163
        %v4190 = vunpack.c.l.b16 %v4164
        %v4191 = vunpack.c.l.b16 %v4165
        %v4192 = vunpack.c.l.b16 %v4166
        %v4193 = vunpack.c.l.b16 %v4167
        %v4194 = vunpack.c.l.b16 %v4168
        %v4195 = vpack.c.b16 %v4183, %v4182
        %v4196 = vpack.c.b16 %v4185, %v4184
        %v4197 = vpack.c.b16 %v4187, %v4186
        %v4198 = vpack.c.b16 %v4189, %v4188
        %v4199 = vpack.c.b16 %v4191, %v4190
        %v4200 = vpack.c.b16 %v4193, %v4192
        %v4201 = vpack.c.b16 %v4194, %v4194
        %v4203 = vshrl.u32 %v4195, 16
        %v4205 = vrot.slane %v4203, 3
        %v4206 = vshll.u32 %v4195, 16
        %v4208 = vrot.slane %v4206, 4
        %v4209 = vor.u32 %v4205, %v4208
        %v4211 = vshrl.u32 %v4196, 16
        %v4213 = vrot.slane %v4211, 3
        %v4214 = vshll.u32 %v4196, 16
        %v4216 = vrot.slane %v4214, 4
        %v4217 = vor.u32 %v4213, %v4216
        %v4218 = vsel %vm1414, %v4209, %v4217
        %v4220 = vshrl.u32 %v4197, 16
        %v4222 = vrot.slane %v4220, 3
        %v4223 = vshll.u32 %v4197, 16
        %v4225 = vrot.slane %v4223, 4
        %v4226 = vor.u32 %v4222, %v4225
        %v4227 = vsel %vm1414, %v4217, %v4226
        %v4229 = vshrl.u32 %v4198, 16
        %v4231 = vrot.slane %v4229, 3
        %v4232 = vshll.u32 %v4198, 16
        %v4234 = vrot.slane %v4232, 4
        %v4235 = vor.u32 %v4231, %v4234
        %v4236 = vsel %vm1414, %v4226, %v4235
        %v4238 = vshrl.u32 %v4199, 16
        %v4240 = vrot.slane %v4238, 3
        %v4241 = vshll.u32 %v4199, 16
        %v4243 = vrot.slane %v4241, 4
        %v4244 = vor.u32 %v4240, %v4243
        %v4245 = vsel %vm1414, %v4235, %v4244
        %v4247 = vshrl.u32 %v4200, 16
        %v4249 = vrot.slane %v4247, 3
        %v4250 = vshll.u32 %v4200, 16
        %v4252 = vrot.slane %v4250, 4
        %v4253 = vor.u32 %v4249, %v4252
        %v4254 = vsel %vm1414, %v4244, %v4253
        %v4256 = vshrl.u32 %v4201, 16
        %v4258 = vrot.slane %v4256, 3
        %v4259 = vshll.u32 %v4201, 16
        %v4261 = vrot.slane %v4259, 4
        %v4262 = vor.u32 %v4258, %v4261
        %v4263 = vsel %vm1414, %v4253, %v4262
        %v4265 = vsel %vm1212, %v4218, 0
        %v4268 = vsel %vm1212, %v4227, 0
        %v4271 = vsel %vm1212, %v4236, 0
        %v4274 = vsel %vm1212, %v4245, 0
        %v4277 = vsel %vm1212, %v4254, 0
        %v4280 = vsel %vm1212, %v4263, 0
        %4282 = vmatpush.bf16.msra.mxu0 0
        %4283 = vmatpush.bf16.msra.mxu0 0
        %4284 = vmatpush.bf16.msra.mxu0 0
        %4285 = vmatpush.bf16.msra.mxu0 0
        %4286 = vmatpush.bf16.msra.mxu0 0
        %4287 = vmatpush.bf16.msra.mxu0 0
        %4288 = vmatpush.bf16.msra.mxu0 %v1655
        %4289 = vmatpush.bf16.msra.mxu0 %v1654
        %4290 = vmatmul.bf16.gmra.mxu0 %v4265
        %v4291 = vpop.f32.mrf.mxu0
        %v4292 = vadd.f32 0.0, %v4291
        %v4293 = vpop.f32.mrf.mxu0
        %v4294 = vadd.f32 0.0, %v4293
        %4295 = vmatmul.bf16.gmra.mxu0 %v4268
        %v4296 = vpop.f32.mrf.mxu0
        %v4297 = vadd.f32 0.0, %v4296
        %v4298 = vpop.f32.mrf.mxu0
        %v4299 = vadd.f32 0.0, %v4298
        %4300 = vmatmul.bf16.gmra.mxu0 %v4271
        %v4301 = vpop.f32.mrf.mxu0
        %v4302 = vadd.f32 0.0, %v4301
        %v4303 = vpop.f32.mrf.mxu0
        %v4304 = vadd.f32 0.0, %v4303
        %4305 = vmatmul.bf16.gmra.mxu0 %v4274
        %v4306 = vpop.f32.mrf.mxu0
        %v4307 = vadd.f32 0.0, %v4306
        %v4308 = vpop.f32.mrf.mxu0
        %v4309 = vadd.f32 0.0, %v4308
        %4310 = vmatmul.bf16.gmra.mxu0 %v4277
        %v4311 = vpop.f32.mrf.mxu0
        %v4312 = vadd.f32 0.0, %v4311
        %v4313 = vpop.f32.mrf.mxu0
        %v4314 = vadd.f32 0.0, %v4313
        %4315 = vmatmul.bf16.gmra.mxu0 %v4280
        %v4316 = vpop.f32.mrf.mxu0
        %v4317 = vadd.f32 0.0, %v4316
        %v4318 = vpop.f32.mrf.mxu0
        %v4319 = vadd.f32 0.0, %v4318
        %4320 = vdwg.mxu0
        %v4321 = vadd.f32 %v4144, %v4292
        %v4322 = vadd.f32 %v4145, %v4294
        %v4323 = vadd.f32 %v4146, %v4297
        %v4324 = vadd.f32 %v4147, %v4299
        %v4325 = vadd.f32 %v4148, %v4302
        %v4326 = vadd.f32 %v4149, %v4304
        %v4327 = vadd.f32 %v4150, %v4307
        %v4328 = vadd.f32 %v4151, %v4309
        %v4329 = vadd.f32 %v4152, %v4312
        %v4330 = vadd.f32 %v4153, %v4314
        %v4331 = vadd.f32 %v4154, %v4317
        %v4332 = vadd.f32 %v4155, %v4319
        %v4333 = vpack.c.b16 %v4184, %v4183
        %v4334 = vpack.c.b16 %v4186, %v4185
        %v4335 = vpack.c.b16 %v4188, %v4187
        %v4336 = vpack.c.b16 %v4190, %v4189
        %v4337 = vpack.c.b16 %v4192, %v4191
        %v4338 = vpack.c.b16 %v4194, %v4193
        %v4340 = vsel %vm1212, %v4333, 0
        %v4343 = vsel %vm1212, %v4334, 0
        %v4346 = vsel %vm1212, %v4335, 0
        %v4349 = vsel %vm1212, %v4336, 0
        %v4352 = vsel %vm1212, %v4337, 0
        %v4355 = vsel %vm1212, %v4338, 0
        %4357 = vmatpush.bf16.msra.mxu0 0
        %4358 = vmatpush.bf16.msra.mxu0 0
        %4359 = vmatpush.bf16.msra.mxu0 0
        %4360 = vmatpush.bf16.msra.mxu0 0
        %4361 = vmatpush.bf16.msra.mxu0 0
        %4362 = vmatpush.bf16.msra.mxu0 0
        %4363 = vmatpush.bf16.msra.mxu0 %v1747
        %4364 = vmatpush.bf16.msra.mxu0 %v1746
        %4365 = vmatmul.bf16.gmra.mxu0 %v4340
        %v4366 = vpop.f32.mrf.mxu0
        %v4367 = vadd.f32 0.0, %v4366
        %v4368 = vpop.f32.mrf.mxu0
        %v4369 = vadd.f32 0.0, %v4368
        %4370 = vmatmul.bf16.gmra.mxu0 %v4343
        %v4371 = vpop.f32.mrf.mxu0
        %v4372 = vadd.f32 0.0, %v4371
        %v4373 = vpop.f32.mrf.mxu0
        %v4374 = vadd.f32 0.0, %v4373
        %4375 = vmatmul.bf16.gmra.mxu0 %v4346
        %v4376 = vpop.f32.mrf.mxu0
        %v4377 = vadd.f32 0.0, %v4376
        %v4378 = vpop.f32.mrf.mxu0
        %v4379 = vadd.f32 0.0, %v4378
        %4380 = vmatmul.bf16.gmra.mxu0 %v4349
        %v4381 = vpop.f32.mrf.mxu0
        %v4382 = vadd.f32 0.0, %v4381
        %v4383 = vpop.f32.mrf.mxu0
        %v4384 = vadd.f32 0.0, %v4383
        %4385 = vmatmul.bf16.gmra.mxu0 %v4352
        %v4386 = vpop.f32.mrf.mxu0
        %v4387 = vadd.f32 0.0, %v4386
        %v4388 = vpop.f32.mrf.mxu0
        %v4389 = vadd.f32 0.0, %v4388
        %4390 = vmatmul.bf16.gmra.mxu0 %v4355
        %v4391 = vpop.f32.mrf.mxu0
        %v4392 = vadd.f32 0.0, %v4391
        %v4393 = vpop.f32.mrf.mxu0
        %v4394 = vadd.f32 0.0, %v4393
        %4395 = vdwg.mxu0
        %v4396 = vadd.f32 %v4321, %v4367
        %v4397 = vadd.f32 %v4322, %v4369
        %v4398 = vadd.f32 %v4323, %v4372
        %v4399 = vadd.f32 %v4324, %v4374
        %v4400 = vadd.f32 %v4325, %v4377
        %v4401 = vadd.f32 %v4326, %v4379
        %v4402 = vadd.f32 %v4327, %v4382
        %v4403 = vadd.f32 %v4328, %v4384
        %v4404 = vadd.f32 %v4329, %v4387
        %v4405 = vadd.f32 %v4330, %v4389
        %v4406 = vadd.f32 %v4331, %v4392
        %v4407 = vadd.f32 %v4332, %v4394
        %v4408 = vld [vmem:[#allocation2 + $0x70] sm:$0xf]
        %v4409 = vld [vmem:[#allocation2 + $0x74] sm:$0xf]
        %v4410 = vld [vmem:[#allocation2 + $0x78] sm:$0xf]
        %v4411 = vld [vmem:[#allocation2 + $0x7c] sm:$0xf]
        %v4412 = vld [vmem:[#allocation2 + $0x80] sm:$0xf]
        %v4413 = vld [vmem:[#allocation2 + $0x84] sm:$0xf]
        %v4414 = vld [vmem:[#allocation2 + $0x88] sm:$0xf]
        %v4415 = vld [vmem:[#allocation2 + $0x8c] sm:$0xf]
        %v4416 = vld [vmem:[#allocation2 + $0x90] sm:$0xf]
        %v4417 = vld [vmem:[#allocation2 + $0x94] sm:$0xf]
        %v4418 = vld [vmem:[#allocation2 + $0x98] sm:$0xf]
        %v4419 = vld [vmem:[#allocation2 + $0x9c] sm:$0xf]
        %v4420 = vld [vmem:[#allocation2 + $0xa0] sm:$0x1]
        %v4434 = vunpack.c.l.b16 %v4408
        %v4435 = vunpack.c.l.b16 %v4409
        %v4436 = vunpack.c.l.b16 %v4410
        %v4437 = vunpack.c.l.b16 %v4411
        %v4438 = vunpack.c.l.b16 %v4412
        %v4439 = vunpack.c.l.b16 %v4413
        %v4440 = vunpack.c.l.b16 %v4414
        %v4441 = vunpack.c.l.b16 %v4415
        %v4442 = vunpack.c.l.b16 %v4416
        %v4443 = vunpack.c.l.b16 %v4417
        %v4444 = vunpack.c.l.b16 %v4418
        %v4445 = vunpack.c.l.b16 %v4419
        %v4446 = vunpack.c.l.b16 %v4420
        %v4447 = vpack.c.b16 %v4435, %v4434
        %v4448 = vpack.c.b16 %v4437, %v4436
        %v4449 = vpack.c.b16 %v4439, %v4438
        %v4450 = vpack.c.b16 %v4441, %v4440
        %v4451 = vpack.c.b16 %v4443, %v4442
        %v4452 = vpack.c.b16 %v4445, %v4444
        %v4453 = vpack.c.b16 %v4446, %v4446
        %v4455 = vshrl.u32 %v4447, 16
        %v4457 = vshll.u32 %v4447, 16
        %v4459 = vrot.slane %v4457, 1
        %v4460 = vor.u32 %v4455, %v4459
        %v4462 = vshll.u32 %v4448, 16
        %v4464 = vrot.slane %v4462, 1
        %v4465 = vsel %vm1870, %v4460, %v4464
        %v4466 = vshrl.u32 %v4448, 16
        %v4468 = vor.u32 %v4466, %v4464
        %v4470 = vshll.u32 %v4449, 16
        %v4472 = vrot.slane %v4470, 1
        %v4473 = vsel %vm1870, %v4468, %v4472
        %v4474 = vshrl.u32 %v4449, 16
        %v4476 = vor.u32 %v4474, %v4472
        %v4478 = vshll.u32 %v4450, 16
        %v4480 = vrot.slane %v4478, 1
        %v4481 = vsel %vm1870, %v4476, %v4480
        %v4482 = vshrl.u32 %v4450, 16
        %v4484 = vor.u32 %v4482, %v4480
        %v4486 = vshll.u32 %v4451, 16
        %v4488 = vrot.slane %v4486, 1
        %v4489 = vsel %vm1870, %v4484, %v4488
        %v4490 = vshrl.u32 %v4451, 16
        %v4492 = vor.u32 %v4490, %v4488
        %v4494 = vshll.u32 %v4452, 16
        %v4496 = vrot.slane %v4494, 1
        %v4497 = vsel %vm1870, %v4492, %v4496
        %v4498 = vshrl.u32 %v4452, 16
        %v4500 = vor.u32 %v4498, %v4496
        %v4502 = vshll.u32 %v4453, 16
        %v4504 = vrot.slane %v4502, 1
        %v4505 = vsel %vm1870, %v4500, %v4504
        %v4507 = vsel %vm1212, %v4465, 0
        %v4510 = vsel %vm1212, %v4473, 0
        %v4513 = vsel %vm1212, %v4481, 0
        %v4516 = vsel %vm1212, %v4489, 0
        %v4519 = vsel %vm1212, %v4497, 0
        %v4522 = vsel %vm1212, %v4505, 0
        %4524 = vmatpush.bf16.msra.mxu0 0
        %4525 = vmatpush.bf16.msra.mxu0 0
        %4526 = vmatpush.bf16.msra.mxu0 0
        %4527 = vmatpush.bf16.msra.mxu0 0
        %4528 = vmatpush.bf16.msra.mxu0 0
        %4529 = vmatpush.bf16.msra.mxu0 0
        %4530 = vmatpush.bf16.msra.mxu0 %v1932
        %4531 = vmatpush.bf16.msra.mxu0 %v1931
        %4532 = vmatmul.bf16.gmra.mxu0 %v4507
        %v4533 = vpop.f32.mrf.mxu0
        %v4534 = vadd.f32 0.0, %v4533
        %v4535 = vpop.f32.mrf.mxu0
        %v4536 = vadd.f32 0.0, %v4535
        %4537 = vmatmul.bf16.gmra.mxu0 %v4510
        %v4538 = vpop.f32.mrf.mxu0
        %v4539 = vadd.f32 0.0, %v4538
        %v4540 = vpop.f32.mrf.mxu0
        %v4541 = vadd.f32 0.0, %v4540
        %4542 = vmatmul.bf16.gmra.mxu0 %v4513
        %v4543 = vpop.f32.mrf.mxu0
        %v4544 = vadd.f32 0.0, %v4543
        %v4545 = vpop.f32.mrf.mxu0
        %v4546 = vadd.f32 0.0, %v4545
        %4547 = vmatmul.bf16.gmra.mxu0 %v4516
        %v4548 = vpop.f32.mrf.mxu0
        %v4549 = vadd.f32 0.0, %v4548
        %v4550 = vpop.f32.mrf.mxu0
        %v4551 = vadd.f32 0.0, %v4550
        %4552 = vmatmul.bf16.gmra.mxu0 %v4519
        %v4553 = vpop.f32.mrf.mxu0
        %v4554 = vadd.f32 0.0, %v4553
        %v4555 = vpop.f32.mrf.mxu0
        %v4556 = vadd.f32 0.0, %v4555
        %4557 = vmatmul.bf16.gmra.mxu0 %v4522
        %v4558 = vpop.f32.mrf.mxu0
        %v4559 = vadd.f32 0.0, %v4558
        %v4560 = vpop.f32.mrf.mxu0
        %v4561 = vadd.f32 0.0, %v4560
        %4562 = vdwg.mxu0
        %v4563 = vadd.f32 %v4396, %v4534
        %v4564 = vadd.f32 %v4397, %v4536
        %v4565 = vadd.f32 %v4398, %v4539
        %v4566 = vadd.f32 %v4399, %v4541
        %v4567 = vadd.f32 %v4400, %v4544
        %v4568 = vadd.f32 %v4401, %v4546
        %v4569 = vadd.f32 %v4402, %v4549
        %v4570 = vadd.f32 %v4403, %v4551
        %v4571 = vadd.f32 %v4404, %v4554
        %v4572 = vadd.f32 %v4405, %v4556
        %v4573 = vadd.f32 %v4406, %v4559
        %v4574 = vadd.f32 %v4407, %v4561
        %v4575 = vld [vmem:[#allocation2 + $0x78] sm:$0xf]
        %v4576 = vld [vmem:[#allocation2 + $0x7c] sm:$0xf]
        %v4577 = vld [vmem:[#allocation2 + $0x80] sm:$0xf]
        %v4578 = vld [vmem:[#allocation2 + $0x84] sm:$0xf]
        %v4579 = vld [vmem:[#allocation2 + $0x88] sm:$0xf]
        %v4580 = vld [vmem:[#allocation2 + $0x8c] sm:$0xf]
        %v4581 = vld [vmem:[#allocation2 + $0x90] sm:$0xf]
        %v4582 = vld [vmem:[#allocation2 + $0x94] sm:$0xf]
        %v4583 = vld [vmem:[#allocation2 + $0x98] sm:$0xf]
        %v4584 = vld [vmem:[#allocation2 + $0x9c] sm:$0xf]
        %v4585 = vld [vmem:[#allocation2 + $0xa0] sm:$0xf]
        %v4586 = vld [vmem:[#allocation2 + $0xa4] sm:$0xf]
        %v4587 = vld [vmem:[#allocation2 + $0xa8] sm:$0x1]
        %v4601 = vunpack.c.l.b16 %v4575
        %v4602 = vunpack.c.l.b16 %v4576
        %v4603 = vunpack.c.l.b16 %v4577
        %v4604 = vunpack.c.l.b16 %v4578
        %v4605 = vunpack.c.l.b16 %v4579
        %v4606 = vunpack.c.l.b16 %v4580
        %v4607 = vunpack.c.l.b16 %v4581
        %v4608 = vunpack.c.l.b16 %v4582
        %v4609 = vunpack.c.l.b16 %v4583
        %v4610 = vunpack.c.l.b16 %v4584
        %v4611 = vunpack.c.l.b16 %v4585
        %v4612 = vunpack.c.l.b16 %v4586
        %v4613 = vunpack.c.l.b16 %v4587
        %v4614 = vpack.c.b16 %v4602, %v4601
        %v4615 = vpack.c.b16 %v4604, %v4603
        %v4616 = vpack.c.b16 %v4606, %v4605
        %v4617 = vpack.c.b16 %v4608, %v4607
        %v4618 = vpack.c.b16 %v4610, %v4609
        %v4619 = vpack.c.b16 %v4612, %v4611
        %v4620 = vpack.c.b16 %v4613, %v4613
        %v4622 = vshrl.u32 %v4614, 16
        %v4624 = vshll.u32 %v4614, 16
        %v4626 = vrot.slane %v4624, 1
        %v4627 = vor.u32 %v4622, %v4626
        %v4629 = vshll.u32 %v4615, 16
        %v4631 = vrot.slane %v4629, 1
        %v4632 = vsel %vm1870, %v4627, %v4631
        %v4633 = vshrl.u32 %v4615, 16
        %v4635 = vor.u32 %v4633, %v4631
        %v4637 = vshll.u32 %v4616, 16
        %v4639 = vrot.slane %v4637, 1
        %v4640 = vsel %vm1870, %v4635, %v4639
        %v4641 = vshrl.u32 %v4616, 16
        %v4643 = vor.u32 %v4641, %v4639
        %v4645 = vshll.u32 %v4617, 16
        %v4647 = vrot.slane %v4645, 1
        %v4648 = vsel %vm1870, %v4643, %v4647
        %v4649 = vshrl.u32 %v4617, 16
        %v4651 = vor.u32 %v4649, %v4647
        %v4653 = vshll.u32 %v4618, 16
        %v4655 = vrot.slane %v4653, 1
        %v4656 = vsel %vm1870, %v4651, %v4655
        %v4657 = vshrl.u32 %v4618, 16
        %v4659 = vor.u32 %v4657, %v4655
        %v4661 = vshll.u32 %v4619, 16
        %v4663 = vrot.slane %v4661, 1
        %v4664 = vsel %vm1870, %v4659, %v4663
        %v4665 = vshrl.u32 %v4619, 16
        %v4667 = vor.u32 %v4665, %v4663
        %v4669 = vshll.u32 %v4620, 16
        %v4671 = vrot.slane %v4669, 1
        %v4672 = vsel %vm1870, %v4667, %v4671
        %v4674 = vsel %vm1212, %v4632, 0
        %v4677 = vsel %vm1212, %v4640, 0
        %v4680 = vsel %vm1212, %v4648, 0
        %v4683 = vsel %vm1212, %v4656, 0
        %v4686 = vsel %vm1212, %v4664, 0
        %v4689 = vsel %vm1212, %v4672, 0
        %4691 = vmatpush.bf16.msra.mxu0 0
        %4692 = vmatpush.bf16.msra.mxu0 0
        %4693 = vmatpush.bf16.msra.mxu0 0
        %4694 = vmatpush.bf16.msra.mxu0 0
        %4695 = vmatpush.bf16.msra.mxu0 0
        %4696 = vmatpush.bf16.msra.mxu0 0
        %4697 = vmatpush.bf16.msra.mxu0 %v2116
        %4698 = vmatpush.bf16.msra.mxu0 %v2115
        %4699 = vmatmul.bf16.gmra.mxu0 %v4674
        %v4700 = vpop.f32.mrf.mxu0
        %v4701 = vadd.f32 0.0, %v4700
        %v4702 = vpop.f32.mrf.mxu0
        %v4703 = vadd.f32 0.0, %v4702
        %4704 = vmatmul.bf16.gmra.mxu0 %v4677
        %v4705 = vpop.f32.mrf.mxu0
        %v4706 = vadd.f32 0.0, %v4705
        %v4707 = vpop.f32.mrf.mxu0
        %v4708 = vadd.f32 0.0, %v4707
        %4709 = vmatmul.bf16.gmra.mxu0 %v4680
        %v4710 = vpop.f32.mrf.mxu0
        %v4711 = vadd.f32 0.0, %v4710
        %v4712 = vpop.f32.mrf.mxu0
        %v4713 = vadd.f32 0.0, %v4712
        %4714 = vmatmul.bf16.gmra.mxu0 %v4683
        %v4715 = vpop.f32.mrf.mxu0
        %v4716 = vadd.f32 0.0, %v4715
        %v4717 = vpop.f32.mrf.mxu0
        %v4718 = vadd.f32 0.0, %v4717
        %4719 = vmatmul.bf16.gmra.mxu0 %v4686
        %v4720 = vpop.f32.mrf.mxu0
        %v4721 = vadd.f32 0.0, %v4720
        %v4722 = vpop.f32.mrf.mxu0
        %v4723 = vadd.f32 0.0, %v4722
        %4724 = vmatmul.bf16.gmra.mxu0 %v4689
        %v4725 = vpop.f32.mrf.mxu0
        %v4726 = vadd.f32 0.0, %v4725
        %v4727 = vpop.f32.mrf.mxu0
        %v4728 = vadd.f32 0.0, %v4727
        %4729 = vdwg.mxu0
        %v4730 = vadd.f32 %v4563, %v4701
        %v4731 = vadd.f32 %v4564, %v4703
        %v4732 = vadd.f32 %v4565, %v4706
        %v4733 = vadd.f32 %v4566, %v4708
        %v4734 = vadd.f32 %v4567, %v4711
        %v4735 = vadd.f32 %v4568, %v4713
        %v4736 = vadd.f32 %v4569, %v4716
        %v4737 = vadd.f32 %v4570, %v4718
        %v4738 = vadd.f32 %v4571, %v4721
        %v4739 = vadd.f32 %v4572, %v4723
        %v4740 = vadd.f32 %v4573, %v4726
        %v4741 = vadd.f32 %v4574, %v4728
        %v4742 = vld [vmem:[#allocation2 + $0x78] sm:$0xe]
        %v4744 = vunpack.c.l.b16 %v4742
        %v4745 = vpack.c.b16 %v4602, %v4744
        %v4746 = vrot.slane %v4745, 1
        %v4747 = vrot.slane %v4615, 1
        %v4748 = vsel %vm2197, %v4746, %v4747
        %v4749 = vrot.slane %v4616, 1
        %v4750 = vsel %vm2197, %v4747, %v4749
        %v4751 = vrot.slane %v4617, 1
        %v4752 = vsel %vm2197, %v4749, %v4751
        %v4753 = vrot.slane %v4618, 1
        %v4754 = vsel %vm2197, %v4751, %v4753
        %v4755 = vrot.slane %v4619, 1
        %v4756 = vsel %vm2197, %v4753, %v4755
        %v4757 = vrot.slane %v4620, 1
        %v4758 = vsel %vm2197, %v4755, %v4757
        %v4760 = vsel %vm1212, %v4748, 0
        %v4763 = vsel %vm1212, %v4750, 0
        %v4766 = vsel %vm1212, %v4752, 0
        %v4769 = vsel %vm1212, %v4754, 0
        %v4772 = vsel %vm1212, %v4756, 0
        %v4775 = vsel %vm1212, %v4758, 0
        %4777 = vmatpush.bf16.msra.mxu0 0
        %4778 = vmatpush.bf16.msra.mxu0 0
        %4779 = vmatpush.bf16.msra.mxu0 0
        %4780 = vmatpush.bf16.msra.mxu0 0
        %4781 = vmatpush.bf16.msra.mxu0 0
        %4782 = vmatpush.bf16.msra.mxu0 0
        %4783 = vmatpush.bf16.msra.mxu0 %v2220
        %4784 = vmatpush.bf16.msra.mxu0 %v2219
        %4785 = vmatmul.bf16.gmra.mxu0 %v4760
        %v4786 = vpop.f32.mrf.mxu0
        %v4787 = vadd.f32 0.0, %v4786
        %v4788 = vpop.f32.mrf.mxu0
        %v4789 = vadd.f32 0.0, %v4788
        %4790 = vmatmul.bf16.gmra.mxu0 %v4763
        %v4791 = vpop.f32.mrf.mxu0
        %v4792 = vadd.f32 0.0, %v4791
        %v4793 = vpop.f32.mrf.mxu0
        %v4794 = vadd.f32 0.0, %v4793
        %4795 = vmatmul.bf16.gmra.mxu0 %v4766
        %v4796 = vpop.f32.mrf.mxu0
        %v4797 = vadd.f32 0.0, %v4796
        %v4798 = vpop.f32.mrf.mxu0
        %v4799 = vadd.f32 0.0, %v4798
        %4800 = vmatmul.bf16.gmra.mxu0 %v4769
        %v4801 = vpop.f32.mrf.mxu0
        %v4802 = vadd.f32 0.0, %v4801
        %v4803 = vpop.f32.mrf.mxu0
        %v4804 = vadd.f32 0.0, %v4803
        %4805 = vmatmul.bf16.gmra.mxu0 %v4772
        %v4806 = vpop.f32.mrf.mxu0
        %v4807 = vadd.f32 0.0, %v4806
        %v4808 = vpop.f32.mrf.mxu0
        %v4809 = vadd.f32 0.0, %v4808
        %4810 = vmatmul.bf16.gmra.mxu0 %v4775
        %v4811 = vpop.f32.mrf.mxu0
        %v4812 = vadd.f32 0.0, %v4811
        %v4813 = vpop.f32.mrf.mxu0
        %v4814 = vadd.f32 0.0, %v4813
        %4815 = vdwg.mxu0
        %v4816 = vadd.f32 %v4730, %v4787
        %v4817 = vadd.f32 %v4731, %v4789
        %v4818 = vadd.f32 %v4732, %v4792
        %v4819 = vadd.f32 %v4733, %v4794
        %v4820 = vadd.f32 %v4734, %v4797
        %v4821 = vadd.f32 %v4735, %v4799
        %v4822 = vadd.f32 %v4736, %v4802
        %v4823 = vadd.f32 %v4737, %v4804
        %v4824 = vadd.f32 %v4738, %v4807
        %v4825 = vadd.f32 %v4739, %v4809
        %v4826 = vadd.f32 %v4740, %v4812
        %v4827 = vadd.f32 %v4741, %v4814
        %v4828 = vld [vmem:[#allocation2 + $0xa8] sm:$0x3]
        %v4830 = vunpack.c.l.b16 %v4828
        %v4831 = vpack.c.b16 %v4830, %v4830
        %v4833 = vshrl.u32 %v4745, 16
        %v4835 = vrot.slane %v4833, 1
        %v4836 = vshll.u32 %v4745, 16
        %v4838 = vrot.slane %v4836, 2
        %v4839 = vor.u32 %v4835, %v4838
        %v4840 = vrot.slane %v4633, 1
        %v4841 = vrot.slane %v4629, 2
        %v4842 = vor.u32 %v4840, %v4841
        %v4843 = vsel %vm2301, %v4839, %v4842
        %v4844 = vrot.slane %v4641, 1
        %v4845 = vrot.slane %v4637, 2
        %v4846 = vor.u32 %v4844, %v4845
        %v4847 = vsel %vm2301, %v4842, %v4846
        %v4848 = vrot.slane %v4649, 1
        %v4849 = vrot.slane %v4645, 2
        %v4850 = vor.u32 %v4848, %v4849
        %v4851 = vsel %vm2301, %v4846, %v4850
        %v4852 = vrot.slane %v4657, 1
        %v4853 = vrot.slane %v4653, 2
        %v4854 = vor.u32 %v4852, %v4853
        %v4855 = vsel %vm2301, %v4850, %v4854
        %v4856 = vrot.slane %v4665, 1
        %v4857 = vrot.slane %v4661, 2
        %v4858 = vor.u32 %v4856, %v4857
        %v4859 = vsel %vm2301, %v4854, %v4858
        %v4861 = vshrl.u32 %v4831, 16
        %v4863 = vrot.slane %v4861, 1
        %v4864 = vshll.u32 %v4831, 16
        %v4866 = vrot.slane %v4864, 2
        %v4867 = vor.u32 %v4863, %v4866
        %v4868 = vsel %vm2301, %v4858, %v4867
        %v4870 = vsel %vm1212, %v4843, 0
        %v4873 = vsel %vm1212, %v4847, 0
        %v4876 = vsel %vm1212, %v4851, 0
        %v4879 = vsel %vm1212, %v4855, 0
        %v4882 = vsel %vm1212, %v4859, 0
        %v4885 = vsel %vm1212, %v4868, 0
        %4887 = vmatpush.bf16.msra.mxu0 0
        %4888 = vmatpush.bf16.msra.mxu0 0
        %4889 = vmatpush.bf16.msra.mxu0 0
        %4890 = vmatpush.bf16.msra.mxu0 0
        %4891 = vmatpush.bf16.msra.mxu0 0
        %4892 = vmatpush.bf16.msra.mxu0 0
        %4893 = vmatpush.bf16.msra.mxu0 %v2348
        %4894 = vmatpush.bf16.msra.mxu0 %v2347
        %4895 = vmatmul.bf16.gmra.mxu0 %v4870
        %v4896 = vpop.f32.mrf.mxu0
        %v4897 = vadd.f32 0.0, %v4896
        %v4898 = vpop.f32.mrf.mxu0
        %v4899 = vadd.f32 0.0, %v4898
        %4900 = vmatmul.bf16.gmra.mxu0 %v4873
        %v4901 = vpop.f32.mrf.mxu0
        %v4902 = vadd.f32 0.0, %v4901
        %v4903 = vpop.f32.mrf.mxu0
        %v4904 = vadd.f32 0.0, %v4903
        %4905 = vmatmul.bf16.gmra.mxu0 %v4876
        %v4906 = vpop.f32.mrf.mxu0
        %v4907 = vadd.f32 0.0, %v4906
        %v4908 = vpop.f32.mrf.mxu0
        %v4909 = vadd.f32 0.0, %v4908
        %4910 = vmatmul.bf16.gmra.mxu0 %v4879
        %v4911 = vpop.f32.mrf.mxu0
        %v4912 = vadd.f32 0.0, %v4911
        %v4913 = vpop.f32.mrf.mxu0
        %v4914 = vadd.f32 0.0, %v4913
        %4915 = vmatmul.bf16.gmra.mxu0 %v4882
        %v4916 = vpop.f32.mrf.mxu0
        %v4917 = vadd.f32 0.0, %v4916
        %v4918 = vpop.f32.mrf.mxu0
        %v4919 = vadd.f32 0.0, %v4918
        %4920 = vmatmul.bf16.gmra.mxu0 %v4885
        %v4921 = vpop.f32.mrf.mxu0
        %v4922 = vadd.f32 0.0, %v4921
        %v4923 = vpop.f32.mrf.mxu0
        %v4924 = vadd.f32 0.0, %v4923
        %4925 = vdwg.mxu0
        %v4926 = vadd.f32 %v4816, %v4897
        %v4927 = vadd.f32 %v4817, %v4899
        %v4928 = vadd.f32 %v4818, %v4902
        %v4929 = vadd.f32 %v4819, %v4904
        %v4930 = vadd.f32 %v4820, %v4907
        %v4931 = vadd.f32 %v4821, %v4909
        %v4932 = vadd.f32 %v4822, %v4912
        %v4933 = vadd.f32 %v4823, %v4914
        %v4934 = vadd.f32 %v4824, %v4917
        %v4935 = vadd.f32 %v4825, %v4919
        %v4936 = vadd.f32 %v4826, %v4922
        %v4937 = vadd.f32 %v4827, %v4924
        %v4938 = vadd.f32 %v4926, %v2422
        %v4939 = vadd.f32 %v4927, %v2422
        %v4940 = vadd.f32 %v4928, %v2422
        %v4941 = vadd.f32 %v4929, %v2422
        %v4942 = vadd.f32 %v4930, %v2422
        %v4943 = vadd.f32 %v4931, %v2422
        %v4944 = vadd.f32 %v4932, %v2422
        %v4945 = vadd.f32 %v4933, %v2422
        %v4946 = vadd.f32 %v4934, %v2422
        %v4947 = vadd.f32 %v4935, %v2422
        %v4948 = vadd.f32 %v4936, %v2422
        %v4949 = vadd.f32 %v4937, %v2422
        %v4950 = vmax.f32 %v4938, 0.0
        %v4951 = vmax.f32 %v4939, 0.0
        %v4952 = vmax.f32 %v4940, 0.0
        %v4953 = vmax.f32 %v4941, 0.0
        %v4954 = vmax.f32 %v4942, 0.0
        %v4955 = vmax.f32 %v4943, 0.0
        %v4956 = vmax.f32 %v4944, 0.0
        %v4957 = vmax.f32 %v4945, 0.0
        %v4958 = vmax.f32 %v4946, 0.0
        %v4959 = vmax.f32 %v4947, 0.0
        %v4960 = vmax.f32 %v4948, 0.0
        %v4961 = vmax.f32 %v4949, 0.0
        %v4962 = vld [vmem:[%s8 + $0xc0] sm:$0xff]
        %v4963 = vld [vmem:[%s8 + $0xc8] sm:$0xff]
        %v4964 = vld [vmem:[%s8 + $0xd0] sm:$0xff]
        %v4965 = vld [vmem:[%s8 + $0xd8] sm:$0xff]
        %v4966 = vld [vmem:[%s8 + $0xe0] sm:$0xff]
        %v4967 = vld [vmem:[%s8 + $0xe8] sm:$0xff]
        %v4968 = vld [vmem:[%s8 + $0xf0] sm:$0xff]
        %v4969 = vld [vmem:[%s8 + $0xf8] sm:$0xff]
        %v4970 = vld [vmem:[%s8 + $0x100] sm:$0xff]
        %v4971 = vld [vmem:[%s8 + $0x108] sm:$0xff]
        %v4972 = vld [vmem:[%s8 + $0x110] sm:$0xff]
        %v4973 = vld [vmem:[%s8 + $0x118] sm:$0xff]
        %4975 = vset.pattern.permute.xlu0 0
        %4976 = vperm.xlu0 %4975, %v4962
        %v4977 = vpop.permute.xlu0 %4976
        %4980 = vset.pattern.permute.xlu0 0
        %4981 = vperm.xlu0 %4980, %v4963
        %v4982 = vpop.permute.xlu0 %4981
        %4985 = vset.pattern.permute.xlu0 0
        %4986 = vperm.xlu0 %4985, %v4964
        %v4987 = vpop.permute.xlu0 %4986
        %4990 = vset.pattern.permute.xlu0 0
        %4991 = vperm.xlu0 %4990, %v4965
        %v4992 = vpop.permute.xlu0 %4991
        %4995 = vset.pattern.permute.xlu0 0
        %4996 = vperm.xlu0 %4995, %v4966
        %v4997 = vpop.permute.xlu0 %4996
        %5000 = vset.pattern.permute.xlu0 0
        %5001 = vperm.xlu0 %5000, %v4967
        %v5002 = vpop.permute.xlu0 %5001
        %5005 = vset.pattern.permute.xlu0 0
        %5006 = vperm.xlu0 %5005, %v4968
        %v5007 = vpop.permute.xlu0 %5006
        %5010 = vset.pattern.permute.xlu0 0
        %5011 = vperm.xlu0 %5010, %v4969
        %v5012 = vpop.permute.xlu0 %5011
        %5015 = vset.pattern.permute.xlu0 0
        %5016 = vperm.xlu0 %5015, %v4970
        %v5017 = vpop.permute.xlu0 %5016
        %5020 = vset.pattern.permute.xlu0 0
        %5021 = vperm.xlu0 %5020, %v4971
        %v5022 = vpop.permute.xlu0 %5021
        %5025 = vset.pattern.permute.xlu0 0
        %5026 = vperm.xlu0 %5025, %v4972
        %v5027 = vpop.permute.xlu0 %5026
        %5030 = vset.pattern.permute.xlu0 0
        %5031 = vperm.xlu0 %5030, %v4973
        %v5032 = vpop.permute.xlu0 %5031
        %v5034 = vmul.f32 %v4950, %v4977
        %v5035 = vmul.f32 %v4951, %v4982
        %v5036 = vmul.f32 %v4952, %v4987
        %v5037 = vmul.f32 %v4953, %v4992
        %v5038 = vmul.f32 %v4954, %v4997
        %v5039 = vmul.f32 %v4955, %v5002
        %v5040 = vmul.f32 %v4956, %v5007
        %v5041 = vmul.f32 %v4957, %v5012
        %v5042 = vmul.f32 %v4958, %v5017
        %v5043 = vmul.f32 %v4959, %v5022
        %v5044 = vmul.f32 %v4960, %v5027
        %v5045 = vmul.f32 %v4961, %v5032
        %v5046 = vadd.f32 %v5034, %v5035
        %v5047 = vadd.f32 %v5046, %v5036
        %v5048 = vadd.f32 %v5047, %v5037
        %v5049 = vadd.f32 %v5048, %v5038
        %v5050 = vadd.f32 %v5049, %v5039
        %v5051 = vadd.f32 %v5050, %v5040
        %v5052 = vadd.f32 %v5051, %v5041
        %v5053 = vadd.f32 %v5052, %v5042
        %v5054 = vadd.f32 %v5053, %v5043
        %v5055 = vadd.f32 %v5054, %v5044
        %v5056 = vadd.f32 %v5055, %v5045
        %v5057 = vrot.slane %v5056, 4
        %v5058 = vadd.f32 %v5056, %v5057
        %v5059 = vrot.slane %v5058, 2
        %v5060 = vadd.f32 %v5058, %v5059
        %v5061 = vrot.slane %v5060, 1
        %v5062 = vadd.f32 %v5060, %v5061
        %v5063 = vadd.f32 %v3806, %v5062
        %v5064 = vpack.c.bf16 %v5063, %v5063
        %v5065 = vld [vmem:[%s5] sm:$0xf]
        %v5066 = vld [vmem:[%s5 + $0x4] sm:$0xf]
        %v5067 = vld [vmem:[%s5 + $0x8] sm:$0xf]
        %v5068 = vld [vmem:[%s5 + $0xc] sm:$0xf]
        %v5069 = vld [vmem:[%s5 + $0x10] sm:$0xf]
        %v5070 = vld [vmem:[%s5 + $0x14] sm:$0xf]
        %v5071 = vld [vmem:[%s5 + $0x18] sm:$0xf]
        %v5072 = vld [vmem:[%s5 + $0x1c] sm:$0xf]
        %v5073 = vld [vmem:[%s5 + $0x20] sm:$0xf]
        %v5074 = vld [vmem:[%s5 + $0x24] sm:$0xf]
        %v5075 = vld [vmem:[%s5 + $0x28] sm:$0xf]
        %v5076 = vld [vmem:[%s5 + $0x2c] sm:$0xf]
        %v5077 = vld [vmem:[%s5 + $0x30] sm:$0xf]
        %v5078 = vld [vmem:[%s5 + $0x34] sm:$0xf]
        %v5079 = vld [vmem:[%s5 + $0x38] sm:$0xf]
        %v5080 = vld [vmem:[%s5 + $0x3c] sm:$0xf]
        %v5081 = vld [vmem:[%s6] sm:$0x1]
        %v5098 = vunpack.c.l.b16 %v5065
        %v5099 = vunpack.c.l.b16 %v5066
        %v5100 = vunpack.c.l.b16 %v5067
        %v5101 = vunpack.c.l.b16 %v5068
        %v5102 = vunpack.c.l.b16 %v5069
        %v5103 = vunpack.c.l.b16 %v5070
        %v5104 = vunpack.c.l.b16 %v5071
        %v5105 = vunpack.c.l.b16 %v5072
        %v5106 = vunpack.c.l.b16 %v5073
        %v5107 = vunpack.c.l.b16 %v5074
        %v5108 = vunpack.c.l.b16 %v5075
        %v5109 = vunpack.c.l.b16 %v5076
        %v5110 = vunpack.c.l.b16 %v5077
        %v5111 = vunpack.c.l.b16 %v5078
        %v5112 = vunpack.c.l.b16 %v5079
        %v5113 = vunpack.c.l.b16 %v5080
        %v5114 = vpack.c.b16 %v5099, %v5098
        %v5115 = vpack.c.b16 %v5101, %v5100
        %v5116 = vpack.c.b16 %v5103, %v5102
        %v5117 = vpack.c.b16 %v5105, %v5104
        %v5118 = vpack.c.b16 %v5107, %v5106
        %v5119 = vpack.c.b16 %v5109, %v5108
        %v5120 = vpack.c.b16 %v5111, %v5110
        %v5121 = vpack.c.b16 %v5113, %v5112
        %5130 = vmatpush.bf16.msra.mxu0 %v5121
        %5131 = vmatpush.bf16.msra.mxu0 %v5120
        %5132 = vmatpush.bf16.msra.mxu0 %v5119
        %5133 = vmatpush.bf16.msra.mxu0 %v5118
        %5134 = vmatpush.bf16.msra.mxu0 %v5117
        %5135 = vmatpush.bf16.msra.mxu0 %v5116
        %5136 = vmatpush.bf16.msra.mxu0 %v5115
        %5137 = vmatpush.bf16.msra.mxu0 %v5114
        %5138 = vmatmul.bf16.gmra.mxu0 %v5064
        %v5139 = vpop.f32.mrf.mxu0
        %v5140 = vadd.f32 %v5081, %v5139
        %v5141 = vpop.f32.mrf.mxu0
        %5142 = vdwg.mxu0
        %5143 = vst [vmem:[%s325] sm:$0x1] %v5140
        %s5144 = sand.u32 %s225, 1
        %s5145 = scalar_lea.sflag [#allocation4], %s5144
        %s5146 = sand.u32 %s225, 1
        %s5147 = scalar_lea.vmem [#allocation3], %s5146
        // Predicated region
        $region57: #{tilenet_forward.1} parent=55 // pred_check
          %p5148 = pneg %p235
        $region58: #{tilenet_forward.1} parent=55 // pred_check_branch
          %5150 = sbr.rel (%p5148) target = $region60
        $region59: #{tilenet_forward.1} parent=55 // pred_region
          %5152 = vsyncadd %s5145, 0
          %s5153 = scalar_lea.hbm %s9, %s23
          %s5155 = sshll.u32 %s5147, 4
          %s5156 = int_to_ptr.vmem [resolvable:$true] %s5155
          %s5157 = sshll.u32 %s5153, 4
          %s5158 = int_to_ptr.hbm [resolvable:$true] %s5157
          %5160 = dma.vmem_to_hbm [thread:$0]  %s5156, 16, %s5158, %s5145
        $region60: #{tilenet_forward.1} parent=55 // pred_fallthru
          _
      $region56: #{tilenet_forward.1} parent=5 // pred_fallthru
        _
      %p5161 = scmp.le.s32.totalorder 2, %s18
      // Predicated region
      $region61: #{tilenet_forward.1} parent=5 // pred_check
        %p5162 = pneg %p5161
      $region62: #{tilenet_forward.1} parent=5 // pred_check_branch
        %5164 = sbr.rel (%p5162) target = $region64
      $region63: #{tilenet_forward.1} parent=5 // pred_region
        %s5165 = ssub.s32 %s18, 2
        // Predicated region
        $region65: #{tilenet_forward.1} parent=63 // pred_check
          %p5166 = pneg %p241
        $region66: #{tilenet_forward.1} parent=63 // pred_check_branch
          %5168 = sbr.rel (%p5166) target = $region68
        $region67: #{tilenet_forward.1} parent=63 // pred_region
          %s5169 = sand.u32 %s226, 1
          %s5170 = scalar_lea.sflag [#allocation4], %s5169
          %s5171 = sand.u32 %s226, 1
          %s5172 = scalar_lea.vmem [#allocation3], %s5171
          %5174 = dma.done %s5170, 16
        $region68: #{tilenet_forward.1} parent=63 // pred_fallthru
          _
      $region64: #{tilenet_forward.1} parent=5 // pred_fallthru
        _
    $region6: #{tilenet_forward.1} parent=1 // loop_footer
      %s22 = sadd.s32 1, %s18
    $region7: #{tilenet_forward.1} parent=1 // loop_footer_branch
      %17 = sbr.rel target = $region3
    $region8: #{tilenet_forward.1} parent=1 // loop_exit
      _
    %5175 = vsyncpa [#allocation4], 1
    %s5176 = scalar_lea.sflag [#allocation4], 1
    %5177 = vsyncpa %s5176, 1

</llo_original>
